<compile_context>
chip_gen: v5e
topology: v5e:2x2
jax: 0.10.0
libtpu: 0.0.40
codegen_flags: <defaults>
</compile_context>

<pallas_src>
import functools

import jax
import jax.numpy as jnp
from jax.experimental import pallas as pl
from jax.experimental.pallas import tpu as pltpu

LN_EPS = 1e-5            # nn.LayerNorm default
RMS_EPS = 1e-8           # RMSNorm eps in the module
_VMEM_LIMIT = 32 << 20   # safe on v5e/v6e (128 MiB) and v7x (64 MiB physical)


# ---------------------------------------------------------------------------
# In-kernel math helpers (all f32)
# ---------------------------------------------------------------------------
def _layer_norm_f32(x, g, b):
    # two-pass (centered) variance: matches torch and avoids cancellation
    mean = jnp.mean(x, axis=-1, keepdims=True)
    c = x - mean
    var = jnp.mean(c * c, axis=-1, keepdims=True)
    return c * jax.lax.rsqrt(var + LN_EPS) * g + b


def _rms_norm_f32(x, g, scale):
    n = jnp.sqrt(jnp.sum(x * x, axis=-1, keepdims=True)) * scale
    return x / jnp.maximum(n, RMS_EPS) * g


def _erf_f32(x):
    # Abramowitz & Stegun 7.1.26 (max abs err ~1.5e-7); exp-only -> Mosaic-safe.
    a1, a2, a3, a4, a5 = 0.254829592, -0.284496736, 1.421413741, -1.453152027, 1.061405429
    p = 0.3275911
    sgn = jnp.where(x >= 0.0, 1.0, -1.0)
    ax = jnp.abs(x)
    t = 1.0 / (1.0 + p * ax)
    poly = ((((a5 * t + a4) * t + a3) * t + a2) * t + a1) * t
    return sgn * (1.0 - poly * jnp.exp(-ax * ax))


def _gelu_exact_f32(x):
    return x * 0.5 * (1.0 + _erf_f32(x * 0.7071067811865476))


# ---------------------------------------------------------------------------
# Fused transformer kernel: one grid step == one transformer layer
# ---------------------------------------------------------------------------
def _transformer_kernel(
    # inputs
    x_ref, pos_ref, in_w_ref, in_b_ref,
    aln_g_ref, aln_b_ref, qg_ref, kg_ref, wqkv_ref, wo_ref, bo_ref,
    fln_g_ref, fln_b_ref, w1_ref, b1_ref, w2_ref, b2_ref,
    fin_g_ref, fin_b_ref,
    # output
    o_ref,
    # scratch
    h_ref, qkv_ref, attn_ref,
    *, B, S, H, Dh, sm_scale):
    layer = pl.program_id(0)
    D = H * Dh

    # --- step-0 prologue: input projection + positional embedding ------------
    @pl.when(layer == 0)
    def _():
        x = x_ref[...].astype(jnp.bfloat16)
        h0 = jnp.dot(x, in_w_ref[...], preferred_element_type=jnp.float32)
        h_ref[...] = h0 + in_b_ref[...] + pos_ref[...]

    h = h_ref[...]                                           # (B*S, D) f32

    # --- attention block (pre-LN, fused QKV, RMSNorm(q,k), softmax, out-proj,
    #     residual) ------------------------------------------------------------
    a = _layer_norm_f32(h, aln_g_ref[...], aln_b_ref[...])
    qkv_ref[...] = jnp.dot(a.astype(jnp.bfloat16), wqkv_ref[...],
                           preferred_element_type=jnp.float32)   # (B*S, 3D)
    gq = qg_ref[...]                                         # (1, Dh)
    gk = kg_ref[...]
    for b in range(B):                                       # tiny, unrolled
        r0 = b * S
        for hh in range(H):
            c0 = hh * Dh
            q_bh = qkv_ref[r0:r0 + S, c0:c0 + Dh]            # (S, Dh) f32
            k_bh = qkv_ref[r0:r0 + S, D + c0:D + c0 + Dh]
            v_bh = qkv_ref[r0:r0 + S, 2 * D + c0:2 * D + c0 + Dh]
            qn = _rms_norm_f32(q_bh, gq, sm_scale) * sm_scale
            kn = _rms_norm_f32(k_bh, gk, sm_scale)
            sim = jax.lax.dot_general(                        # q @ k^T  (S, S)
                qn, kn, (((1,), (1,)), ((), ())),
                preferred_element_type=jnp.float32)
            sim = sim - jnp.max(sim, axis=-1, keepdims=True)
            p = jnp.exp(sim)
            attn = p / jnp.sum(p, axis=-1, keepdims=True)
            attn_ref[r0:r0 + S, c0:c0 + Dh] = jnp.dot(
                attn, v_bh, preferred_element_type=jnp.float32)
    # merged heads are already a lane-dense (B*S, D) slab in attn_ref
    o_attn = jnp.dot(attn_ref[...].astype(jnp.bfloat16), wo_ref[...],
                     preferred_element_type=jnp.float32) + bo_ref[...]
    h = h + o_attn

    # --- feed-forward block (pre-LN, w1 + bias + exact GELU, w2 + bias,
    #     residual) -------------------------------------------------------------
    f = _layer_norm_f32(h, fln_g_ref[...], fln_b_ref[...])
    f1 = jnp.dot(f.astype(jnp.bfloat16), w1_ref[...],
                 preferred_element_type=jnp.float32) + b1_ref[...]
    f1 = _gelu_exact_f32(f1)
    f2 = jnp.dot(f1.astype(jnp.bfloat16), w2_ref[...],
                 preferred_element_type=jnp.float32) + b2_ref[...]
    h = h + f2
    h_ref[...] = h

    # --- last-step epilogue: final LayerNorm ----------------------------------
    @pl.when(layer == pl.num_programs(0) - 1)
    def _():
        o_ref[...] = _layer_norm_f32(h, fin_g_ref[...], fin_b_ref[...]
                                     ).astype(o_ref.dtype)


# ---------------------------------------------------------------------------
# Wrapper: stacks per-layer params, builds BlockSpecs, single pallas_call
# ---------------------------------------------------------------------------
def transformer_forward(params, x, *, dim_head):
    B, S, Din = x.shape
    D = params["pos_emb"].shape[-1]
    H = D // dim_head
    depth = len(params["layers"])
    hidden = params["layers"][0]["w1"].shape[-1]
    BS = B * S
    f32, bf16 = jnp.float32, jnp.bfloat16

    x2 = x.reshape(BS, Din).astype(f32)
    # TODO(synk): AbsolutePositionalEmbedding body not in the spec; assuming the
    # standard table-lookup-with-(dim**-0.5)-scale variant.
    pos = (params["pos_emb"][:S] * (D ** -0.5)).astype(f32)
    pos = jnp.tile(pos, (B, 1))                              # (BS, D)

    in_w = params["in_w"].astype(bf16)
    in_b = params["in_b"].reshape(1, D).astype(f32)
    fin_g = params["final_ln_g"].reshape(1, D).astype(f32)
    fin_b = params["final_ln_b"].reshape(1, D).astype(f32)

    def stack(name, shape, dtype):
        return jnp.stack([l[name].reshape(shape) for l in params["layers"]]
                         ).astype(dtype)

    wqkv = jnp.stack([jnp.concatenate([l["wq"], l["wk"], l["wv"]], axis=-1)
                      for l in params["layers"]]).astype(bf16)   # (depth, D, 3D)
    wo = stack("wo", (D, D), bf16)
    bo = stack("bo", (1, D), f32)
    aln_g = stack("attn_ln_g", (1, D), f32)
    aln_b = stack("attn_ln_b", (1, D), f32)
    qg = stack("q_gamma", (1, dim_head), f32)
    kg = stack("k_gamma", (1, dim_head), f32)
    fln_g = stack("ff_ln_g", (1, D), f32)
    fln_b = stack("ff_ln_b", (1, D), f32)
    w1 = stack("w1", (D, hidden), bf16)
    b1 = stack("b1", (1, hidden), f32)
    w2 = stack("w2", (hidden, D), bf16)
    b2 = stack("b2", (1, D), f32)

    kernel = functools.partial(_transformer_kernel, B=B, S=S, H=H, Dh=dim_head,
                               sm_scale=dim_head ** -0.5)

    const2 = lambda shape: pl.BlockSpec(shape, lambda l: (0, 0))
    per_layer = lambda shape: pl.BlockSpec((None,) + shape, lambda l: (l, 0, 0))

    flops = int(2 * BS * Din * D
                + depth * (2 * BS * D * 3 * D + 2 * BS * D * D
                           + 4 * BS * D * hidden
                           + B * H * 4 * S * S * dim_head)
                + 20 * BS * D)
    transcendentals = int(depth * (BS * hidden + B * H * S * S) + 6 * depth * BS)
    bytes_accessed = int(BS * Din * 4 + 2 * BS * D * 4 + Din * D * 2
                         + depth * 2 * (3 * D * D + D * D + 2 * D * hidden)
                         + depth * 4 * (6 * D + 2 * dim_head + hidden) + 12 * D)

    out = pl.pallas_call(
        kernel,
        out_shape=jax.ShapeDtypeStruct((BS, D), x.dtype),
        grid_spec=pltpu.PrefetchScalarGridSpec(
            num_scalar_prefetch=0,
            grid=(depth,),
            in_specs=[
                const2((BS, Din)),          # x
                const2((BS, D)),            # pos emb (pre-scaled, batch-tiled)
                const2((Din, D)),           # input_proj W
                const2((1, D)),             # input_proj b
                per_layer((1, D)),          # attn LN gamma
                per_layer((1, D)),          # attn LN beta
                per_layer((1, dim_head)),   # q RMSNorm gamma
                per_layer((1, dim_head)),   # k RMSNorm gamma
                per_layer((D, 3 * D)),      # fused Wq|Wk|Wv
                per_layer((D, D)),          # Wo
                per_layer((1, D)),          # bo
                per_layer((1, D)),          # ff LN gamma
                per_layer((1, D)),          # ff LN beta
                per_layer((D, hidden)),     # W1
                per_layer((1, hidden)),     # b1
                per_layer((hidden, D)),     # W2
                per_layer((1, D)),          # b2
                const2((1, D)),             # final LN gamma
                const2((1, D)),             # final LN beta
            ],
            out_specs=pl.BlockSpec((BS, D), lambda l: (0, 0)),
            scratch_shapes=[
                pltpu.VMEM((BS, D), jnp.float32),       # residual stream h
                pltpu.VMEM((BS, 3 * D), jnp.float32),   # fused qkv
                pltpu.VMEM((BS, D), jnp.float32),       # merged attention out
            ],
        ),
        compiler_params=pltpu.CompilerParams(
            dimension_semantics=("arbitrary",),          # layers are sequential
            vmem_limit_bytes=_VMEM_LIMIT,
        ),
        cost_estimate=pl.CostEstimate(
            flops=flops, transcendentals=transcendentals,
            bytes_accessed=bytes_accessed),
    )(x2, pos, in_w, in_b, aln_g, aln_b, qg, kg, wqkv, wo, bo,
      fln_g, fln_b, w1, b1, w2, b2, fin_g, fin_b)
    return out.reshape(B, S, D)


# ---------------------------------------------------------------------------
# Pure-JAX reference (mirrors the PyTorch module's math, f32 HIGHEST precision)
# ---------------------------------------------------------------------------
def _ref_layer_norm(x, g, b):
    m = jnp.mean(x, axis=-1, keepdims=True)
    v = jnp.mean((x - m) ** 2, axis=-1, keepdims=True)
    return (x - m) * jax.lax.rsqrt(v + LN_EPS) * g + b


def _ref_rms_norm(x, g, scale):
    n = jnp.sqrt(jnp.sum(x * x, axis=-1, keepdims=True)) * scale
    return x / jnp.maximum(n, RMS_EPS) * g


def reference_forward(params, x, *, dim_head):
    hp = jax.lax.Precision.HIGHEST
    B, S, Din = x.shape
    D = params["pos_emb"].shape[-1]
    H = D // dim_head
    h = jnp.dot(x.reshape(B * S, Din), params["in_w"], precision=hp) + params["in_b"]
    h = h.reshape(B, S, D) + (params["pos_emb"][:S] * (D ** -0.5))[None]
    for layer in params["layers"]:
        a = _ref_layer_norm(h, layer["attn_ln_g"], layer["attn_ln_b"]).reshape(B * S, D)
        def heads(t):
            return t.reshape(B, S, H, dim_head).transpose(0, 2, 1, 3)
        q = heads(jnp.dot(a, layer["wq"], precision=hp))
        k = heads(jnp.dot(a, layer["wk"], precision=hp))
        v = heads(jnp.dot(a, layer["wv"], precision=hp))
        scale = dim_head ** -0.5
        qn = _ref_rms_norm(q, layer["q_gamma"], scale) * scale
        kn = _ref_rms_norm(k, layer["k_gamma"], scale)
        sim = jnp.einsum("bhid,bhjd->bhij", qn, kn, precision=hp)
        attn = jax.nn.softmax(sim, axis=-1)
        o = jnp.einsum("bhij,bhjd->bhid", attn, v, precision=hp)
        o = o.transpose(0, 2, 1, 3).reshape(B * S, D)
        o = jnp.dot(o, layer["wo"], precision=hp) + layer["bo"]
        h = h + o.reshape(B, S, D)
        f = _ref_layer_norm(h, layer["ff_ln_g"], layer["ff_ln_b"]).reshape(B * S, D)
        f = jnp.dot(f, layer["w1"], precision=hp) + layer["b1"]
        f = jax.nn.gelu(f, approximate=False)
        f = jnp.dot(f, layer["w2"], precision=hp) + layer["b2"]
        h = h + f.reshape(B, S, D)
    return _ref_layer_norm(h, params["final_ln_g"], params["final_ln_b"])


# ---------------------------------------------------------------------------
# Deterministic parameter init (LayerNorm/RMSNorm params match nn.Module init)
# ---------------------------------------------------------------------------
def init_params(key, *, dim_input, dim_tx, depth, dim_head, max_seq_len, ff_mult):
    hidden = int(dim_tx * ff_mult)
    keys = iter(jax.random.split(key, 3 + depth * 9))
    w = lambda shape: jax.random.normal(next(keys), shape, jnp.float32) * 0.02
    params = {
        "pos_emb": w((max_seq_len, dim_tx)),
        "in_w": w((dim_input, dim_tx)),
        "in_b": w((dim_tx,)),
        "final_ln_g": jnp.ones((dim_tx,), jnp.float32),
        "final_ln_b": jnp.zeros((dim_tx,), jnp.float32),
        "layers": [],
    }
    for _ in range(depth):
        params["layers"].append({
            "attn_ln_g": jnp.ones((dim_tx,), jnp.float32),
            "attn_ln_b": jnp.zeros((dim_tx,), jnp.float32),
            "q_gamma": jnp.ones((dim_head,), jnp.float32),
            "k_gamma": jnp.ones((dim_head,), jnp.float32),
            "wq": w((dim_tx, dim_tx)),
            "wk": w((dim_tx, dim_tx)),
            "wv": w((dim_tx, dim_tx)),
            "wo": w((dim_tx, dim_tx)),
            "bo": w((dim_tx,)),
            "ff_ln_g": jnp.ones((dim_tx,), jnp.float32),
            "ff_ln_b": jnp.zeros((dim_tx,), jnp.float32),
            "w1": w((dim_tx, hidden)),
            "b1": w((hidden,)),
            "w2": w((hidden, dim_tx)),
            "b2": w((dim_tx,)),
        })
    return params


if __name__ == "__main__":
    DIM_INPUT, DIM_TX, DEPTH, DIM_HEAD, MAX_SEQ_LEN, FF_MULT = 32, 128, 2, 64, 64, 4
    B, S = 2, 8

    key = jax.random.PRNGKey(0)
    pkey, xkey = jax.random.split(key)
    params = init_params(pkey, dim_input=DIM_INPUT, dim_tx=DIM_TX, depth=DEPTH,
                         dim_head=DIM_HEAD, max_seq_len=MAX_SEQ_LEN, ff_mult=FF_MULT)
    x = jax.random.normal(xkey, (B, S, DIM_INPUT), dtype=jnp.float32)

    y = transformer_forward(params, x, dim_head=DIM_HEAD)
    jax.block_until_ready(y)

    y_ref = reference_forward(params, x, dim_head=DIM_HEAD)
    assert y.shape == (B, S, DIM_TX)
    assert bool(jnp.all(jnp.isfinite(y)))
    assert jnp.allclose(y, y_ref, atol=2e-2, rtol=2e-2), \
        f"mismatch vs reference, max abs diff = {float(jnp.max(jnp.abs(y - y_ref)))}"

    print("KERNEL_OK")
</pallas_src>

<mosaic_0001>
module attributes {stable_mosaic.version = 11 : i64} {
  func.func @_transformer_kernel(%arg0: i32, %arg1: memref<16x32xf32, #tpu.memory_space<vmem>>, %arg2: memref<16x128xf32, #tpu.memory_space<vmem>>, %arg3: memref<32x128xbf16, #tpu.memory_space<vmem>>, %arg4: memref<1x128xf32, #tpu.memory_space<vmem>>, %arg5: memref<1x1x128xf32, #tpu.memory_space<vmem>>, %arg6: memref<1x1x128xf32, #tpu.memory_space<vmem>>, %arg7: memref<1x1x64xf32, #tpu.memory_space<vmem>>, %arg8: memref<1x1x64xf32, #tpu.memory_space<vmem>>, %arg9: memref<1x128x384xbf16, #tpu.memory_space<vmem>>, %arg10: memref<1x128x128xbf16, #tpu.memory_space<vmem>>, %arg11: memref<1x1x128xf32, #tpu.memory_space<vmem>>, %arg12: memref<1x1x128xf32, #tpu.memory_space<vmem>>, %arg13: memref<1x1x128xf32, #tpu.memory_space<vmem>>, %arg14: memref<1x128x512xbf16, #tpu.memory_space<vmem>>, %arg15: memref<1x1x512xf32, #tpu.memory_space<vmem>>, %arg16: memref<1x512x128xbf16, #tpu.memory_space<vmem>>, %arg17: memref<1x1x128xf32, #tpu.memory_space<vmem>>, %arg18: memref<1x128xf32, #tpu.memory_space<vmem>>, %arg19: memref<1x128xf32, #tpu.memory_space<vmem>>, %arg20: memref<16x128xf32, #tpu.memory_space<vmem>>, %arg21: memref<16x128xf32, #tpu.memory_space<vmem>>, %arg22: memref<16x384xf32, #tpu.memory_space<vmem>>, %arg23: memref<16x128xf32, #tpu.memory_space<vmem>>) attributes {dimension_semantics = [#tpu.dimension_semantics<arbitrary>], iteration_bounds = array<i64: 2>, scalar_prefetch = 0 : i64, scratch_operands = 3 : i64, tpu.core_type = #tpu.core_type<tc>, window_params = [{pipeline_mode = #tpu.pipeline_mode<synchronous>, transform_indices = @transform_0, window_bounds = array<i64: 16, 32>}, {pipeline_mode = #tpu.pipeline_mode<synchronous>, transform_indices = @transform_1, window_bounds = array<i64: 16, 128>}, {pipeline_mode = #tpu.pipeline_mode<synchronous>, transform_indices = @transform_2, window_bounds = array<i64: 32, 128>}, {pipeline_mode = #tpu.pipeline_mode<synchronous>, transform_indices = @transform_3, window_bounds = array<i64: 1, 128>}, {transform_indices = @transform_4, window_bounds = array<i64: 1, 1, 128>}, {transform_indices = @transform_5, window_bounds = array<i64: 1, 1, 128>}, {transform_indices = @transform_6, window_bounds = array<i64: 1, 1, 64>}, {transform_indices = @transform_7, window_bounds = array<i64: 1, 1, 64>}, {transform_indices = @transform_8, window_bounds = array<i64: 1, 128, 384>}, {transform_indices = @transform_9, window_bounds = array<i64: 1, 128, 128>}, {transform_indices = @transform_10, window_bounds = array<i64: 1, 1, 128>}, {transform_indices = @transform_11, window_bounds = array<i64: 1, 1, 128>}, {transform_indices = @transform_12, window_bounds = array<i64: 1, 1, 128>}, {transform_indices = @transform_13, window_bounds = array<i64: 1, 128, 512>}, {transform_indices = @transform_14, window_bounds = array<i64: 1, 1, 512>}, {transform_indices = @transform_15, window_bounds = array<i64: 1, 512, 128>}, {transform_indices = @transform_16, window_bounds = array<i64: 1, 1, 128>}, {pipeline_mode = #tpu.pipeline_mode<synchronous>, transform_indices = @transform_17, window_bounds = array<i64: 1, 128>}, {pipeline_mode = #tpu.pipeline_mode<synchronous>, transform_indices = @transform_18, window_bounds = array<i64: 1, 128>}, {pipeline_mode = #tpu.pipeline_mode<synchronous>, transform_indices = @transform_19, window_bounds = array<i64: 16, 128>}]} {
    %c0_i32 = arith.constant 0 : i32
    %0 = arith.cmpi eq, %arg0, %c0_i32 : i32
    %1 = arith.extui %0 : i1 to i32
    %c0_i32_0 = arith.constant 0 : i32
    %2 = arith.cmpi ne, %1, %c0_i32_0 : i32
    scf.if %2 {
      %c0_147 = arith.constant 0 : index
      %c0_148 = arith.constant 0 : index
      %297 = vector.load %arg1[%c0_147, %c0_148] : memref<16x32xf32, #tpu.memory_space<vmem>>, vector<16x32xf32>
      %298 = arith.truncf %297 : vector<16x32xf32> to vector<16x32xbf16>
      %c0_149 = arith.constant 0 : index
      %c0_150 = arith.constant 0 : index
      %299 = vector.load %arg3[%c0_149, %c0_150] : memref<32x128xbf16, #tpu.memory_space<vmem>>, vector<32x128xbf16>
      %cst_151 = arith.constant dense<0.000000e+00> : vector<16x128xf32>
      %300 = tpu.matmul %298, %299, %cst_151 {dimension_numbers = #tpu.dot_dimension_numbers<[1], [0], [0], [1], [0, 0, 1, 1], [], []>} : vector<16x32xbf16>, vector<32x128xbf16>, vector<16x128xf32> -> vector<16x128xf32>
      %c0_152 = arith.constant 0 : index
      %c0_153 = arith.constant 0 : index
      %301 = vector.load %arg4[%c0_152, %c0_153] : memref<1x128xf32, #tpu.memory_space<vmem>>, vector<1x128xf32>
      %302 = vector.broadcast %301 : vector<1x128xf32> to vector<16x128xf32>
      %303 = arith.addf %300, %302 : vector<16x128xf32>
      %c0_154 = arith.constant 0 : index
      %c0_155 = arith.constant 0 : index
      %304 = vector.load %arg2[%c0_154, %c0_155] : memref<16x128xf32, #tpu.memory_space<vmem>>, vector<16x128xf32>
      %305 = arith.addf %303, %304 : vector<16x128xf32>
      %c0_156 = arith.constant 0 : index
      %c0_157 = arith.constant 0 : index
      %306 = vector.load %arg21[%c0_156, %c0_157] : memref<16x128xf32, #tpu.memory_space<vmem>>, vector<16x128xf32>
      tpu.vector_store %arg21[%c0_156, %c0_157], %305 {strides = array<i32>} : memref<16x128xf32, #tpu.memory_space<vmem>>, vector<16x128xf32>,
    } else {
    }
    %c0 = arith.constant 0 : index
    %c0_1 = arith.constant 0 : index
    %3 = vector.load %arg21[%c0, %c0_1] : memref<16x128xf32, #tpu.memory_space<vmem>>, vector<16x128xf32>
    %c0_2 = arith.constant 0 : index
    %c0_3 = arith.constant 0 : index
    %c0_4 = arith.constant 0 : index
    %4 = vector.load %arg5[%c0_2, %c0_3, %c0_4] : memref<1x1x128xf32, #tpu.memory_space<vmem>>, vector<1x1x128xf32>
    %5 = vector.shape_cast %4 : vector<1x1x128xf32> to vector<1x128xf32>
    %c0_5 = arith.constant 0 : index
    %c0_6 = arith.constant 0 : index
    %c0_7 = arith.constant 0 : index
    %6 = vector.load %arg6[%c0_5, %c0_6, %c0_7] : memref<1x1x128xf32, #tpu.memory_space<vmem>>, vector<1x1x128xf32>
    %7 = vector.shape_cast %6 : vector<1x1x128xf32> to vector<1x128xf32>
    %cst = arith.constant dense<0.000000e+00> : vector<16xf32>
    %8 = vector.multi_reduction <add>, %3, %cst [1] : vector<16x128xf32> to vector<16xf32>
    %9 = vector.shape_cast %8 : vector<16xf32> to vector<16x1xf32>
    %cst_8 = arith.constant 1.280000e+02 : f32
    %10 = vector.broadcast %cst_8 : f32 to vector<16x1xf32>
    %11 = arith.divf %9, %10 : vector<16x1xf32>
    %12 = vector.broadcast %11 : vector<16x1xf32> to vector<16x128xf32>
    %13 = arith.subf %3, %12 : vector<16x128xf32>
    %14 = arith.mulf %13, %13 : vector<16x128xf32>
    %cst_9 = arith.constant dense<0.000000e+00> : vector<16xf32>
    %15 = vector.multi_reduction <add>, %14, %cst_9 [1] : vector<16x128xf32> to vector<16xf32>
    %16 = vector.shape_cast %15 : vector<16xf32> to vector<16x1xf32>
    %cst_10 = arith.constant 1.280000e+02 : f32
    %17 = vector.broadcast %cst_10 : f32 to vector<16x1xf32>
    %18 = arith.divf %16, %17 : vector<16x1xf32>
    %cst_11 = arith.constant 9.99999974E-6 : f32
    %19 = vector.broadcast %cst_11 : f32 to vector<16x1xf32>
    %20 = arith.addf %18, %19 : vector<16x1xf32>
    %21 = math.rsqrt %20 : vector<16x1xf32>
    %22 = vector.broadcast %21 : vector<16x1xf32> to vector<16x128xf32>
    %23 = arith.mulf %13, %22 : vector<16x128xf32>
    %24 = vector.broadcast %5 : vector<1x128xf32> to vector<16x128xf32>
    %25 = arith.mulf %23, %24 : vector<16x128xf32>
    %26 = vector.broadcast %7 : vector<1x128xf32> to vector<16x128xf32>
    %27 = arith.addf %25, %26 : vector<16x128xf32>
    %28 = arith.truncf %27 : vector<16x128xf32> to vector<16x128xbf16>
    %c0_12 = arith.constant 0 : index
    %c0_13 = arith.constant 0 : index
    %c0_14 = arith.constant 0 : index
    %29 = vector.load %arg9[%c0_12, %c0_13, %c0_14] : memref<1x128x384xbf16, #tpu.memory_space<vmem>>, vector<1x128x384xbf16>
    %30 = vector.shape_cast %29 : vector<1x128x384xbf16> to vector<128x384xbf16>
    %cst_15 = arith.constant dense<0.000000e+00> : vector<16x384xf32>
    %31 = tpu.matmul %28, %30, %cst_15 {dimension_numbers = #tpu.dot_dimension_numbers<[1], [0], [0], [1], [0, 0, 1, 1], [], []>} : vector<16x128xbf16>, vector<128x384xbf16>, vector<16x384xf32> -> vector<16x384xf32>
    %c0_16 = arith.constant 0 : index
    %c0_17 = arith.constant 0 : index
    %32 = vector.load %arg22[%c0_16, %c0_17] : memref<16x384xf32, #tpu.memory_space<vmem>>, vector<16x384xf32>
    tpu.vector_store %arg22[%c0_16, %c0_17], %31 {strides = array<i32>} : memref<16x384xf32, #tpu.memory_space<vmem>>, vector<16x384xf32>,
    %c0_18 = arith.constant 0 : index
    %c0_19 = arith.constant 0 : index
    %c0_20 = arith.constant 0 : index
    %33 = vector.load %arg7[%c0_18, %c0_19, %c0_20] : memref<1x1x64xf32, #tpu.memory_space<vmem>>, vector<1x1x64xf32>
    %34 = vector.shape_cast %33 : vector<1x1x64xf32> to vector<1x64xf32>
    %c0_21 = arith.constant 0 : index
    %c0_22 = arith.constant 0 : index
    %c0_23 = arith.constant 0 : index
    %35 = vector.load %arg8[%c0_21, %c0_22, %c0_23] : memref<1x1x64xf32, #tpu.memory_space<vmem>>, vector<1x1x64xf32>
    %36 = vector.shape_cast %35 : vector<1x1x64xf32> to vector<1x64xf32>
    %c0_24 = arith.constant 0 : index
    %c0_25 = arith.constant 0 : index
    %37 = vector.load %arg22[%c0_24, %c0_25] : memref<16x384xf32, #tpu.memory_space<vmem>>, vector<8x64xf32>
    %c0_26 = arith.constant 0 : index
    %c128 = arith.constant 128 : index
    %38 = vector.load %arg22[%c0_26, %c128] : memref<16x384xf32, #tpu.memory_space<vmem>>, vector<8x64xf32>
    %c0_27 = arith.constant 0 : index
    %c256 = arith.constant 256 : index
    %39 = vector.load %arg22[%c0_27, %c256] : memref<16x384xf32, #tpu.memory_space<vmem>>, vector<8x64xf32>
    %40 = arith.mulf %37, %37 : vector<8x64xf32>
    %cst_28 = arith.constant dense<0.000000e+00> : vector<8xf32>
    %41 = vector.multi_reduction <add>, %40, %cst_28 [1] : vector<8x64xf32> to vector<8xf32>
    %42 = vector.shape_cast %41 : vector<8xf32> to vector<8x1xf32>
    %43 = math.sqrt %42 : vector<8x1xf32>
    %cst_29 = arith.constant 1.250000e-01 : f32
    %44 = vector.broadcast %cst_29 : f32 to vector<8x1xf32>
    %45 = arith.mulf %43, %44 : vector<8x1xf32>
    %cst_30 = arith.constant 9.99999993E-9 : f32
    %46 = vector.broadcast %cst_30 : f32 to vector<8x1xf32>
    %47 = arith.maximumf %45, %46 : vector<8x1xf32>
    %48 = vector.broadcast %47 : vector<8x1xf32> to vector<8x64xf32>
    %49 = arith.divf %37, %48 : vector<8x64xf32>
    %50 = vector.broadcast %34 : vector<1x64xf32> to vector<8x64xf32>
    %51 = arith.mulf %49, %50 : vector<8x64xf32>
    %cst_31 = arith.constant 1.250000e-01 : f32
    %52 = vector.broadcast %cst_31 : f32 to vector<8x64xf32>
    %53 = arith.mulf %51, %52 : vector<8x64xf32>
    %54 = arith.mulf %38, %38 : vector<8x64xf32>
    %cst_32 = arith.constant dense<0.000000e+00> : vector<8xf32>
    %55 = vector.multi_reduction <add>, %54, %cst_32 [1] : vector<8x64xf32> to vector<8xf32>
    %56 = vector.shape_cast %55 : vector<8xf32> to vector<8x1xf32>
    %57 = math.sqrt %56 : vector<8x1xf32>
    %cst_33 = arith.constant 1.250000e-01 : f32
    %58 = vector.broadcast %cst_33 : f32 to vector<8x1xf32>
    %59 = arith.mulf %57, %58 : vector<8x1xf32>
    %cst_34 = arith.constant 9.99999993E-9 : f32
    %60 = vector.broadcast %cst_34 : f32 to vector<8x1xf32>
    %61 = arith.maximumf %59, %60 : vector<8x1xf32>
    %62 = vector.broadcast %61 : vector<8x1xf32> to vector<8x64xf32>
    %63 = arith.divf %38, %62 : vector<8x64xf32>
    %64 = vector.broadcast %36 : vector<1x64xf32> to vector<8x64xf32>
    %65 = arith.mulf %63, %64 : vector<8x64xf32>
    %cst_35 = arith.constant dense<0.000000e+00> : vector<8x8xf32>
    %66 = tpu.matmul %53, %65, %cst_35 {dimension_numbers = #tpu.dot_dimension_numbers<[1], [1], [0], [0], [0, 0, 1, 0], [], []>} : vector<8x64xf32>, vector<8x64xf32>, vector<8x8xf32> -> vector<8x8xf32>
    %cst_36 = arith.constant dense<0xFF800000> : vector<8xf32>
    %67 = vector.multi_reduction <maximumf>, %66, %cst_36 [1] : vector<8x8xf32> to vector<8xf32>
    %68 = vector.shape_cast %67 : vector<8xf32> to vector<8x1xf32>
    %69 = vector.broadcast %68 : vector<8x1xf32> to vector<8x8xf32>
    %70 = arith.subf %66, %69 : vector<8x8xf32>
    %71 = math.exp %70 : vector<8x8xf32>
    %cst_37 = arith.constant dense<0.000000e+00> : vector<8xf32>
    %72 = vector.multi_reduction <add>, %71, %cst_37 [1] : vector<8x8xf32> to vector<8xf32>
    %73 = vector.shape_cast %72 : vector<8xf32> to vector<8x1xf32>
    %74 = vector.broadcast %73 : vector<8x1xf32> to vector<8x8xf32>
    %75 = arith.divf %71, %74 : vector<8x8xf32>
    %cst_38 = arith.constant dense<0.000000e+00> : vector<8x64xf32>
    %76 = tpu.matmul %75, %39, %cst_38 {dimension_numbers = #tpu.dot_dimension_numbers<[1], [0], [0], [1], [0, 0, 1, 1], [], []>} : vector<8x8xf32>, vector<8x64xf32>, vector<8x64xf32> -> vector<8x64xf32>
    %c0_39 = arith.constant 0 : index
    %c0_40 = arith.constant 0 : index
    %77 = vector.load %arg23[%c0_39, %c0_40] : memref<16x128xf32, #tpu.memory_space<vmem>>, vector<8x64xf32>
    tpu.vector_store %arg23[%c0_39, %c0_40], %76 {strides = array<i32>} : memref<16x128xf32, #tpu.memory_space<vmem>>, vector<8x64xf32>,
    %c0_41 = arith.constant 0 : index
    %c64 = arith.constant 64 : index
    %78 = vector.load %arg22[%c0_41, %c64] : memref<16x384xf32, #tpu.memory_space<vmem>>, vector<8x64xf32>
    %c0_42 = arith.constant 0 : index
    %c192 = arith.constant 192 : index
    %79 = vector.load %arg22[%c0_42, %c192] : memref<16x384xf32, #tpu.memory_space<vmem>>, vector<8x64xf32>
    %c0_43 = arith.constant 0 : index
    %c320 = arith.constant 320 : index
    %80 = vector.load %arg22[%c0_43, %c320] : memref<16x384xf32, #tpu.memory_space<vmem>>, vector<8x64xf32>
    %81 = arith.mulf %78, %78 : vector<8x64xf32>
    %cst_44 = arith.constant dense<0.000000e+00> : vector<8xf32>
    %82 = vector.multi_reduction <add>, %81, %cst_44 [1] : vector<8x64xf32> to vector<8xf32>
    %83 = vector.shape_cast %82 : vector<8xf32> to vector<8x1xf32>
    %84 = math.sqrt %83 : vector<8x1xf32>
    %cst_45 = arith.constant 1.250000e-01 : f32
    %85 = vector.broadcast %cst_45 : f32 to vector<8x1xf32>
    %86 = arith.mulf %84, %85 : vector<8x1xf32>
    %cst_46 = arith.constant 9.99999993E-9 : f32
    %87 = vector.broadcast %cst_46 : f32 to vector<8x1xf32>
    %88 = arith.maximumf %86, %87 : vector<8x1xf32>
    %89 = vector.broadcast %88 : vector<8x1xf32> to vector<8x64xf32>
    %90 = arith.divf %78, %89 : vector<8x64xf32>
    %91 = vector.broadcast %34 : vector<1x64xf32> to vector<8x64xf32>
    %92 = arith.mulf %90, %91 : vector<8x64xf32>
    %cst_47 = arith.constant 1.250000e-01 : f32
    %93 = vector.broadcast %cst_47 : f32 to vector<8x64xf32>
    %94 = arith.mulf %92, %93 : vector<8x64xf32>
    %95 = arith.mulf %79, %79 : vector<8x64xf32>
    %cst_48 = arith.constant dense<0.000000e+00> : vector<8xf32>
    %96 = vector.multi_reduction <add>, %95, %cst_48 [1] : vector<8x64xf32> to vector<8xf32>
    %97 = vector.shape_cast %96 : vector<8xf32> to vector<8x1xf32>
    %98 = math.sqrt %97 : vector<8x1xf32>
    %cst_49 = arith.constant 1.250000e-01 : f32
    %99 = vector.broadcast %cst_49 : f32 to vector<8x1xf32>
    %100 = arith.mulf %98, %99 : vector<8x1xf32>
    %cst_50 = arith.constant 9.99999993E-9 : f32
    %101 = vector.broadcast %cst_50 : f32 to vector<8x1xf32>
    %102 = arith.maximumf %100, %101 : vector<8x1xf32>
    %103 = vector.broadcast %102 : vector<8x1xf32> to vector<8x64xf32>
    %104 = arith.divf %79, %103 : vector<8x64xf32>
    %105 = vector.broadcast %36 : vector<1x64xf32> to vector<8x64xf32>
    %106 = arith.mulf %104, %105 : vector<8x64xf32>
    %cst_51 = arith.constant dense<0.000000e+00> : vector<8x8xf32>
    %107 = tpu.matmul %94, %106, %cst_51 {dimension_numbers = #tpu.dot_dimension_numbers<[1], [1], [0], [0], [0, 0, 1, 0], [], []>} : vector<8x64xf32>, vector<8x64xf32>, vector<8x8xf32> -> vector<8x8xf32>
    %cst_52 = arith.constant dense<0xFF800000> : vector<8xf32>
    %108 = vector.multi_reduction <maximumf>, %107, %cst_52 [1] : vector<8x8xf32> to vector<8xf32>
    %109 = vector.shape_cast %108 : vector<8xf32> to vector<8x1xf32>
    %110 = vector.broadcast %109 : vector<8x1xf32> to vector<8x8xf32>
    %111 = arith.subf %107, %110 : vector<8x8xf32>
    %112 = math.exp %111 : vector<8x8xf32>
    %cst_53 = arith.constant dense<0.000000e+00> : vector<8xf32>
    %113 = vector.multi_reduction <add>, %112, %cst_53 [1] : vector<8x8xf32> to vector<8xf32>
    %114 = vector.shape_cast %113 : vector<8xf32> to vector<8x1xf32>
    %115 = vector.broadcast %114 : vector<8x1xf32> to vector<8x8xf32>
    %116 = arith.divf %112, %115 : vector<8x8xf32>
    %cst_54 = arith.constant dense<0.000000e+00> : vector<8x64xf32>
    %117 = tpu.matmul %116, %80, %cst_54 {dimension_numbers = #tpu.dot_dimension_numbers<[1], [0], [0], [1], [0, 0, 1, 1], [], []>} : vector<8x8xf32>, vector<8x64xf32>, vector<8x64xf32> -> vector<8x64xf32>
    %c0_55 = arith.constant 0 : index
    %c64_56 = arith.constant 64 : index
    %118 = vector.load %arg23[%c0_55, %c64_56] : memref<16x128xf32, #tpu.memory_space<vmem>>, vector<8x64xf32>
    tpu.vector_store %arg23[%c0_55, %c64_56], %117 {strides = array<i32>} : memref<16x128xf32, #tpu.memory_space<vmem>>, vector<8x64xf32>,
    %c8 = arith.constant 8 : index
    %c0_57 = arith.constant 0 : index
    %119 = vector.load %arg22[%c8, %c0_57] : memref<16x384xf32, #tpu.memory_space<vmem>>, vector<8x64xf32>
    %c8_58 = arith.constant 8 : index
    %c128_59 = arith.constant 128 : index
    %120 = vector.load %arg22[%c8_58, %c128_59] : memref<16x384xf32, #tpu.memory_space<vmem>>, vector<8x64xf32>
    %c8_60 = arith.constant 8 : index
    %c256_61 = arith.constant 256 : index
    %121 = vector.load %arg22[%c8_60, %c256_61] : memref<16x384xf32, #tpu.memory_space<vmem>>, vector<8x64xf32>
    %122 = arith.mulf %119, %119 : vector<8x64xf32>
    %cst_62 = arith.constant dense<0.000000e+00> : vector<8xf32>
    %123 = vector.multi_reduction <add>, %122, %cst_62 [1] : vector<8x64xf32> to vector<8xf32>
    %124 = vector.shape_cast %123 : vector<8xf32> to vector<8x1xf32>
    %125 = math.sqrt %124 : vector<8x1xf32>
    %cst_63 = arith.constant 1.250000e-01 : f32
    %126 = vector.broadcast %cst_63 : f32 to vector<8x1xf32>
    %127 = arith.mulf %125, %126 : vector<8x1xf32>
    %cst_64 = arith.constant 9.99999993E-9 : f32
    %128 = vector.broadcast %cst_64 : f32 to vector<8x1xf32>
    %129 = arith.maximumf %127, %128 : vector<8x1xf32>
    %130 = vector.broadcast %129 : vector<8x1xf32> to vector<8x64xf32>
    %131 = arith.divf %119, %130 : vector<8x64xf32>
    %132 = vector.broadcast %34 : vector<1x64xf32> to vector<8x64xf32>
    %133 = arith.mulf %131, %132 : vector<8x64xf32>
    %cst_65 = arith.constant 1.250000e-01 : f32
    %134 = vector.broadcast %cst_65 : f32 to vector<8x64xf32>
    %135 = arith.mulf %133, %134 : vector<8x64xf32>
    %136 = arith.mulf %120, %120 : vector<8x64xf32>
    %cst_66 = arith.constant dense<0.000000e+00> : vector<8xf32>
    %137 = vector.multi_reduction <add>, %136, %cst_66 [1] : vector<8x64xf32> to vector<8xf32>
    %138 = vector.shape_cast %137 : vector<8xf32> to vector<8x1xf32>
    %139 = math.sqrt %138 : vector<8x1xf32>
    %cst_67 = arith.constant 1.250000e-01 : f32
    %140 = vector.broadcast %cst_67 : f32 to vector<8x1xf32>
    %141 = arith.mulf %139, %140 : vector<8x1xf32>
    %cst_68 = arith.constant 9.99999993E-9 : f32
    %142 = vector.broadcast %cst_68 : f32 to vector<8x1xf32>
    %143 = arith.maximumf %141, %142 : vector<8x1xf32>
    %144 = vector.broadcast %143 : vector<8x1xf32> to vector<8x64xf32>
    %145 = arith.divf %120, %144 : vector<8x64xf32>
    %146 = vector.broadcast %36 : vector<1x64xf32> to vector<8x64xf32>
    %147 = arith.mulf %145, %146 : vector<8x64xf32>
    %cst_69 = arith.constant dense<0.000000e+00> : vector<8x8xf32>
    %148 = tpu.matmul %135, %147, %cst_69 {dimension_numbers = #tpu.dot_dimension_numbers<[1], [1], [0], [0], [0, 0, 1, 0], [], []>} : vector<8x64xf32>, vector<8x64xf32>, vector<8x8xf32> -> vector<8x8xf32>
    %cst_70 = arith.constant dense<0xFF800000> : vector<8xf32>
    %149 = vector.multi_reduction <maximumf>, %148, %cst_70 [1] : vector<8x8xf32> to vector<8xf32>
    %150 = vector.shape_cast %149 : vector<8xf32> to vector<8x1xf32>
    %151 = vector.broadcast %150 : vector<8x1xf32> to vector<8x8xf32>
    %152 = arith.subf %148, %151 : vector<8x8xf32>
    %153 = math.exp %152 : vector<8x8xf32>
    %cst_71 = arith.constant dense<0.000000e+00> : vector<8xf32>
    %154 = vector.multi_reduction <add>, %153, %cst_71 [1] : vector<8x8xf32> to vector<8xf32>
    %155 = vector.shape_cast %154 : vector<8xf32> to vector<8x1xf32>
    %156 = vector.broadcast %155 : vector<8x1xf32> to vector<8x8xf32>
    %157 = arith.divf %153, %156 : vector<8x8xf32>
    %cst_72 = arith.constant dense<0.000000e+00> : vector<8x64xf32>
    %158 = tpu.matmul %157, %121, %cst_72 {dimension_numbers = #tpu.dot_dimension_numbers<[1], [0], [0], [1], [0, 0, 1, 1], [], []>} : vector<8x8xf32>, vector<8x64xf32>, vector<8x64xf32> -> vector<8x64xf32>
    %c8_73 = arith.constant 8 : index
    %c0_74 = arith.constant 0 : index
    %159 = vector.load %arg23[%c8_73, %c0_74] : memref<16x128xf32, #tpu.memory_space<vmem>>, vector<8x64xf32>
    tpu.vector_store %arg23[%c8_73, %c0_74], %158 {strides = array<i32>} : memref<16x128xf32, #tpu.memory_space<vmem>>, vector<8x64xf32>,
    %c8_75 = arith.constant 8 : index
    %c64_76 = arith.constant 64 : index
    %160 = vector.load %arg22[%c8_75, %c64_76] : memref<16x384xf32, #tpu.memory_space<vmem>>, vector<8x64xf32>
    %c8_77 = arith.constant 8 : index
    %c192_78 = arith.constant 192 : index
    %161 = vector.load %arg22[%c8_77, %c192_78] : memref<16x384xf32, #tpu.memory_space<vmem>>, vector<8x64xf32>
    %c8_79 = arith.constant 8 : index
    %c320_80 = arith.constant 320 : index
    %162 = vector.load %arg22[%c8_79, %c320_80] : memref<16x384xf32, #tpu.memory_space<vmem>>, vector<8x64xf32>
    %163 = arith.mulf %160, %160 : vector<8x64xf32>
    %cst_81 = arith.constant dense<0.000000e+00> : vector<8xf32>
    %164 = vector.multi_reduction <add>, %163, %cst_81 [1] : vector<8x64xf32> to vector<8xf32>
    %165 = vector.shape_cast %164 : vector<8xf32> to vector<8x1xf32>
    %166 = math.sqrt %165 : vector<8x1xf32>
    %cst_82 = arith.constant 1.250000e-01 : f32
    %167 = vector.broadcast %cst_82 : f32 to vector<8x1xf32>
    %168 = arith.mulf %166, %167 : vector<8x1xf32>
    %cst_83 = arith.constant 9.99999993E-9 : f32
    %169 = vector.broadcast %cst_83 : f32 to vector<8x1xf32>
    %170 = arith.maximumf %168, %169 : vector<8x1xf32>
    %171 = vector.broadcast %170 : vector<8x1xf32> to vector<8x64xf32>
    %172 = arith.divf %160, %171 : vector<8x64xf32>
    %173 = vector.broadcast %34 : vector<1x64xf32> to vector<8x64xf32>
    %174 = arith.mulf %172, %173 : vector<8x64xf32>
    %cst_84 = arith.constant 1.250000e-01 : f32
    %175 = vector.broadcast %cst_84 : f32 to vector<8x64xf32>
    %176 = arith.mulf %174, %175 : vector<8x64xf32>
    %177 = arith.mulf %161, %161 : vector<8x64xf32>
    %cst_85 = arith.constant dense<0.000000e+00> : vector<8xf32>
    %178 = vector.multi_reduction <add>, %177, %cst_85 [1] : vector<8x64xf32> to vector<8xf32>
    %179 = vector.shape_cast %178 : vector<8xf32> to vector<8x1xf32>
    %180 = math.sqrt %179 : vector<8x1xf32>
    %cst_86 = arith.constant 1.250000e-01 : f32
    %181 = vector.broadcast %cst_86 : f32 to vector<8x1xf32>
    %182 = arith.mulf %180, %181 : vector<8x1xf32>
    %cst_87 = arith.constant 9.99999993E-9 : f32
    %183 = vector.broadcast %cst_87 : f32 to vector<8x1xf32>
    %184 = arith.maximumf %182, %183 : vector<8x1xf32>
    %185 = vector.broadcast %184 : vector<8x1xf32> to vector<8x64xf32>
    %186 = arith.divf %161, %185 : vector<8x64xf32>
    %187 = vector.broadcast %36 : vector<1x64xf32> to vector<8x64xf32>
    %188 = arith.mulf %186, %187 : vector<8x64xf32>
    %cst_88 = arith.constant dense<0.000000e+00> : vector<8x8xf32>
    %189 = tpu.matmul %176, %188, %cst_88 {dimension_numbers = #tpu.dot_dimension_numbers<[1], [1], [0], [0], [0, 0, 1, 0], [], []>} : vector<8x64xf32>, vector<8x64xf32>, vector<8x8xf32> -> vector<8x8xf32>
    %cst_89 = arith.constant dense<0xFF800000> : vector<8xf32>
    %190 = vector.multi_reduction <maximumf>, %189, %cst_89 [1] : vector<8x8xf32> to vector<8xf32>
    %191 = vector.shape_cast %190 : vector<8xf32> to vector<8x1xf32>
    %192 = vector.broadcast %191 : vector<8x1xf32> to vector<8x8xf32>
    %193 = arith.subf %189, %192 : vector<8x8xf32>
    %194 = math.exp %193 : vector<8x8xf32>
    %cst_90 = arith.constant dense<0.000000e+00> : vector<8xf32>
    %195 = vector.multi_reduction <add>, %194, %cst_90 [1] : vector<8x8xf32> to vector<8xf32>
    %196 = vector.shape_cast %195 : vector<8xf32> to vector<8x1xf32>
    %197 = vector.broadcast %196 : vector<8x1xf32> to vector<8x8xf32>
    %198 = arith.divf %194, %197 : vector<8x8xf32>
    %cst_91 = arith.constant dense<0.000000e+00> : vector<8x64xf32>
    %199 = tpu.matmul %198, %162, %cst_91 {dimension_numbers = #tpu.dot_dimension_numbers<[1], [0], [0], [1], [0, 0, 1, 1], [], []>} : vector<8x8xf32>, vector<8x64xf32>, vector<8x64xf32> -> vector<8x64xf32>
    %c8_92 = arith.constant 8 : index
    %c64_93 = arith.constant 64 : index
    %200 = vector.load %arg23[%c8_92, %c64_93] : memref<16x128xf32, #tpu.memory_space<vmem>>, vector<8x64xf32>
    tpu.vector_store %arg23[%c8_92, %c64_93], %199 {strides = array<i32>} : memref<16x128xf32, #tpu.memory_space<vmem>>, vector<8x64xf32>,
    %c0_94 = arith.constant 0 : index
    %c0_95 = arith.constant 0 : index
    %201 = vector.load %arg23[%c0_94, %c0_95] : memref<16x128xf32, #tpu.memory_space<vmem>>, vector<16x128xf32>
    %202 = arith.truncf %201 : vector<16x128xf32> to vector<16x128xbf16>
    %c0_96 = arith.constant 0 : index
    %c0_97 = arith.constant 0 : index
    %c0_98 = arith.constant 0 : index
    %203 = vector.load %arg10[%c0_96, %c0_97, %c0_98] : memref<1x128x128xbf16, #tpu.memory_space<vmem>>, vector<1x128x128xbf16>
    %204 = vector.shape_cast %203 : vector<1x128x128xbf16> to vector<128x128xbf16>
    %cst_99 = arith.constant dense<0.000000e+00> : vector<16x128xf32>
    %205 = tpu.matmul %202, %204, %cst_99 {dimension_numbers = #tpu.dot_dimension_numbers<[1], [0], [0], [1], [0, 0, 1, 1], [], []>} : vector<16x128xbf16>, vector<128x128xbf16>, vector<16x128xf32> -> vector<16x128xf32>
    %c0_100 = arith.constant 0 : index
    %c0_101 = arith.constant 0 : index
    %c0_102 = arith.constant 0 : index
    %206 = vector.load %arg11[%c0_100, %c0_101, %c0_102] : memref<1x1x128xf32, #tpu.memory_space<vmem>>, vector<1x1x128xf32>
    %207 = vector.shape_cast %206 : vector<1x1x128xf32> to vector<1x128xf32>
    %208 = vector.broadcast %207 : vector<1x128xf32> to vector<16x128xf32>
    %209 = arith.addf %205, %208 : vector<16x128xf32>
    %210 = arith.addf %3, %209 : vector<16x128xf32>
    %c0_103 = arith.constant 0 : index
    %c0_104 = arith.constant 0 : index
    %c0_105 = arith.constant 0 : index
    %211 = vector.load %arg12[%c0_103, %c0_104, %c0_105] : memref<1x1x128xf32, #tpu.memory_space<vmem>>, vector<1x1x128xf32>
    %212 = vector.shape_cast %211 : vector<1x1x128xf32> to vector<1x128xf32>
    %c0_106 = arith.constant 0 : index
    %c0_107 = arith.constant 0 : index
    %c0_108 = arith.constant 0 : index
    %213 = vector.load %arg13[%c0_106, %c0_107, %c0_108] : memref<1x1x128xf32, #tpu.memory_space<vmem>>, vector<1x1x128xf32>
    %214 = vector.shape_cast %213 : vector<1x1x128xf32> to vector<1x128xf32>
    %cst_109 = arith.constant dense<0.000000e+00> : vector<16xf32>
    %215 = vector.multi_reduction <add>, %210, %cst_109 [1] : vector<16x128xf32> to vector<16xf32>
    %216 = vector.shape_cast %215 : vector<16xf32> to vector<16x1xf32>
    %cst_110 = arith.constant 1.280000e+02 : f32
    %217 = vector.broadcast %cst_110 : f32 to vector<16x1xf32>
    %218 = arith.divf %216, %217 : vector<16x1xf32>
    %219 = vector.broadcast %218 : vector<16x1xf32> to vector<16x128xf32>
    %220 = arith.subf %210, %219 : vector<16x128xf32>
    %221 = arith.mulf %220, %220 : vector<16x128xf32>
    %cst_111 = arith.constant dense<0.000000e+00> : vector<16xf32>
    %222 = vector.multi_reduction <add>, %221, %cst_111 [1] : vector<16x128xf32> to vector<16xf32>
    %223 = vector.shape_cast %222 : vector<16xf32> to vector<16x1xf32>
    %cst_112 = arith.constant 1.280000e+02 : f32
    %224 = vector.broadcast %cst_112 : f32 to vector<16x1xf32>
    %225 = arith.divf %223, %224 : vector<16x1xf32>
    %cst_113 = arith.constant 9.99999974E-6 : f32
    %226 = vector.broadcast %cst_113 : f32 to vector<16x1xf32>
    %227 = arith.addf %225, %226 : vector<16x1xf32>
    %228 = math.rsqrt %227 : vector<16x1xf32>
    %229 = vector.broadcast %228 : vector<16x1xf32> to vector<16x128xf32>
    %230 = arith.mulf %220, %229 : vector<16x128xf32>
    %231 = vector.broadcast %212 : vector<1x128xf32> to vector<16x128xf32>
    %232 = arith.mulf %230, %231 : vector<16x128xf32>
    %233 = vector.broadcast %214 : vector<1x128xf32> to vector<16x128xf32>
    %234 = arith.addf %232, %233 : vector<16x128xf32>
    %235 = arith.truncf %234 : vector<16x128xf32> to vector<16x128xbf16>
    %c0_114 = arith.constant 0 : index
    %c0_115 = arith.constant 0 : index
    %c0_116 = arith.constant 0 : index
    %236 = vector.load %arg14[%c0_114, %c0_115, %c0_116] : memref<1x128x512xbf16, #tpu.memory_space<vmem>>, vector<1x128x512xbf16>
    %237 = vector.shape_cast %236 : vector<1x128x512xbf16> to vector<128x512xbf16>
    %cst_117 = arith.constant dense<0.000000e+00> : vector<16x512xf32>
    %238 = tpu.matmul %235, %237, %cst_117 {dimension_numbers = #tpu.dot_dimension_numbers<[1], [0], [0], [1], [0, 0, 1, 1], [], []>} : vector<16x128xbf16>, vector<128x512xbf16>, vector<16x512xf32> -> vector<16x512xf32>
    %c0_118 = arith.constant 0 : index
    %c0_119 = arith.constant 0 : index
    %c0_120 = arith.constant 0 : index
    %239 = vector.load %arg15[%c0_118, %c0_119, %c0_120] : memref<1x1x512xf32, #tpu.memory_space<vmem>>, vector<1x1x512xf32>
    %240 = vector.shape_cast %239 : vector<1x1x512xf32> to vector<1x512xf32>
    %241 = vector.broadcast %240 : vector<1x512xf32> to vector<16x512xf32>
    %242 = arith.addf %238, %241 : vector<16x512xf32>
    %cst_121 = arith.constant 5.000000e-01 : f32
    %243 = vector.broadcast %cst_121 : f32 to vector<16x512xf32>
    %244 = arith.mulf %242, %243 : vector<16x512xf32>
    %cst_122 = arith.constant 0.707106769 : f32
    %245 = vector.broadcast %cst_122 : f32 to vector<16x512xf32>
    %246 = arith.mulf %242, %245 : vector<16x512xf32>
    %cst_123 = arith.constant 0.000000e+00 : f32
    %247 = vector.broadcast %cst_123 : f32 to vector<16x512xf32>
    %248 = arith.cmpf oge, %246, %247 : vector<16x512xf32>
    %cst_124 = arith.constant 1.000000e+00 : f32
    %cst_125 = arith.constant -1.000000e+00 : f32
    %249 = vector.broadcast %cst_124 : f32 to vector<16x512xf32>
    %250 = vector.broadcast %cst_125 : f32 to vector<16x512xf32>
    %251 = arith.select %248, %249, %250 : vector<16x512xi1>, vector<16x512xf32>
    %252 = math.absf %246 : vector<16x512xf32>
    %cst_126 = arith.constant 0.327591091 : f32
    %253 = vector.broadcast %cst_126 : f32 to vector<16x512xf32>
    %254 = arith.mulf %253, %252 : vector<16x512xf32>
    %cst_127 = arith.constant 1.000000e+00 : f32
    %255 = vector.broadcast %cst_127 : f32 to vector<16x512xf32>
    %256 = arith.addf %255, %254 : vector<16x512xf32>
    %cst_128 = arith.constant 1.000000e+00 : f32
    %257 = vector.broadcast %cst_128 : f32 to vector<16x512xf32>
    %258 = arith.divf %257, %256 : vector<16x512xf32>
    %cst_129 = arith.constant 1.06140542 : f32
    %259 = vector.broadcast %cst_129 : f32 to vector<16x512xf32>
    %260 = arith.mulf %259, %258 : vector<16x512xf32>
    %cst_130 = arith.constant -1.45315206 : f32
    %261 = vector.broadcast %cst_130 : f32 to vector<16x512xf32>
    %262 = arith.addf %260, %261 : vector<16x512xf32>
    %263 = arith.mulf %262, %258 : vector<16x512xf32>
    %cst_131 = arith.constant 1.42141378 : f32
    %264 = vector.broadcast %cst_131 : f32 to vector<16x512xf32>
    %265 = arith.addf %263, %264 : vector<16x512xf32>
    %266 = arith.mulf %265, %258 : vector<16x512xf32>
    %cst_132 = arith.constant -0.284496725 : f32
    %267 = vector.broadcast %cst_132 : f32 to vector<16x512xf32>
    %268 = arith.addf %266, %267 : vector<16x512xf32>
    %269 = arith.mulf %268, %258 : vector<16x512xf32>
    %cst_133 = arith.constant 0.254829586 : f32
    %270 = vector.broadcast %cst_133 : f32 to vector<16x512xf32>
    %271 = arith.addf %269, %270 : vector<16x512xf32>
    %272 = arith.mulf %271, %258 : vector<16x512xf32>
    %cst_134 = arith.constant 0.000000e+00 : f32
    %273 = vector.broadcast %cst_134 : f32 to vector<16x512xf32>
    %274 = arith.subf %273, %252 : vector<16x512xf32>
    %275 = arith.mulf %274, %252 : vector<16x512xf32>
    %276 = math.exp %275 : vector<16x512xf32>
    %277 = arith.mulf %272, %276 : vector<16x512xf32>
    %cst_135 = arith.constant 1.000000e+00 : f32
    %278 = vector.broadcast %cst_135 : f32 to vector<16x512xf32>
    %279 = arith.subf %278, %277 : vector<16x512xf32>
    %280 = arith.mulf %251, %279 : vector<16x512xf32>
    %cst_136 = arith.constant 1.000000e+00 : f32
    %281 = vector.broadcast %cst_136 : f32 to vector<16x512xf32>
    %282 = arith.addf %281, %280 : vector<16x512xf32>
    %283 = arith.mulf %244, %282 : vector<16x512xf32>
    %284 = arith.truncf %283 : vector<16x512xf32> to vector<16x512xbf16>
    %c0_137 = arith.constant 0 : index
    %c0_138 = arith.constant 0 : index
    %c0_139 = arith.constant 0 : index
    %285 = vector.load %arg16[%c0_137, %c0_138, %c0_139] : memref<1x512x128xbf16, #tpu.memory_space<vmem>>, vector<1x512x128xbf16>
    %286 = vector.shape_cast %285 : vector<1x512x128xbf16> to vector<512x128xbf16>
    %cst_140 = arith.constant dense<0.000000e+00> : vector<16x128xf32>
    %287 = tpu.matmul %284, %286, %cst_140 {dimension_numbers = #tpu.dot_dimension_numbers<[1], [0], [0], [1], [0, 0, 1, 1], [], []>} : vector<16x512xbf16>, vector<512x128xbf16>, vector<16x128xf32> -> vector<16x128xf32>
    %c0_141 = arith.constant 0 : index
    %c0_142 = arith.constant 0 : index
    %c0_143 = arith.constant 0 : index
    %288 = vector.load %arg17[%c0_141, %c0_142, %c0_143] : memref<1x1x128xf32, #tpu.memory_space<vmem>>, vector<1x1x128xf32>
    %289 = vector.shape_cast %288 : vector<1x1x128xf32> to vector<1x128xf32>
    %290 = vector.broadcast %289 : vector<1x128xf32> to vector<16x128xf32>
    %291 = arith.addf %287, %290 : vector<16x128xf32>
    %292 = arith.addf %210, %291 : vector<16x128xf32>
    %c0_144 = arith.constant 0 : index
    %c0_145 = arith.constant 0 : index
    %293 = vector.load %arg21[%c0_144, %c0_145] : memref<16x128xf32, #tpu.memory_space<vmem>>, vector<16x128xf32>
    tpu.vector_store %arg21[%c0_144, %c0_145], %292 {strides = array<i32>} : memref<16x128xf32, #tpu.memory_space<vmem>>, vector<16x128xf32>,
    %c1_i32 = arith.constant 1 : i32
    %294 = arith.cmpi eq, %arg0, %c1_i32 : i32
    %295 = arith.extui %294 : i1 to i32
    %c0_i32_146 = arith.constant 0 : i32
    %296 = arith.cmpi ne, %295, %c0_i32_146 : i32
    scf.if %296 {
      %c0_147 = arith.constant 0 : index
      %c0_148 = arith.constant 0 : index
      %297 = vector.load %arg18[%c0_147, %c0_148] : memref<1x128xf32, #tpu.memory_space<vmem>>, vector<1x128xf32>
      %c0_149 = arith.constant 0 : index
      %c0_150 = arith.constant 0 : index
      %298 = vector.load %arg19[%c0_149, %c0_150] : memref<1x128xf32, #tpu.memory_space<vmem>>, vector<1x128xf32>
      %cst_151 = arith.constant dense<0.000000e+00> : vector<16xf32>
      %299 = vector.multi_reduction <add>, %292, %cst_151 [1] : vector<16x128xf32> to vector<16xf32>
      %300 = vector.shape_cast %299 : vector<16xf32> to vector<16x1xf32>
      %cst_152 = arith.constant 1.280000e+02 : f32
      %301 = vector.broadcast %cst_152 : f32 to vector<16x1xf32>
      %302 = arith.divf %300, %301 : vector<16x1xf32>
      %303 = vector.broadcast %302 : vector<16x1xf32> to vector<16x128xf32>
      %304 = arith.subf %292, %303 : vector<16x128xf32>
      %305 = arith.mulf %304, %304 : vector<16x128xf32>
      %cst_153 = arith.constant dense<0.000000e+00> : vector<16xf32>
      %306 = vector.multi_reduction <add>, %305, %cst_153 [1] : vector<16x128xf32> to vector<16xf32>
      %307 = vector.shape_cast %306 : vector<16xf32> to vector<16x1xf32>
      %cst_154 = arith.constant 1.280000e+02 : f32
      %308 = vector.broadcast %cst_154 : f32 to vector<16x1xf32>
      %309 = arith.divf %307, %308 : vector<16x1xf32>
      %cst_155 = arith.constant 9.99999974E-6 : f32
      %310 = vector.broadcast %cst_155 : f32 to vector<16x1xf32>
      %311 = arith.addf %309, %310 : vector<16x1xf32>
      %312 = math.rsqrt %311 : vector<16x1xf32>
      %313 = vector.broadcast %312 : vector<16x1xf32> to vector<16x128xf32>
      %314 = arith.mulf %304, %313 : vector<16x128xf32>
      %315 = vector.broadcast %297 : vector<1x128xf32> to vector<16x128xf32>
      %316 = arith.mulf %314, %315 : vector<16x128xf32>
      %317 = vector.broadcast %298 : vector<1x128xf32> to vector<16x128xf32>
      %318 = arith.addf %316, %317 : vector<16x128xf32>
      %c0_156 = arith.constant 0 : index
      %c0_157 = arith.constant 0 : index
      %319 = vector.load %arg20[%c0_156, %c0_157] : memref<16x128xf32, #tpu.memory_space<vmem>>, vector<16x128xf32>
      tpu.vector_store %arg20[%c0_156, %c0_157], %318 {strides = array<i32>} : memref<16x128xf32, #tpu.memory_space<vmem>>, vector<16x128xf32>,
    } else {
    }
    return
  }
  func.func @transform_0(%arg0: i32) -> (i32, i32) {
    %c0_i32 = arith.constant 0 : i32
    %c0_i32_0 = arith.constant 0 : i32
    %c0_i32_1 = arith.constant 0 : i32
    return %c0_i32, %c0_i32_0 : i32, i32
  }
  func.func @transform_1(%arg0: i32) -> (i32, i32) {
    %c0_i32 = arith.constant 0 : i32
    %c0_i32_0 = arith.constant 0 : i32
    %c0_i32_1 = arith.constant 0 : i32
    return %c0_i32, %c0_i32_0 : i32, i32
  }
  func.func @transform_2(%arg0: i32) -> (i32, i32) {
    %c0_i32 = arith.constant 0 : i32
    %c0_i32_0 = arith.constant 0 : i32
    %c0_i32_1 = arith.constant 0 : i32
    return %c0_i32, %c0_i32_0 : i32, i32
  }
  func.func @transform_3(%arg0: i32) -> (i32, i32) {
    %c0_i32 = arith.constant 0 : i32
    %c0_i32_0 = arith.constant 0 : i32
    %c0_i32_1 = arith.constant 0 : i32
    return %c0_i32, %c0_i32_0 : i32, i32
  }
  func.func @transform_4(%arg0: i32) -> (i32, i32, i32) {
    %c0_i32 = arith.constant 0 : i32
    %c0_i32_0 = arith.constant 0 : i32
    %c0_i32_1 = arith.constant 0 : i32
    return %arg0, %c0_i32, %c0_i32_0 : i32, i32, i32
  }
  func.func @transform_5(%arg0: i32) -> (i32, i32, i32) {
    %c0_i32 = arith.constant 0 : i32
    %c0_i32_0 = arith.constant 0 : i32
    %c0_i32_1 = arith.constant 0 : i32
    return %arg0, %c0_i32, %c0_i32_0 : i32, i32, i32
  }
  func.func @transform_6(%arg0: i32) -> (i32, i32, i32) {
    %c0_i32 = arith.constant 0 : i32
    %c0_i32_0 = arith.constant 0 : i32
    %c0_i32_1 = arith.constant 0 : i32
    return %arg0, %c0_i32, %c0_i32_0 : i32, i32, i32
  }
  func.func @transform_7(%arg0: i32) -> (i32, i32, i32) {
    %c0_i32 = arith.constant 0 : i32
    %c0_i32_0 = arith.constant 0 : i32
    %c0_i32_1 = arith.constant 0 : i32
    return %arg0, %c0_i32, %c0_i32_0 : i32, i32, i32
  }
  func.func @transform_8(%arg0: i32) -> (i32, i32, i32) {
    %c0_i32 = arith.constant 0 : i32
    %c0_i32_0 = arith.constant 0 : i32
    %c0_i32_1 = arith.constant 0 : i32
    return %arg0, %c0_i32, %c0_i32_0 : i32, i32, i32
  }
  func.func @transform_9(%arg0: i32) -> (i32, i32, i32) {
    %c0_i32 = arith.constant 0 : i32
    %c0_i32_0 = arith.constant 0 : i32
    %c0_i32_1 = arith.constant 0 : i32
    return %arg0, %c0_i32, %c0_i32_0 : i32, i32, i32
  }
  func.func @transform_10(%arg0: i32) -> (i32, i32, i32) {
    %c0_i32 = arith.constant 0 : i32
    %c0_i32_0 = arith.constant 0 : i32
    %c0_i32_1 = arith.constant 0 : i32
    return %arg0, %c0_i32, %c0_i32_0 : i32, i32, i32
  }
  func.func @transform_11(%arg0: i32) -> (i32, i32, i32) {
    %c0_i32 = arith.constant 0 : i32
    %c0_i32_0 = arith.constant 0 : i32
    %c0_i32_1 = arith.constant 0 : i32
    return %arg0, %c0_i32, %c0_i32_0 : i32, i32, i32
  }
  func.func @transform_12(%arg0: i32) -> (i32, i32, i32) {
    %c0_i32 = arith.constant 0 : i32
    %c0_i32_0 = arith.constant 0 : i32
    %c0_i32_1 = arith.constant 0 : i32
    return %arg0, %c0_i32, %c0_i32_0 : i32, i32, i32
  }
  func.func @transform_13(%arg0: i32) -> (i32, i32, i32) {
    %c0_i32 = arith.constant 0 : i32
    %c0_i32_0 = arith.constant 0 : i32
    %c0_i32_1 = arith.constant 0 : i32
    return %arg0, %c0_i32, %c0_i32_0 : i32, i32, i32
  }
  func.func @transform_14(%arg0: i32) -> (i32, i32, i32) {
    %c0_i32 = arith.constant 0 : i32
    %c0_i32_0 = arith.constant 0 : i32
    %c0_i32_1 = arith.constant 0 : i32
    return %arg0, %c0_i32, %c0_i32_0 : i32, i32, i32
  }
  func.func @transform_15(%arg0: i32) -> (i32, i32, i32) {
    %c0_i32 = arith.constant 0 : i32
    %c0_i32_0 = arith.constant 0 : i32
    %c0_i32_1 = arith.constant 0 : i32
    return %arg0, %c0_i32, %c0_i32_0 : i32, i32, i32
  }
  func.func @transform_16(%arg0: i32) -> (i32, i32, i32) {
    %c0_i32 = arith.constant 0 : i32
    %c0_i32_0 = arith.constant 0 : i32
    %c0_i32_1 = arith.constant 0 : i32
    return %arg0, %c0_i32, %c0_i32_0 : i32, i32, i32
  }
  func.func @transform_17(%arg0: i32) -> (i32, i32) {
    %c0_i32 = arith.constant 0 : i32
    %c0_i32_0 = arith.constant 0 : i32
    %c0_i32_1 = arith.constant 0 : i32
    return %c0_i32, %c0_i32_0 : i32, i32
  }
  func.func @transform_18(%arg0: i32) -> (i32, i32) {
    %c0_i32 = arith.constant 0 : i32
    %c0_i32_0 = arith.constant 0 : i32
    %c0_i32_1 = arith.constant 0 : i32
    return %c0_i32, %c0_i32_0 : i32, i32
  }
  func.func @transform_19(%arg0: i32) -> (i32, i32) {
    %c0_i32 = arith.constant 0 : i32
    %c0_i32_0 = arith.constant 0 : i32
    %c0_i32_1 = arith.constant 0 : i32
    return %c0_i32, %c0_i32_0 : i32, i32
  }
}

</mosaic_0001>

<llo_original>
// kernel: tpu_custom_call.1
$region0: #{tpu_custom_call.1}
  #allocation0 [shape = 'u32[]', space=smem, size = 0x4, offset = 0x4, fixed_abs, tag = 'smem constant byte address 0x4 - core index']
  #allocation1 [shape = 'u32[72,128]{1,0:T(1,128)}', space=vmem, size = 0x9000, scoped, tag = 'internal scratch']
  #allocation2 [shape = 'f32[16,128]{1,0:T(8,128)}', space=vmem, size = 0x2000, scoped, tag = 'scratch operand']
  #allocation3 [shape = 'f32[16,384]{1,0:T(8,128)}', space=vmem, size = 0x6000, scoped, tag = 'scratch operand']
  #allocation4 [shape = 'f32[16,128]{1,0:T(8,128)}', space=vmem, size = 0x2000, scoped, tag = 'scratch operand']
  %s0 = inlined_call_operand.hbm [shape: f32[16,32], index: 0, kind: input, shape index: {}]
  %s1 = inlined_call_operand.hbm [shape: f32[16,128], index: 1, kind: input, shape index: {}]
  %s2 = inlined_call_operand.hbm [shape: bf16[32,128], index: 2, kind: input, shape index: {}]
  %s3 = inlined_call_operand.hbm [shape: f32[1,128], index: 3, kind: input, shape index: {}]
  %s4 = inlined_call_operand.vmem [shape: f32[2,1,128], index: 4, kind: input, shape index: {}]
  %s5 = inlined_call_operand.vmem [shape: f32[2,1,128], index: 5, kind: input, shape index: {}]
  %s6 = inlined_call_operand.hbm [shape: f32[2,1,64], index: 6, kind: input, shape index: {}]
  %s7 = inlined_call_operand.hbm [shape: f32[2,1,64], index: 7, kind: input, shape index: {}]
  %s8 = inlined_call_operand.hbm [shape: bf16[2,128,384], index: 8, kind: input, shape index: {}]
  %s9 = inlined_call_operand.hbm [shape: bf16[2,128,128], index: 9, kind: input, shape index: {}]
  %s10 = inlined_call_operand.hbm [shape: f32[2,1,128], index: 10, kind: input, shape index: {}]
  %s11 = inlined_call_operand.hbm [shape: f32[2,1,128], index: 11, kind: input, shape index: {}]
  %s12 = inlined_call_operand.hbm [shape: f32[2,1,128], index: 12, kind: input, shape index: {}]
  %s13 = inlined_call_operand.hbm [shape: bf16[2,128,512], index: 13, kind: input, shape index: {}]
  %s14 = inlined_call_operand.vmem [shape: f32[2,1,512], index: 14, kind: input, shape index: {}]
  %s15 = inlined_call_operand.hbm [shape: bf16[2,512,128], index: 15, kind: input, shape index: {}]
  %s16 = inlined_call_operand.vmem [shape: f32[2,1,128], index: 16, kind: input, shape index: {}]
  %s17 = inlined_call_operand.vmem [shape: f32[1,128], index: 17, kind: input, shape index: {}]
  %s18 = inlined_call_operand.vmem [shape: f32[1,128], index: 18, kind: input, shape index: {}]
  %s19 = inlined_call_operand.hbm [shape: f32[16,128], index: 19, kind: output, shape index: {}]
  %s20 = sld [smem:[#allocation0]]
  $region169: #{tpu_custom_call.1} parent=0
    _
  %s22 = ssub.s32 1, %s20
  %s23 = scalar_select 0, %s22, %s20
  $region1: #{tpu_custom_call.1} parent=0
    #allocation5 [shape = 'u8[8192]{0}', space=vmem, size = 0x2000, scoped, tag = 'input window, operand 0, single buffered']
    #allocation6 [shape = 's32[2]{0}', space=sflag, size = 0x8, scoped, tag = 'scoped memory for tpu_custom_call.1']
    #allocation7 [shape = 's32[2]{0}', space=sflag, size = 0x8, scoped, tag = 'scoped memory for tpu_custom_call.1']
    #allocation8 [shape = 'u8[8192]{0}', space=vmem, size = 0x2000, scoped, tag = 'input window, operand 1, single buffered']
    #allocation9 [shape = 's32[1]{0}', space=sflag, size = 0x4, scoped, tag = 'scoped memory for tpu_custom_call.1']
    #allocation10 [shape = 'u8[8192]{0}', space=vmem, size = 0x2000, scoped, tag = 'input window, operand 2, single buffered']
    #allocation11 [shape = 'u8[512]{0}', space=vmem, size = 0x400, scoped, tag = 'input window, operand 3, single buffered']
    #allocation12 [shape = 's32[1]{0}', space=sflag, size = 0x4, scoped, tag = 'scoped memory for tpu_custom_call.1']
    #allocation13 [shape = 'u8[1024]{0}', space=vmem, size = 0x400, scoped, tag = 'input window, operand 6']
    #allocation14 [shape = 'u8[1024]{0}', space=vmem, size = 0x400, scoped, tag = 'input window, operand 7']
    #allocation15 [shape = 'u8[196608]{0}', space=vmem, size = 0x30000, scoped, tag = 'input window, operand 8']
    #allocation16 [shape = 'u8[65536]{0}', space=vmem, size = 0x10000, scoped, tag = 'input window, operand 9']
    #allocation17 [shape = 'u8[1024]{0}', space=vmem, size = 0x400, scoped, tag = 'input window, operand 10']
    #allocation18 [shape = 'u8[1024]{0}', space=vmem, size = 0x400, scoped, tag = 'input window, operand 11']
    #allocation19 [shape = 'u8[1024]{0}', space=vmem, size = 0x400, scoped, tag = 'input window, operand 12']
    #allocation20 [shape = 'u8[262144]{0}', space=vmem, size = 0x40000, scoped, tag = 'input window, operand 13']
    #allocation21 [shape = 'u8[262144]{0}', space=vmem, size = 0x40000, scoped, tag = 'input window, operand 15']
    #allocation22 [shape = 'u8[8192]{0}', space=vmem, size = 0x2000, scoped, tag = 'output window, operand 0, single buffered']
    %24 = vsyncpa [#allocation6], 0
    %25 = vsyncpa [#allocation9], 0
    %26 = vsyncpa [#allocation12], 0
    %27 = vsyncpa [#allocation7], 0
    loop: start=0, step=1, limit=4
    $region2: #{tpu_custom_call.1} parent=1 // loop_pre_header
      _
    $region3: #{tpu_custom_call.1} parent=1 // loop_header
      %s29 = sphi 0, %s33
      %p30 = scmp.ge.s32.totalorder %s29, 4
      %s37 = sphi 0, %s37
      %s39 = sphi 0, %s37
      %s40 = sphi 0, %s39
      %s54 = sphi 0, %s40
      %s58 = sphi 0, %s58
      %s60 = sphi 0, %s58
      %s61 = sphi 0, %s60
      %s75 = sphi 0, %s61
      %s79 = sphi 0, %s79
      %s81 = sphi 0, %s79
      %s82 = sphi 0, %s81
      %s96 = sphi 0, %s82
      %s100 = sphi 0, %s100
      %s102 = sphi 0, %s100
      %s103 = sphi 0, %s102
      %s117 = sphi 0, %s103
      %s123 = sphi 0, %s125
      %s126 = sphi 0, %s123
      %s127 = sphi 0, %s126
      %s143 = sphi 0, %s127
      %s149 = sphi 0, %s151
      %s152 = sphi 0, %s149
      %s153 = sphi 0, %s152
      %s169 = sphi 0, %s153
      %s175 = sphi 0, %s177
      %s178 = sphi 0, %s175
      %s179 = sphi 0, %s178
      %s195 = sphi 0, %s179
      %s201 = sphi 0, %s203
      %s204 = sphi 0, %s201
      %s205 = sphi 0, %s204
      %s221 = sphi 0, %s205
      %s227 = sphi 0, %s229
      %s230 = sphi 0, %s227
      %s231 = sphi 0, %s230
      %s247 = sphi 0, %s231
      %s253 = sphi 0, %s255
      %s256 = sphi 0, %s253
      %s257 = sphi 0, %s256
      %s273 = sphi 0, %s257
      %s279 = sphi 0, %s281
      %s282 = sphi 0, %s279
      %s283 = sphi 0, %s282
      %s299 = sphi 0, %s283
      %s305 = sphi 0, %s307
      %s308 = sphi 0, %s305
      %s309 = sphi 0, %s308
      %s325 = sphi 0, %s309
      %s331 = sphi 0, %s333
      %s334 = sphi 0, %s331
      %s335 = sphi 0, %s334
      %s351 = sphi 0, %s335
      %s357 = sphi 0, %s359
      %s360 = sphi 0, %s357
      %s361 = sphi 0, %s360
      %s377 = sphi 0, %s361
      %s383 = sphi 0, %s385
      %s386 = sphi 0, %s383
      %s387 = sphi 0, %s386
      %s403 = sphi 0, %s387
      %s409 = sphi 0, %s411
      %s412 = sphi 0, %s409
      %s413 = sphi 0, %s412
      %s429 = sphi 0, %s413
      %s435 = sphi 0, %s437
      %s438 = sphi 0, %s435
      %s439 = sphi 0, %s438
      %s455 = sphi 0, %s439
      %s459 = sphi 0, %s459
      %s461 = sphi 0, %s459
      %s462 = sphi 0, %s461
      %s476 = sphi 0, %s462
      %s480 = sphi 0, %s480
      %s482 = sphi 0, %s480
      %s483 = sphi 0, %s482
      %s497 = sphi 0, %s483
      %s501 = sphi 0, %s501
      %s503 = sphi 0, %s501
      %s504 = sphi 0, %s503
      %s518 = sphi 0, %s504
    $region4: #{tpu_custom_call.1} parent=1 // loop_header_branch
      %32 = sbr.rel (%p30) target = $region8
    $region5: #{tpu_custom_call.1} parent=1 // loop_body
      %s34 = ssub.s32 %s29, 1
      %s35 = ssub.s32 %s29, 2
      %s36 = sadd.s32 %s29, 1
      %s38 = sadd.s32 %s37, 1
      %p41 = scmp.eq.s32.totalorder %s29, 1
      %p42 = scmp.ne.s32.totalorder %s37, %s39
      %p43 = scmp.eq.s32.totalorder %s29, 0
      %p44 = por %p42, %p43
      %p45 = scmp.ne.s32.totalorder %s37, %s39
      %p46 = scmp.eq.s32.totalorder %s34, 1
      %p47 = por %p45, %p46
      %p48 = scmp.ne.s32.totalorder %s39, %s40
      %p49 = scmp.eq.s32.totalorder %s34, 0
      %p50 = por %p48, %p49
      %p51 = scmp.ne.s32.totalorder %s39, %s40
      %p52 = scmp.eq.s32.totalorder %s35, 1
      %p53 = por %p51, %p52
      %p55 = scmp.ne.s32.totalorder %s40, %s54
      %p56 = scmp.eq.s32.totalorder %s35, 0
      %p57 = por %p55, %p56
      %s59 = sadd.s32 %s58, 1
      %p62 = scmp.eq.s32.totalorder %s29, 1
      %p63 = scmp.ne.s32.totalorder %s58, %s60
      %p64 = scmp.eq.s32.totalorder %s29, 0
      %p65 = por %p63, %p64
      %p66 = scmp.ne.s32.totalorder %s58, %s60
      %p67 = scmp.eq.s32.totalorder %s34, 1
      %p68 = por %p66, %p67
      %p69 = scmp.ne.s32.totalorder %s60, %s61
      %p70 = scmp.eq.s32.totalorder %s34, 0
      %p71 = por %p69, %p70
      %p72 = scmp.ne.s32.totalorder %s60, %s61
      %p73 = scmp.eq.s32.totalorder %s35, 1
      %p74 = por %p72, %p73
      %p76 = scmp.ne.s32.totalorder %s61, %s75
      %p77 = scmp.eq.s32.totalorder %s35, 0
      %p78 = por %p76, %p77
      %s80 = sadd.s32 %s79, 1
      %p83 = scmp.eq.s32.totalorder %s29, 1
      %p84 = scmp.ne.s32.totalorder %s79, %s81
      %p85 = scmp.eq.s32.totalorder %s29, 0
      %p86 = por %p84, %p85
      %p87 = scmp.ne.s32.totalorder %s79, %s81
      %p88 = scmp.eq.s32.totalorder %s34, 1
      %p89 = por %p87, %p88
      %p90 = scmp.ne.s32.totalorder %s81, %s82
      %p91 = scmp.eq.s32.totalorder %s34, 0
      %p92 = por %p90, %p91
      %p93 = scmp.ne.s32.totalorder %s81, %s82
      %p94 = scmp.eq.s32.totalorder %s35, 1
      %p95 = por %p93, %p94
      %p97 = scmp.ne.s32.totalorder %s82, %s96
      %p98 = scmp.eq.s32.totalorder %s35, 0
      %p99 = por %p97, %p98
      %s101 = sadd.s32 %s100, 1
      %p104 = scmp.eq.s32.totalorder %s29, 1
      %p105 = scmp.ne.s32.totalorder %s100, %s102
      %p106 = scmp.eq.s32.totalorder %s29, 0
      %p107 = por %p105, %p106
      %p108 = scmp.ne.s32.totalorder %s100, %s102
      %p109 = scmp.eq.s32.totalorder %s34, 1
      %p110 = por %p108, %p109
      %p111 = scmp.ne.s32.totalorder %s102, %s103
      %p112 = scmp.eq.s32.totalorder %s34, 0
      %p113 = por %p111, %p112
      %p114 = scmp.ne.s32.totalorder %s102, %s103
      %p115 = scmp.eq.s32.totalorder %s35, 1
      %p116 = por %p114, %p115
      %p118 = scmp.ne.s32.totalorder %s103, %s117
      %p119 = scmp.eq.s32.totalorder %s35, 0
      %p120 = por %p118, %p119
      %s121 = ssub.s32 %s29, %s36
      %p122 = scmp.eq.s32.totalorder %s121, 0
      %s124 = sadd.s32 %s123, 1
      %s125 = scalar_select %p122, %s123, %s124
      %p128 = pneg %p122
      %p129 = scmp.eq.s32.totalorder %s29, 1
      %p130 = por %p128, %p129
      %p131 = scmp.ne.s32.totalorder %s123, %s126
      %p132 = scmp.eq.s32.totalorder %s29, 0
      %p133 = por %p131, %p132
      %p134 = scmp.ne.s32.totalorder %s123, %s126
      %p135 = scmp.eq.s32.totalorder %s34, 1
      %p136 = por %p134, %p135
      %p137 = scmp.ne.s32.totalorder %s126, %s127
      %p138 = scmp.eq.s32.totalorder %s34, 0
      %p139 = por %p137, %p138
      %p140 = scmp.ne.s32.totalorder %s126, %s127
      %p141 = scmp.eq.s32.totalorder %s35, 1
      %p142 = por %p140, %p141
      %p144 = scmp.ne.s32.totalorder %s127, %s143
      %p145 = scmp.eq.s32.totalorder %s35, 0
      %p146 = por %p144, %p145
      %s147 = ssub.s32 %s29, %s36
      %p148 = scmp.eq.s32.totalorder %s147, 0
      %s150 = sadd.s32 %s149, 1
      %s151 = scalar_select %p148, %s149, %s150
      %p154 = pneg %p148
      %p155 = scmp.eq.s32.totalorder %s29, 1
      %p156 = por %p154, %p155
      %p157 = scmp.ne.s32.totalorder %s149, %s152
      %p158 = scmp.eq.s32.totalorder %s29, 0
      %p159 = por %p157, %p158
      %p160 = scmp.ne.s32.totalorder %s149, %s152
      %p161 = scmp.eq.s32.totalorder %s34, 1
      %p162 = por %p160, %p161
      %p163 = scmp.ne.s32.totalorder %s152, %s153
      %p164 = scmp.eq.s32.totalorder %s34, 0
      %p165 = por %p163, %p164
      %p166 = scmp.ne.s32.totalorder %s152, %s153
      %p167 = scmp.eq.s32.totalorder %s35, 1
      %p168 = por %p166, %p167
      %p170 = scmp.ne.s32.totalorder %s153, %s169
      %p171 = scmp.eq.s32.totalorder %s35, 0
      %p172 = por %p170, %p171
      %s173 = ssub.s32 %s29, %s36
      %p174 = scmp.eq.s32.totalorder %s173, 0
      %s176 = sadd.s32 %s175, 1
      %s177 = scalar_select %p174, %s175, %s176
      %p180 = pneg %p174
      %p181 = scmp.eq.s32.totalorder %s29, 1
      %p182 = por %p180, %p181
      %p183 = scmp.ne.s32.totalorder %s175, %s178
      %p184 = scmp.eq.s32.totalorder %s29, 0
      %p185 = por %p183, %p184
      %p186 = scmp.ne.s32.totalorder %s175, %s178
      %p187 = scmp.eq.s32.totalorder %s34, 1
      %p188 = por %p186, %p187
      %p189 = scmp.ne.s32.totalorder %s178, %s179
      %p190 = scmp.eq.s32.totalorder %s34, 0
      %p191 = por %p189, %p190
      %p192 = scmp.ne.s32.totalorder %s178, %s179
      %p193 = scmp.eq.s32.totalorder %s35, 1
      %p194 = por %p192, %p193
      %p196 = scmp.ne.s32.totalorder %s179, %s195
      %p197 = scmp.eq.s32.totalorder %s35, 0
      %p198 = por %p196, %p197
      %s199 = ssub.s32 %s29, %s36
      %p200 = scmp.eq.s32.totalorder %s199, 0
      %s202 = sadd.s32 %s201, 1
      %s203 = scalar_select %p200, %s201, %s202
      %p206 = pneg %p200
      %p207 = scmp.eq.s32.totalorder %s29, 1
      %p208 = por %p206, %p207
      %p209 = scmp.ne.s32.totalorder %s201, %s204
      %p210 = scmp.eq.s32.totalorder %s29, 0
      %p211 = por %p209, %p210
      %p212 = scmp.ne.s32.totalorder %s201, %s204
      %p213 = scmp.eq.s32.totalorder %s34, 1
      %p214 = por %p212, %p213
      %p215 = scmp.ne.s32.totalorder %s204, %s205
      %p216 = scmp.eq.s32.totalorder %s34, 0
      %p217 = por %p215, %p216
      %p218 = scmp.ne.s32.totalorder %s204, %s205
      %p219 = scmp.eq.s32.totalorder %s35, 1
      %p220 = por %p218, %p219
      %p222 = scmp.ne.s32.totalorder %s205, %s221
      %p223 = scmp.eq.s32.totalorder %s35, 0
      %p224 = por %p222, %p223
      %s225 = ssub.s32 %s29, %s36
      %p226 = scmp.eq.s32.totalorder %s225, 0
      %s228 = sadd.s32 %s227, 1
      %s229 = scalar_select %p226, %s227, %s228
      %p232 = pneg %p226
      %p233 = scmp.eq.s32.totalorder %s29, 1
      %p234 = por %p232, %p233
      %p235 = scmp.ne.s32.totalorder %s227, %s230
      %p236 = scmp.eq.s32.totalorder %s29, 0
      %p237 = por %p235, %p236
      %p238 = scmp.ne.s32.totalorder %s227, %s230
      %p239 = scmp.eq.s32.totalorder %s34, 1
      %p240 = por %p238, %p239
      %p241 = scmp.ne.s32.totalorder %s230, %s231
      %p242 = scmp.eq.s32.totalorder %s34, 0
      %p243 = por %p241, %p242
      %p244 = scmp.ne.s32.totalorder %s230, %s231
      %p245 = scmp.eq.s32.totalorder %s35, 1
      %p246 = por %p244, %p245
      %p248 = scmp.ne.s32.totalorder %s231, %s247
      %p249 = scmp.eq.s32.totalorder %s35, 0
      %p250 = por %p248, %p249
      %s251 = ssub.s32 %s29, %s36
      %p252 = scmp.eq.s32.totalorder %s251, 0
      %s254 = sadd.s32 %s253, 1
      %s255 = scalar_select %p252, %s253, %s254
      %p258 = pneg %p252
      %p259 = scmp.eq.s32.totalorder %s29, 1
      %p260 = por %p258, %p259
      %p261 = scmp.ne.s32.totalorder %s253, %s256
      %p262 = scmp.eq.s32.totalorder %s29, 0
      %p263 = por %p261, %p262
      %p264 = scmp.ne.s32.totalorder %s253, %s256
      %p265 = scmp.eq.s32.totalorder %s34, 1
      %p266 = por %p264, %p265
      %p267 = scmp.ne.s32.totalorder %s256, %s257
      %p268 = scmp.eq.s32.totalorder %s34, 0
      %p269 = por %p267, %p268
      %p270 = scmp.ne.s32.totalorder %s256, %s257
      %p271 = scmp.eq.s32.totalorder %s35, 1
      %p272 = por %p270, %p271
      %p274 = scmp.ne.s32.totalorder %s257, %s273
      %p275 = scmp.eq.s32.totalorder %s35, 0
      %p276 = por %p274, %p275
      %s277 = ssub.s32 %s29, %s36
      %p278 = scmp.eq.s32.totalorder %s277, 0
      %s280 = sadd.s32 %s279, 1
      %s281 = scalar_select %p278, %s279, %s280
      %p284 = pneg %p278
      %p285 = scmp.eq.s32.totalorder %s29, 1
      %p286 = por %p284, %p285
      %p287 = scmp.ne.s32.totalorder %s279, %s282
      %p288 = scmp.eq.s32.totalorder %s29, 0
      %p289 = por %p287, %p288
      %p290 = scmp.ne.s32.totalorder %s279, %s282
      %p291 = scmp.eq.s32.totalorder %s34, 1
      %p292 = por %p290, %p291
      %p293 = scmp.ne.s32.totalorder %s282, %s283
      %p294 = scmp.eq.s32.totalorder %s34, 0
      %p295 = por %p293, %p294
      %p296 = scmp.ne.s32.totalorder %s282, %s283
      %p297 = scmp.eq.s32.totalorder %s35, 1
      %p298 = por %p296, %p297
      %p300 = scmp.ne.s32.totalorder %s283, %s299
      %p301 = scmp.eq.s32.totalorder %s35, 0
      %p302 = por %p300, %p301
      %s303 = ssub.s32 %s29, %s36
      %p304 = scmp.eq.s32.totalorder %s303, 0
      %s306 = sadd.s32 %s305, 1
      %s307 = scalar_select %p304, %s305, %s306
      %p310 = pneg %p304
      %p311 = scmp.eq.s32.totalorder %s29, 1
      %p312 = por %p310, %p311
      %p313 = scmp.ne.s32.totalorder %s305, %s308
      %p314 = scmp.eq.s32.totalorder %s29, 0
      %p315 = por %p313, %p314
      %p316 = scmp.ne.s32.totalorder %s305, %s308
      %p317 = scmp.eq.s32.totalorder %s34, 1
      %p318 = por %p316, %p317
      %p319 = scmp.ne.s32.totalorder %s308, %s309
      %p320 = scmp.eq.s32.totalorder %s34, 0
      %p321 = por %p319, %p320
      %p322 = scmp.ne.s32.totalorder %s308, %s309
      %p323 = scmp.eq.s32.totalorder %s35, 1
      %p324 = por %p322, %p323
      %p326 = scmp.ne.s32.totalorder %s309, %s325
      %p327 = scmp.eq.s32.totalorder %s35, 0
      %p328 = por %p326, %p327
      %s329 = ssub.s32 %s29, %s36
      %p330 = scmp.eq.s32.totalorder %s329, 0
      %s332 = sadd.s32 %s331, 1
      %s333 = scalar_select %p330, %s331, %s332
      %p336 = pneg %p330
      %p337 = scmp.eq.s32.totalorder %s29, 1
      %p338 = por %p336, %p337
      %p339 = scmp.ne.s32.totalorder %s331, %s334
      %p340 = scmp.eq.s32.totalorder %s29, 0
      %p341 = por %p339, %p340
      %p342 = scmp.ne.s32.totalorder %s331, %s334
      %p343 = scmp.eq.s32.totalorder %s34, 1
      %p344 = por %p342, %p343
      %p345 = scmp.ne.s32.totalorder %s334, %s335
      %p346 = scmp.eq.s32.totalorder %s34, 0
      %p347 = por %p345, %p346
      %p348 = scmp.ne.s32.totalorder %s334, %s335
      %p349 = scmp.eq.s32.totalorder %s35, 1
      %p350 = por %p348, %p349
      %p352 = scmp.ne.s32.totalorder %s335, %s351
      %p353 = scmp.eq.s32.totalorder %s35, 0
      %p354 = por %p352, %p353
      %s355 = ssub.s32 %s29, %s36
      %p356 = scmp.eq.s32.totalorder %s355, 0
      %s358 = sadd.s32 %s357, 1
      %s359 = scalar_select %p356, %s357, %s358
      %p362 = pneg %p356
      %p363 = scmp.eq.s32.totalorder %s29, 1
      %p364 = por %p362, %p363
      %p365 = scmp.ne.s32.totalorder %s357, %s360
      %p366 = scmp.eq.s32.totalorder %s29, 0
      %p367 = por %p365, %p366
      %p368 = scmp.ne.s32.totalorder %s357, %s360
      %p369 = scmp.eq.s32.totalorder %s34, 1
      %p370 = por %p368, %p369
      %p371 = scmp.ne.s32.totalorder %s360, %s361
      %p372 = scmp.eq.s32.totalorder %s34, 0
      %p373 = por %p371, %p372
      %p374 = scmp.ne.s32.totalorder %s360, %s361
      %p375 = scmp.eq.s32.totalorder %s35, 1
      %p376 = por %p374, %p375
      %p378 = scmp.ne.s32.totalorder %s361, %s377
      %p379 = scmp.eq.s32.totalorder %s35, 0
      %p380 = por %p378, %p379
      %s381 = ssub.s32 %s29, %s36
      %p382 = scmp.eq.s32.totalorder %s381, 0
      %s384 = sadd.s32 %s383, 1
      %s385 = scalar_select %p382, %s383, %s384
      %p388 = pneg %p382
      %p389 = scmp.eq.s32.totalorder %s29, 1
      %p390 = por %p388, %p389
      %p391 = scmp.ne.s32.totalorder %s383, %s386
      %p392 = scmp.eq.s32.totalorder %s29, 0
      %p393 = por %p391, %p392
      %p394 = scmp.ne.s32.totalorder %s383, %s386
      %p395 = scmp.eq.s32.totalorder %s34, 1
      %p396 = por %p394, %p395
      %p397 = scmp.ne.s32.totalorder %s386, %s387
      %p398 = scmp.eq.s32.totalorder %s34, 0
      %p399 = por %p397, %p398
      %p400 = scmp.ne.s32.totalorder %s386, %s387
      %p401 = scmp.eq.s32.totalorder %s35, 1
      %p402 = por %p400, %p401
      %p404 = scmp.ne.s32.totalorder %s387, %s403
      %p405 = scmp.eq.s32.totalorder %s35, 0
      %p406 = por %p404, %p405
      %s407 = ssub.s32 %s29, %s36
      %p408 = scmp.eq.s32.totalorder %s407, 0
      %s410 = sadd.s32 %s409, 1
      %s411 = scalar_select %p408, %s409, %s410
      %p414 = pneg %p408
      %p415 = scmp.eq.s32.totalorder %s29, 1
      %p416 = por %p414, %p415
      %p417 = scmp.ne.s32.totalorder %s409, %s412
      %p418 = scmp.eq.s32.totalorder %s29, 0
      %p419 = por %p417, %p418
      %p420 = scmp.ne.s32.totalorder %s409, %s412
      %p421 = scmp.eq.s32.totalorder %s34, 1
      %p422 = por %p420, %p421
      %p423 = scmp.ne.s32.totalorder %s412, %s413
      %p424 = scmp.eq.s32.totalorder %s34, 0
      %p425 = por %p423, %p424
      %p426 = scmp.ne.s32.totalorder %s412, %s413
      %p427 = scmp.eq.s32.totalorder %s35, 1
      %p428 = por %p426, %p427
      %p430 = scmp.ne.s32.totalorder %s413, %s429
      %p431 = scmp.eq.s32.totalorder %s35, 0
      %p432 = por %p430, %p431
      %s433 = ssub.s32 %s29, %s36
      %p434 = scmp.eq.s32.totalorder %s433, 0
      %s436 = sadd.s32 %s435, 1
      %s437 = scalar_select %p434, %s435, %s436
      %p440 = pneg %p434
      %p441 = scmp.eq.s32.totalorder %s29, 1
      %p442 = por %p440, %p441
      %p443 = scmp.ne.s32.totalorder %s435, %s438
      %p444 = scmp.eq.s32.totalorder %s29, 0
      %p445 = por %p443, %p444
      %p446 = scmp.ne.s32.totalorder %s435, %s438
      %p447 = scmp.eq.s32.totalorder %s34, 1
      %p448 = por %p446, %p447
      %p449 = scmp.ne.s32.totalorder %s438, %s439
      %p450 = scmp.eq.s32.totalorder %s34, 0
      %p451 = por %p449, %p450
      %p452 = scmp.ne.s32.totalorder %s438, %s439
      %p453 = scmp.eq.s32.totalorder %s35, 1
      %p454 = por %p452, %p453
      %p456 = scmp.ne.s32.totalorder %s439, %s455
      %p457 = scmp.eq.s32.totalorder %s35, 0
      %p458 = por %p456, %p457
      %s460 = sadd.s32 %s459, 1
      %p463 = scmp.eq.s32.totalorder %s29, 1
      %p464 = scmp.ne.s32.totalorder %s459, %s461
      %p465 = scmp.eq.s32.totalorder %s29, 0
      %p466 = por %p464, %p465
      %p467 = scmp.ne.s32.totalorder %s459, %s461
      %p468 = scmp.eq.s32.totalorder %s34, 1
      %p469 = por %p467, %p468
      %p470 = scmp.ne.s32.totalorder %s461, %s462
      %p471 = scmp.eq.s32.totalorder %s34, 0
      %p472 = por %p470, %p471
      %p473 = scmp.ne.s32.totalorder %s461, %s462
      %p474 = scmp.eq.s32.totalorder %s35, 1
      %p475 = por %p473, %p474
      %p477 = scmp.ne.s32.totalorder %s462, %s476
      %p478 = scmp.eq.s32.totalorder %s35, 0
      %p479 = por %p477, %p478
      %s481 = sadd.s32 %s480, 1
      %p484 = scmp.eq.s32.totalorder %s29, 1
      %p485 = scmp.ne.s32.totalorder %s480, %s482
      %p486 = scmp.eq.s32.totalorder %s29, 0
      %p487 = por %p485, %p486
      %p488 = scmp.ne.s32.totalorder %s480, %s482
      %p489 = scmp.eq.s32.totalorder %s34, 1
      %p490 = por %p488, %p489
      %p491 = scmp.ne.s32.totalorder %s482, %s483
      %p492 = scmp.eq.s32.totalorder %s34, 0
      %p493 = por %p491, %p492
      %p494 = scmp.ne.s32.totalorder %s482, %s483
      %p495 = scmp.eq.s32.totalorder %s35, 1
      %p496 = por %p494, %p495
      %p498 = scmp.ne.s32.totalorder %s483, %s497
      %p499 = scmp.eq.s32.totalorder %s35, 0
      %p500 = por %p498, %p499
      %s502 = sadd.s32 %s501, 1
      %p505 = scmp.eq.s32.totalorder %s29, 1
      %p506 = scmp.ne.s32.totalorder %s501, %s503
      %p507 = scmp.eq.s32.totalorder %s29, 0
      %p508 = por %p506, %p507
      %p509 = scmp.ne.s32.totalorder %s501, %s503
      %p510 = scmp.eq.s32.totalorder %s34, 1
      %p511 = por %p509, %p510
      %p512 = scmp.ne.s32.totalorder %s503, %s504
      %p513 = scmp.eq.s32.totalorder %s34, 0
      %p514 = por %p512, %p513
      %p515 = scmp.ne.s32.totalorder %s503, %s504
      %p516 = scmp.eq.s32.totalorder %s35, 1
      %p517 = por %p515, %p516
      %p519 = scmp.ne.s32.totalorder %s504, %s518
      %p520 = scmp.eq.s32.totalorder %s35, 0
      %p521 = por %p519, %p520
      %p522 = scmp.le.s32.totalorder 1, %s29
      %p523 = scmp.lt.s32.totalorder %s29, 3
      %p524 = pnand %p522, %p523
      %p525 = pneg %p524
      // Predicated region
      $region9: #{tpu_custom_call.1} parent=5 // pred_check
        _
      $region10: #{tpu_custom_call.1} parent=5 // pred_check_branch
        %527 = sbr.rel (%p524) target = $region12
      $region11: #{tpu_custom_call.1} parent=5 // pred_region
        %s528 = ssub.s32 %s29, 1
        // Predicated region
        $region13: #{tpu_custom_call.1} parent=11 // pred_check
          %p529 = pneg %p50
        $region14: #{tpu_custom_call.1} parent=11 // pred_check_branch
          %531 = sbr.rel (%p529) target = $region16
        $region15: #{tpu_custom_call.1} parent=11 // pred_region
          %533 = vsyncadd [#allocation6], 0
          %s534 = sshll.u32 %s0, 4
          %s535 = int_to_ptr.hbm [resolvable:$true] %s534
          %s536 = sshll.u32 [#allocation5], 4
          %s537 = int_to_ptr.vmem [resolvable:$true] %s536
          %542 = dma.hbm_to_vmem [thread:$0]  %s535, 256, %s537, [#allocation6], 128, 128, 8
        $region16: #{tpu_custom_call.1} parent=11 // pred_fallthru
          _
        // Predicated region
        $region17: #{tpu_custom_call.1} parent=11 // pred_check
          %p543 = pneg %p71
        $region18: #{tpu_custom_call.1} parent=11 // pred_check_branch
          %545 = sbr.rel (%p543) target = $region20
        $region19: #{tpu_custom_call.1} parent=11 // pred_region
          %547 = vsyncadd [#allocation9], 0
          %s548 = sshll.u32 %s1, 4
          %s549 = int_to_ptr.hbm [resolvable:$true] %s548
          %s550 = sshll.u32 [#allocation8], 4
          %s551 = int_to_ptr.vmem [resolvable:$true] %s550
          %556 = dma.hbm_to_vmem [thread:$0]  %s549, 256, %s551, [#allocation9], 128, 128, 8
        $region20: #{tpu_custom_call.1} parent=11 // pred_fallthru
          _
        // Predicated region
        $region21: #{tpu_custom_call.1} parent=11 // pred_check
          %p557 = pneg %p92
        $region22: #{tpu_custom_call.1} parent=11 // pred_check_branch
          %559 = sbr.rel (%p557) target = $region24
        $region23: #{tpu_custom_call.1} parent=11 // pred_region
          %561 = vsyncadd [#allocation9], 0
          %s562 = sshll.u32 %s2, 4
          %s563 = int_to_ptr.hbm [resolvable:$true] %s562
          %s564 = sshll.u32 [#allocation10], 4
          %s565 = int_to_ptr.vmem [resolvable:$true] %s564
          %570 = dma.hbm_to_vmem [thread:$0]  %s563, 256, %s565, [#allocation9], 64, 64, 4
        $region24: #{tpu_custom_call.1} parent=11 // pred_fallthru
          _
        // Predicated region
        $region25: #{tpu_custom_call.1} parent=11 // pred_check
          %p571 = pneg %p113
        $region26: #{tpu_custom_call.1} parent=11 // pred_check_branch
          %573 = sbr.rel (%p571) target = $region28
        $region27: #{tpu_custom_call.1} parent=11 // pred_region
          %575 = vsyncadd [#allocation12], 0
          %s577 = sshll.u32 %s3, 4
          %s578 = int_to_ptr.hbm [resolvable:$true] %s577
          %s579 = sshll.u32 [#allocation11], 4
          %s580 = int_to_ptr.vmem [resolvable:$true] %s579
          %582 = dma.hbm_to_vmem [thread:$0]  %s578, 16, %s580, [#allocation12]
        $region28: #{tpu_custom_call.1} parent=11 // pred_fallthru
          _
        // Predicated region
        $region29: #{tpu_custom_call.1} parent=11 // pred_check
          %p583 = pneg %p472
        $region30: #{tpu_custom_call.1} parent=11 // pred_check_branch
          %585 = sbr.rel (%p583) target = $region32
        $region31: #{tpu_custom_call.1} parent=11 // pred_region
          _
        $region32: #{tpu_custom_call.1} parent=11 // pred_fallthru
          _
        // Predicated region
        $region33: #{tpu_custom_call.1} parent=11 // pred_check
          %p586 = pneg %p493
        $region34: #{tpu_custom_call.1} parent=11 // pred_check_branch
          %588 = sbr.rel (%p586) target = $region36
        $region35: #{tpu_custom_call.1} parent=11 // pred_region
          _
        $region36: #{tpu_custom_call.1} parent=11 // pred_fallthru
          _
      $region12: #{tpu_custom_call.1} parent=5 // pred_fallthru
        _
      %p589 = scmp.lt.s32.totalorder %s29, 2
      // Predicated region
      $region37: #{tpu_custom_call.1} parent=5 // pred_check
        %p590 = pneg %p589
      $region38: #{tpu_custom_call.1} parent=5 // pred_check_branch
        %592 = sbr.rel (%p590) target = $region40
      $region39: #{tpu_custom_call.1} parent=5 // pred_region
        // Predicated region
        $region41: #{tpu_custom_call.1} parent=39 // pred_check
          %p593 = pneg %p133
        $region42: #{tpu_custom_call.1} parent=39 // pred_check_branch
          %595 = sbr.rel (%p593) target = $region44
        $region43: #{tpu_custom_call.1} parent=39 // pred_region
          %p596 = scmp.lt.s32.totalorder %s29, 1
          %s597 = scalar_select %p596, %s29, 1
          %s598 = scalar_lea.vmem %s4, %s597
        $region44: #{tpu_custom_call.1} parent=39 // pred_fallthru
          _
        // Predicated region
        $region45: #{tpu_custom_call.1} parent=39 // pred_check
          %p599 = pneg %p159
        $region46: #{tpu_custom_call.1} parent=39 // pred_check_branch
          %601 = sbr.rel (%p599) target = $region48
        $region47: #{tpu_custom_call.1} parent=39 // pred_region
          %p602 = scmp.lt.s32.totalorder %s29, 1
          %s603 = scalar_select %p602, %s29, 1
          %s604 = scalar_lea.vmem %s5, %s603
        $region48: #{tpu_custom_call.1} parent=39 // pred_fallthru
          _
        // Predicated region
        $region49: #{tpu_custom_call.1} parent=39 // pred_check
          %p605 = pneg %p185
        $region50: #{tpu_custom_call.1} parent=39 // pred_check_branch
          %607 = sbr.rel (%p605) target = $region52
        $region51: #{tpu_custom_call.1} parent=39 // pred_region
          %s608 = sand.u32 %s29, 1
          %s609 = scalar_lea.sflag [#allocation6], %s608
          %s610 = sand.u32 %s175, 1
          %s611 = scalar_lea.vmem [#allocation13], %s610
          %613 = vsyncadd %s609, 0
          %s614 = scalar_lea.hbm %s6, %s29
          %s616 = sshll.u32 %s614, 4
          %s617 = int_to_ptr.hbm [resolvable:$true] %s616
          %s618 = sshll.u32 %s611, 4
          %s619 = int_to_ptr.vmem [resolvable:$true] %s618
          %621 = dma.hbm_to_vmem [thread:$0]  %s617, 16, %s619, %s609
        $region52: #{tpu_custom_call.1} parent=39 // pred_fallthru
          _
        // Predicated region
        $region53: #{tpu_custom_call.1} parent=39 // pred_check
          %p622 = pneg %p211
        $region54: #{tpu_custom_call.1} parent=39 // pred_check_branch
          %624 = sbr.rel (%p622) target = $region56
        $region55: #{tpu_custom_call.1} parent=39 // pred_region
          %s625 = sand.u32 %s29, 1
          %s626 = scalar_lea.sflag [#allocation6], %s625
          %s627 = sand.u32 %s201, 1
          %s628 = scalar_lea.vmem [#allocation14], %s627
          %630 = vsyncadd %s626, 0
          %s631 = scalar_lea.hbm %s7, %s29
          %s633 = sshll.u32 %s631, 4
          %s634 = int_to_ptr.hbm [resolvable:$true] %s633
          %s635 = sshll.u32 %s628, 4
          %s636 = int_to_ptr.vmem [resolvable:$true] %s635
          %638 = dma.hbm_to_vmem [thread:$0]  %s634, 16, %s636, %s626
        $region56: #{tpu_custom_call.1} parent=39 // pred_fallthru
          _
        // Predicated region
        $region57: #{tpu_custom_call.1} parent=39 // pred_check
          %p639 = pneg %p237
        $region58: #{tpu_custom_call.1} parent=39 // pred_check_branch
          %641 = sbr.rel (%p639) target = $region60
        $region59: #{tpu_custom_call.1} parent=39 // pred_region
          %s642 = sand.u32 %s29, 1
          %s643 = scalar_lea.sflag [#allocation6], %s642
          %s644 = sand.u32 %s227, 1
          %s645 = smul.addr %s644, 192
          %s646 = scalar_lea.vmem [#allocation15], %s645
          %648 = vsyncadd %s643, 0
          %s649 = smul.addr %s29, 48
          %s650 = smul.addr %s649, 4
          %s651 = scalar_lea.hbm %s8, %s650
          %s652 = sshll.u32 %s651, 4
          %s653 = int_to_ptr.hbm [resolvable:$true] %s652
          %s654 = sshll.u32 %s646, 4
          %s655 = int_to_ptr.vmem [resolvable:$true] %s654
          %660 = dma.hbm_to_vmem [thread:$0]  %s653, 3072, %s655, %s643, 192, 192, 12
        $region60: #{tpu_custom_call.1} parent=39 // pred_fallthru
          _
        // Predicated region
        $region61: #{tpu_custom_call.1} parent=39 // pred_check
          %p661 = pneg %p263
        $region62: #{tpu_custom_call.1} parent=39 // pred_check_branch
          %663 = sbr.rel (%p661) target = $region64
        $region63: #{tpu_custom_call.1} parent=39 // pred_region
          %s664 = sand.u32 %s29, 1
          %s665 = scalar_lea.sflag [#allocation6], %s664
          %s666 = sand.u32 %s253, 1
          %s667 = smul.addr %s666, 64
          %s668 = scalar_lea.vmem [#allocation16], %s667
          %670 = vsyncadd %s665, 0
          %s671 = smul.addr %s29, 16
          %s672 = smul.addr %s671, 4
          %s673 = scalar_lea.hbm %s9, %s672
          %s674 = sshll.u32 %s673, 4
          %s675 = int_to_ptr.hbm [resolvable:$true] %s674
          %s676 = sshll.u32 %s668, 4
          %s677 = int_to_ptr.vmem [resolvable:$true] %s676
          %682 = dma.hbm_to_vmem [thread:$0]  %s675, 1024, %s677, %s665, 64, 64, 4
        $region64: #{tpu_custom_call.1} parent=39 // pred_fallthru
          _
        // Predicated region
        $region65: #{tpu_custom_call.1} parent=39 // pred_check
          %p683 = pneg %p289
        $region66: #{tpu_custom_call.1} parent=39 // pred_check_branch
          %685 = sbr.rel (%p683) target = $region68
        $region67: #{tpu_custom_call.1} parent=39 // pred_region
          %s686 = sand.u32 %s29, 1
          %s687 = scalar_lea.sflag [#allocation6], %s686
          %s688 = sand.u32 %s279, 1
          %s689 = scalar_lea.vmem [#allocation17], %s688
          %691 = vsyncadd %s687, 0
          %s692 = scalar_lea.hbm %s10, %s29
          %s694 = sshll.u32 %s692, 4
          %s695 = int_to_ptr.hbm [resolvable:$true] %s694
          %s696 = sshll.u32 %s689, 4
          %s697 = int_to_ptr.vmem [resolvable:$true] %s696
          %699 = dma.hbm_to_vmem [thread:$0]  %s695, 16, %s697, %s687
        $region68: #{tpu_custom_call.1} parent=39 // pred_fallthru
          _
        // Predicated region
        $region69: #{tpu_custom_call.1} parent=39 // pred_check
          %p700 = pneg %p315
        $region70: #{tpu_custom_call.1} parent=39 // pred_check_branch
          %702 = sbr.rel (%p700) target = $region72
        $region71: #{tpu_custom_call.1} parent=39 // pred_region
          %s703 = sand.u32 %s29, 1
          %s704 = scalar_lea.sflag [#allocation6], %s703
          %s705 = sand.u32 %s305, 1
          %s706 = scalar_lea.vmem [#allocation18], %s705
          %708 = vsyncadd %s704, 0
          %s709 = scalar_lea.hbm %s11, %s29
          %s711 = sshll.u32 %s709, 4
          %s712 = int_to_ptr.hbm [resolvable:$true] %s711
          %s713 = sshll.u32 %s706, 4
          %s714 = int_to_ptr.vmem [resolvable:$true] %s713
          %716 = dma.hbm_to_vmem [thread:$0]  %s712, 16, %s714, %s704
        $region72: #{tpu_custom_call.1} parent=39 // pred_fallthru
          _
        // Predicated region
        $region73: #{tpu_custom_call.1} parent=39 // pred_check
          %p717 = pneg %p341
        $region74: #{tpu_custom_call.1} parent=39 // pred_check_branch
          %719 = sbr.rel (%p717) target = $region76
        $region75: #{tpu_custom_call.1} parent=39 // pred_region
          %s720 = sand.u32 %s29, 1
          %s721 = scalar_lea.sflag [#allocation6], %s720
          %s722 = sand.u32 %s331, 1
          %s723 = scalar_lea.vmem [#allocation19], %s722
          %725 = vsyncadd %s721, 0
          %s726 = scalar_lea.hbm %s12, %s29
          %s728 = sshll.u32 %s726, 4
          %s729 = int_to_ptr.hbm [resolvable:$true] %s728
          %s730 = sshll.u32 %s723, 4
          %s731 = int_to_ptr.vmem [resolvable:$true] %s730
          %733 = dma.hbm_to_vmem [thread:$0]  %s729, 16, %s731, %s721
        $region76: #{tpu_custom_call.1} parent=39 // pred_fallthru
          _
        // Predicated region
        $region77: #{tpu_custom_call.1} parent=39 // pred_check
          %p734 = pneg %p367
        $region78: #{tpu_custom_call.1} parent=39 // pred_check_branch
          %736 = sbr.rel (%p734) target = $region80
        $region79: #{tpu_custom_call.1} parent=39 // pred_region
          %s737 = sand.u32 %s29, 1
          %s738 = scalar_lea.sflag [#allocation6], %s737
          %s739 = sand.u32 %s357, 1
          %s740 = smul.addr %s739, 256
          %s741 = scalar_lea.vmem [#allocation20], %s740
          %743 = vsyncadd %s738, 0
          %s744 = smul.addr %s29, 64
          %s745 = smul.addr %s744, 4
          %s746 = scalar_lea.hbm %s13, %s745
          %s747 = sshll.u32 %s746, 4
          %s748 = int_to_ptr.hbm [resolvable:$true] %s747
          %s749 = sshll.u32 %s741, 4
          %s750 = int_to_ptr.vmem [resolvable:$true] %s749
          %755 = dma.hbm_to_vmem [thread:$0]  %s748, 4096, %s750, %s738, 256, 256, 16
        $region80: #{tpu_custom_call.1} parent=39 // pred_fallthru
          _
        // Predicated region
        $region81: #{tpu_custom_call.1} parent=39 // pred_check
          %p756 = pneg %p393
        $region82: #{tpu_custom_call.1} parent=39 // pred_check_branch
          %758 = sbr.rel (%p756) target = $region84
        $region83: #{tpu_custom_call.1} parent=39 // pred_region
          %p759 = scmp.lt.s32.totalorder %s29, 1
          %s760 = scalar_select %p759, %s29, 1
          %s761 = smul.addr %s760, 4
          %s762 = scalar_lea.vmem %s14, %s761
        $region84: #{tpu_custom_call.1} parent=39 // pred_fallthru
          _
        // Predicated region
        $region85: #{tpu_custom_call.1} parent=39 // pred_check
          %p763 = pneg %p419
        $region86: #{tpu_custom_call.1} parent=39 // pred_check_branch
          %765 = sbr.rel (%p763) target = $region88
        $region87: #{tpu_custom_call.1} parent=39 // pred_region
          %s766 = sand.u32 %s29, 1
          %s767 = scalar_lea.sflag [#allocation6], %s766
          %s768 = sand.u32 %s409, 1
          %s769 = smul.addr %s768, 256
          %s770 = scalar_lea.vmem [#allocation21], %s769
          %772 = vsyncadd %s767, 0
          %s773 = smul.addr %s29, 64
          %s774 = smul.addr %s773, 4
          %s775 = scalar_lea.hbm %s15, %s774
          %s776 = sshll.u32 %s775, 4
          %s777 = int_to_ptr.hbm [resolvable:$true] %s776
          %s778 = sshll.u32 %s770, 4
          %s779 = int_to_ptr.vmem [resolvable:$true] %s778
          %784 = dma.hbm_to_vmem [thread:$0]  %s777, 4096, %s779, %s767, 64, 64, 4
        $region88: #{tpu_custom_call.1} parent=39 // pred_fallthru
          _
        // Predicated region
        $region89: #{tpu_custom_call.1} parent=39 // pred_check
          %p785 = pneg %p445
        $region90: #{tpu_custom_call.1} parent=39 // pred_check_branch
          %787 = sbr.rel (%p785) target = $region92
        $region91: #{tpu_custom_call.1} parent=39 // pred_region
          %p788 = scmp.lt.s32.totalorder %s29, 1
          %s789 = scalar_select %p788, %s29, 1
          %s790 = scalar_lea.vmem %s16, %s789
        $region92: #{tpu_custom_call.1} parent=39 // pred_fallthru
          _
      $region40: #{tpu_custom_call.1} parent=5 // pred_fallthru
        _
      %p791 = scmp.le.s32.totalorder 1, %s29
      %p792 = scmp.lt.s32.totalorder %s29, 3
      %p793 = pnand %p791, %p792
      %p794 = pneg %p793
      // Predicated region
      $region93: #{tpu_custom_call.1} parent=5 // pred_check
        _
      $region94: #{tpu_custom_call.1} parent=5 // pred_check_branch
        %796 = sbr.rel (%p793) target = $region96
      $region95: #{tpu_custom_call.1} parent=5 // pred_region
        %s797 = ssub.s32 %s29, 1
        // Predicated region
        $region97: #{tpu_custom_call.1} parent=95 // pred_check
          %p798 = pneg %p50
        $region98: #{tpu_custom_call.1} parent=95 // pred_check_branch
          %800 = sbr.rel (%p798) target = $region100
        $region99: #{tpu_custom_call.1} parent=95 // pred_region
          %802 = dma.done [#allocation6], 256
        $region100: #{tpu_custom_call.1} parent=95 // pred_fallthru
          _
        // Predicated region
        $region101: #{tpu_custom_call.1} parent=95 // pred_check
          %p803 = pneg %p71
        $region102: #{tpu_custom_call.1} parent=95 // pred_check_branch
          %805 = sbr.rel (%p803) target = $region104
        $region103: #{tpu_custom_call.1} parent=95 // pred_region
          %807 = dma.done [#allocation9], 256
        $region104: #{tpu_custom_call.1} parent=95 // pred_fallthru
          _
        // Predicated region
        $region105: #{tpu_custom_call.1} parent=95 // pred_check
          %p808 = pneg %p92
        $region106: #{tpu_custom_call.1} parent=95 // pred_check_branch
          %810 = sbr.rel (%p808) target = $region108
        $region107: #{tpu_custom_call.1} parent=95 // pred_region
          %812 = dma.done [#allocation9], 256
        $region108: #{tpu_custom_call.1} parent=95 // pred_fallthru
          _
        // Predicated region
        $region109: #{tpu_custom_call.1} parent=95 // pred_check
          %p813 = pneg %p113
        $region110: #{tpu_custom_call.1} parent=95 // pred_check_branch
          %815 = sbr.rel (%p813) target = $region112
        $region111: #{tpu_custom_call.1} parent=95 // pred_region
          %817 = dma.done [#allocation12], 16
        $region112: #{tpu_custom_call.1} parent=95 // pred_fallthru
          _
        %s818 = sand.u32 %s34, 1
        %s819 = scalar_lea.sflag [#allocation6], %s818
        %s820 = sand.u32 %s178, 1
        %s821 = scalar_lea.vmem [#allocation13], %s820
        // Predicated region
        $region113: #{tpu_custom_call.1} parent=95 // pred_check
          %p822 = pneg %p191
        $region114: #{tpu_custom_call.1} parent=95 // pred_check_branch
          %824 = sbr.rel (%p822) target = $region116
        $region115: #{tpu_custom_call.1} parent=95 // pred_region
          %826 = dma.done %s819, 16
        $region116: #{tpu_custom_call.1} parent=95 // pred_fallthru
          _
        %s827 = sand.u32 %s34, 1
        %s828 = scalar_lea.sflag [#allocation6], %s827
        %s829 = sand.u32 %s204, 1
        %s830 = scalar_lea.vmem [#allocation14], %s829
        // Predicated region
        $region117: #{tpu_custom_call.1} parent=95 // pred_check
          %p831 = pneg %p217
        $region118: #{tpu_custom_call.1} parent=95 // pred_check_branch
          %833 = sbr.rel (%p831) target = $region120
        $region119: #{tpu_custom_call.1} parent=95 // pred_region
          %835 = dma.done %s828, 16
        $region120: #{tpu_custom_call.1} parent=95 // pred_fallthru
          _
        %s836 = sand.u32 %s34, 1
        %s837 = scalar_lea.sflag [#allocation6], %s836
        %s838 = sand.u32 %s230, 1
        %s839 = smul.addr %s838, 192
        %s840 = scalar_lea.vmem [#allocation15], %s839
        // Predicated region
        $region121: #{tpu_custom_call.1} parent=95 // pred_check
          %p841 = pneg %p243
        $region122: #{tpu_custom_call.1} parent=95 // pred_check_branch
          %843 = sbr.rel (%p841) target = $region124
        $region123: #{tpu_custom_call.1} parent=95 // pred_region
          %845 = dma.done %s837, 3072
        $region124: #{tpu_custom_call.1} parent=95 // pred_fallthru
          _
        %s846 = sand.u32 %s34, 1
        %s847 = scalar_lea.sflag [#allocation6], %s846
        %s848 = sand.u32 %s256, 1
        %s849 = smul.addr %s848, 64
        %s850 = scalar_lea.vmem [#allocation16], %s849
        // Predicated region
        $region125: #{tpu_custom_call.1} parent=95 // pred_check
          %p851 = pneg %p269
        $region126: #{tpu_custom_call.1} parent=95 // pred_check_branch
          %853 = sbr.rel (%p851) target = $region128
        $region127: #{tpu_custom_call.1} parent=95 // pred_region
          %855 = dma.done %s847, 1024
        $region128: #{tpu_custom_call.1} parent=95 // pred_fallthru
          _
        %s856 = sand.u32 %s34, 1
        %s857 = scalar_lea.sflag [#allocation6], %s856
        %s858 = sand.u32 %s282, 1
        %s859 = scalar_lea.vmem [#allocation17], %s858
        // Predicated region
        $region129: #{tpu_custom_call.1} parent=95 // pred_check
          %p860 = pneg %p295
        $region130: #{tpu_custom_call.1} parent=95 // pred_check_branch
          %862 = sbr.rel (%p860) target = $region132
        $region131: #{tpu_custom_call.1} parent=95 // pred_region
          %864 = dma.done %s857, 16
        $region132: #{tpu_custom_call.1} parent=95 // pred_fallthru
          _
        %s865 = sand.u32 %s34, 1
        %s866 = scalar_lea.sflag [#allocation6], %s865
        %s867 = sand.u32 %s308, 1
        %s868 = scalar_lea.vmem [#allocation18], %s867
        // Predicated region
        $region133: #{tpu_custom_call.1} parent=95 // pred_check
          %p869 = pneg %p321
        $region134: #{tpu_custom_call.1} parent=95 // pred_check_branch
          %871 = sbr.rel (%p869) target = $region136
        $region135: #{tpu_custom_call.1} parent=95 // pred_region
          %873 = dma.done %s866, 16
        $region136: #{tpu_custom_call.1} parent=95 // pred_fallthru
          _
        %s874 = sand.u32 %s34, 1
        %s875 = scalar_lea.sflag [#allocation6], %s874
        %s876 = sand.u32 %s334, 1
        %s877 = scalar_lea.vmem [#allocation19], %s876
        // Predicated region
        $region137: #{tpu_custom_call.1} parent=95 // pred_check
          %p878 = pneg %p347
        $region138: #{tpu_custom_call.1} parent=95 // pred_check_branch
          %880 = sbr.rel (%p878) target = $region140
        $region139: #{tpu_custom_call.1} parent=95 // pred_region
          %882 = dma.done %s875, 16
        $region140: #{tpu_custom_call.1} parent=95 // pred_fallthru
          _
        %s883 = sand.u32 %s34, 1
        %s884 = scalar_lea.sflag [#allocation6], %s883
        %s885 = sand.u32 %s360, 1
        %s886 = smul.addr %s885, 256
        %s887 = scalar_lea.vmem [#allocation20], %s886
        // Predicated region
        $region141: #{tpu_custom_call.1} parent=95 // pred_check
          %p888 = pneg %p373
        $region142: #{tpu_custom_call.1} parent=95 // pred_check_branch
          %890 = sbr.rel (%p888) target = $region144
        $region143: #{tpu_custom_call.1} parent=95 // pred_region
          %892 = dma.done %s884, 4096
        $region144: #{tpu_custom_call.1} parent=95 // pred_fallthru
          _
        %s893 = sand.u32 %s34, 1
        %s894 = scalar_lea.sflag [#allocation6], %s893
        %s895 = sand.u32 %s412, 1
        %s896 = smul.addr %s895, 256
        %s897 = scalar_lea.vmem [#allocation21], %s896
        // Predicated region
        $region145: #{tpu_custom_call.1} parent=95 // pred_check
          %p898 = pneg %p425
        $region146: #{tpu_custom_call.1} parent=95 // pred_check_branch
          %900 = sbr.rel (%p898) target = $region148
        $region147: #{tpu_custom_call.1} parent=95 // pred_region
          %902 = dma.done %s894, 4096
        $region148: #{tpu_custom_call.1} parent=95 // pred_fallthru
          _
        %p903 = pneg %p50
        %p904 = pneg %p47
        %p905 = pneg %p71
        %p906 = pneg %p68
        %p907 = pneg %p92
        %p908 = pneg %p89
        %p909 = pneg %p113
        %p910 = pneg %p110
        %p911 = scmp.lt.s32.totalorder %s34, 1
        %s912 = scalar_select %p911, %s34, 1
        %s913 = scalar_lea.vmem %s4, %s912
        %p914 = pneg %p139
        %p915 = pneg %p136
        %p916 = scmp.lt.s32.totalorder %s34, 1
        %s917 = scalar_select %p916, %s34, 1
        %s918 = scalar_lea.vmem %s5, %s917
        %p919 = pneg %p165
        %p920 = pneg %p162
        %s921 = sand.u32 %s34, 1
        %s922 = scalar_lea.sflag [#allocation6], %s921
        %s923 = sand.u32 %s178, 1
        %s924 = scalar_lea.vmem [#allocation13], %s923
        %p925 = pneg %p191
        %p926 = pneg %p188
        %s927 = sand.u32 %s34, 1
        %s928 = scalar_lea.sflag [#allocation6], %s927
        %s929 = sand.u32 %s204, 1
        %s930 = scalar_lea.vmem [#allocation14], %s929
        %p931 = pneg %p217
        %p932 = pneg %p214
        %s933 = sand.u32 %s34, 1
        %s934 = scalar_lea.sflag [#allocation6], %s933
        %s935 = sand.u32 %s230, 1
        %s936 = smul.addr %s935, 192
        %s937 = scalar_lea.vmem [#allocation15], %s936
        %p938 = pneg %p243
        %p939 = pneg %p240
        %s940 = sand.u32 %s34, 1
        %s941 = scalar_lea.sflag [#allocation6], %s940
        %s942 = sand.u32 %s256, 1
        %s943 = smul.addr %s942, 64
        %s944 = scalar_lea.vmem [#allocation16], %s943
        %p945 = pneg %p269
        %p946 = pneg %p266
        %s947 = sand.u32 %s34, 1
        %s948 = scalar_lea.sflag [#allocation6], %s947
        %s949 = sand.u32 %s282, 1
        %s950 = scalar_lea.vmem [#allocation17], %s949
        %p951 = pneg %p295
        %p952 = pneg %p292
        %s953 = sand.u32 %s34, 1
        %s954 = scalar_lea.sflag [#allocation6], %s953
        %s955 = sand.u32 %s308, 1
        %s956 = scalar_lea.vmem [#allocation18], %s955
        %p957 = pneg %p321
        %p958 = pneg %p318
        %s959 = sand.u32 %s34, 1
        %s960 = scalar_lea.sflag [#allocation6], %s959
        %s961 = sand.u32 %s334, 1
        %s962 = scalar_lea.vmem [#allocation19], %s961
        %p963 = pneg %p347
        %p964 = pneg %p344
        %s965 = sand.u32 %s34, 1
        %s966 = scalar_lea.sflag [#allocation6], %s965
        %s967 = sand.u32 %s360, 1
        %s968 = smul.addr %s967, 256
        %s969 = scalar_lea.vmem [#allocation20], %s968
        %p970 = pneg %p373
        %p971 = pneg %p370
        %p972 = scmp.lt.s32.totalorder %s34, 1
        %s973 = scalar_select %p972, %s34, 1
        %s974 = smul.addr %s973, 4
        %s975 = scalar_lea.vmem %s14, %s974
        %p976 = pneg %p399
        %p977 = pneg %p396
        %s978 = sand.u32 %s34, 1
        %s979 = scalar_lea.sflag [#allocation6], %s978
        %s980 = sand.u32 %s412, 1
        %s981 = smul.addr %s980, 256
        %s982 = scalar_lea.vmem [#allocation21], %s981
        %p983 = pneg %p425
        %p984 = pneg %p422
        %p985 = scmp.lt.s32.totalorder %s34, 1
        %s986 = scalar_select %p985, %s34, 1
        %s987 = scalar_lea.vmem %s16, %s986
        %p988 = pneg %p451
        %p989 = pneg %p448
        %p990 = pneg %p472
        %p991 = pneg %p469
        %p992 = pneg %p493
        %p993 = pneg %p490
        %p994 = pneg %p514
        %p995 = pneg %p511
        %p996 = scmp.lt.s32.totalorder %s34, 1
        %s997 = scalar_select %p996, %s34, 1
        %s998 = scalar_lea.vmem %s4, %s997
        %p999 = scmp.lt.s32.totalorder %s34, 1
        %s1000 = scalar_select %p999, %s34, 1
        %s1001 = scalar_lea.vmem %s5, %s1000
        %p1002 = scmp.lt.s32.totalorder %s34, 1
        %s1003 = scalar_select %p1002, %s34, 1
        %s1004 = smul.addr %s1003, 4
        %s1005 = scalar_lea.vmem %s14, %s1004
        %p1006 = scmp.lt.s32.totalorder %s34, 1
        %s1007 = scalar_select %p1006, %s34, 1
        %s1008 = scalar_lea.vmem %s16, %s1007
        %p1010 = scmp.eq.s32.totalorder %s34, 0
        // Predicated region
        $region149: #{tpu_custom_call.1} parent=95 // pred_check
          %p1011 = pneg %p1010
        $region150: #{tpu_custom_call.1} parent=95 // pred_check_branch
          %1013 = sbr.rel (%p1011) target = $region152
        $region151: #{tpu_custom_call.1} parent=95 // pred_region
          %v1014 = vld [vmem:[#allocation5] sm:$0xff]
          %v1015 = vld [vmem:[#allocation5 + $0x8] sm:$0xff]
          %v1016 = vpack.c.bf16 %v1015, %v1014
          %v1017 = vld [vmem:[#allocation10] sm:$0xf]
          %v1018 = vld [vmem:[#allocation10 + $0x4] sm:$0xf]
          %v1019 = vld [vmem:[#allocation10 + $0x8] sm:$0xf]
          %v1020 = vld [vmem:[#allocation10 + $0xc] sm:$0xf]
          %v1021 = vld [vmem:[#allocation11] sm:$0x1]
          %v1023 = vperm.slane %v1021, 0
          %v1029 = vunpack.c.l.b16 %v1017
          %v1030 = vunpack.c.l.b16 %v1018
          %v1031 = vunpack.c.l.b16 %v1019
          %v1032 = vunpack.c.l.b16 %v1020
          %v1033 = vpack.c.b16 %v1030, %v1029
          %v1034 = vpack.c.b16 %v1032, %v1031
          %vm1037 = vcmask 261120
          %v1039 = vsel %vm1037, %v1016, 0
          %1041 = vmatpush.bf16.msra.mxu0 0
          %1042 = vmatpush.bf16.msra.mxu0 0
          %1043 = vmatpush.bf16.msra.mxu0 0
          %1044 = vmatpush.bf16.msra.mxu0 0
          %1045 = vmatpush.bf16.msra.mxu0 0
          %1046 = vmatpush.bf16.msra.mxu0 0
          %1047 = vmatpush.bf16.msra.mxu0 %v1034
          %1048 = vmatpush.bf16.msra.mxu0 %v1033
          %1049 = vmatmul.bf16.gmra.mxu0 %v1039
          %v1050 = vpop.f32.mrf.mxu0
          %v1051 = vadd.f32 %v1023, %v1050
          %v1052 = vpop.f32.mrf.mxu0
          %v1053 = vadd.f32 %v1023, %v1052
          %1054 = vdwg.mxu0
          %v1055 = vld [vmem:[#allocation8] sm:$0xff]
          %v1056 = vld [vmem:[#allocation8 + $0x8] sm:$0xff]
          %v1057 = vadd.f32 %v1051, %v1055
          %v1058 = vadd.f32 %v1053, %v1056
          %1059 = vst [vmem:[#allocation2] sm:$0xff] %v1057
          %1060 = vst [vmem:[#allocation2 + $0x8] sm:$0xff] %v1058
        $region152: #{tpu_custom_call.1} parent=95 // pred_fallthru
          _
        %v1061 = vld [vmem:[#allocation2] sm:$0xff]
        %v1062 = vld [vmem:[#allocation2 + $0x8] sm:$0xff]
        %v1063 = vld [vmem:[%s998] sm:$0x1]
        %v1064 = vld [vmem:[%s1001] sm:$0x1]
        %1065 = vadd.xlane.f32.xlu0 %v1061
        %v1066 = vpop.xlane.xlu0 %1065
        %1067 = vadd.xlane.f32.xlu0 %v1062
        %v1068 = vpop.xlane.xlu0 %1067
        %v1069 = vrcp.pop 128.0
        %v1070 = vmul.f32 128.0, %v1069
        %v1071 = vsub.f32 1.0, %v1070
        %v1072 = vmul.f32 %v1069, %v1071
        %v1073 = vadd.f32 %v1069, %v1072
        %vm1074 = vweird.f32 %v1069
        %v1075 = vsel %vm1074, %v1069, %v1073
        %v1076 = vmul.f32 %v1066, %v1075
        %v1077 = vmul.f32 %v1068, %v1075
        %v1078 = vsub.f32 %v1061, %v1076
        %v1079 = vsub.f32 %v1062, %v1077
        %v1080 = vmul.f32 %v1078, %v1078
        %v1081 = vmul.f32 %v1079, %v1079
        %1082 = vadd.xlane.f32.xlu0 %v1080
        %v1083 = vpop.xlane.xlu0 %1082
        %1084 = vadd.xlane.f32.xlu0 %v1081
        %v1085 = vpop.xlane.xlu0 %1084
        %v1086 = vmul.f32 %v1083, %v1075
        %v1087 = vmul.f32 %v1085, %v1075
        %v1088 = vadd.f32 %v1086, 1e-05
        %v1089 = vadd.f32 %v1087, 1e-05
        %v1090 = vrsqrt.pop %v1088
        %v1091 = vmul.f32 %v1090, %v1088
        %v1092 = vmul.f32 %v1091, %v1090
        %v1093 = vmul.f32 0.5, %v1092
        %v1094 = vsub.f32 1.5, %v1093
        %v1095 = vmul.f32 %v1090, %v1094
        %vm1096 = vweird.f32 %v1088
        %vm1097 = vweird.f32 %v1090
        %vm1098 = vmor %vm1096, %vm1097
        %v1099 = vsel %vm1098, %v1090, %v1095
        %v1100 = vrsqrt.pop %v1089
        %v1101 = vmul.f32 %v1100, %v1089
        %v1102 = vmul.f32 %v1101, %v1100
        %v1103 = vmul.f32 0.5, %v1102
        %v1104 = vsub.f32 1.5, %v1103
        %v1105 = vmul.f32 %v1100, %v1104
        %vm1106 = vweird.f32 %v1089
        %vm1107 = vweird.f32 %v1100
        %vm1108 = vmor %vm1106, %vm1107
        %v1109 = vsel %vm1108, %v1100, %v1105
        %v1110 = vmul.f32 %v1078, %v1099
        %v1111 = vmul.f32 %v1079, %v1109
        %v1113 = vperm.slane %v1063, 0
        %v1115 = vmul.f32 %v1110, %v1113
        %v1116 = vmul.f32 %v1111, %v1113
        %v1118 = vperm.slane %v1064, 0
        %v1120 = vadd.f32 %v1115, %v1118
        %v1121 = vadd.f32 %v1116, %v1118
        %v1122 = vpack.c.bf16 %v1121, %v1120
        %v1123 = vld [vmem:[%s840] sm:$0xff]
        %v1124 = vld [vmem:[%s840 + $0x8] sm:$0xf]
        %v1125 = vld [vmem:[%s840 + $0xc] sm:$0xff]
        %v1126 = vld [vmem:[%s840 + $0x14] sm:$0xf]
        %v1127 = vld [vmem:[%s840 + $0x18] sm:$0xff]
        %v1128 = vld [vmem:[%s840 + $0x20] sm:$0xf]
        %v1129 = vld [vmem:[%s840 + $0x24] sm:$0xff]
        %v1130 = vld [vmem:[%s840 + $0x2c] sm:$0xf]
        %v1131 = vld [vmem:[%s840 + $0x30] sm:$0xff]
        %v1132 = vld [vmem:[%s840 + $0x38] sm:$0xf]
        %v1133 = vld [vmem:[%s840 + $0x3c] sm:$0xff]
        %v1134 = vld [vmem:[%s840 + $0x44] sm:$0xf]
        %v1135 = vld [vmem:[%s840 + $0x48] sm:$0xff]
        %v1136 = vld [vmem:[%s840 + $0x50] sm:$0xf]
        %v1137 = vld [vmem:[%s840 + $0x54] sm:$0xff]
        %v1138 = vld [vmem:[%s840 + $0x5c] sm:$0xf]
        %v1139 = vld [vmem:[%s840 + $0x60] sm:$0xff]
        %v1140 = vld [vmem:[%s840 + $0x68] sm:$0xf]
        %v1141 = vld [vmem:[%s840 + $0x6c] sm:$0xff]
        %v1142 = vld [vmem:[%s840 + $0x74] sm:$0xf]
        %v1143 = vld [vmem:[%s840 + $0x78] sm:$0xff]
        %v1144 = vld [vmem:[%s840 + $0x80] sm:$0xf]
        %v1145 = vld [vmem:[%s840 + $0x84] sm:$0xff]
        %v1146 = vld [vmem:[%s840 + $0x8c] sm:$0xf]
        %v1147 = vld [vmem:[%s840 + $0x90] sm:$0xff]
        %v1148 = vld [vmem:[%s840 + $0x98] sm:$0xf]
        %v1149 = vld [vmem:[%s840 + $0x9c] sm:$0xff]
        %v1150 = vld [vmem:[%s840 + $0xa4] sm:$0xf]
        %v1151 = vld [vmem:[%s840 + $0xa8] sm:$0xff]
        %v1152 = vld [vmem:[%s840 + $0xb0] sm:$0xf]
        %v1153 = vld [vmem:[%s840 + $0xb4] sm:$0xff]
        %v1154 = vld [vmem:[%s840 + $0xbc] sm:$0xf]
        %v1187 = vunpack.c.l.b16 %v1123
        %v1188 = vunpack.c.h.b16 %v1123
        %v1189 = vunpack.c.l.b16 %v1124
        %v1190 = vunpack.c.l.b16 %v1125
        %v1191 = vunpack.c.h.b16 %v1125
        %v1192 = vunpack.c.l.b16 %v1126
        %v1193 = vunpack.c.l.b16 %v1127
        %v1194 = vunpack.c.h.b16 %v1127
        %v1195 = vunpack.c.l.b16 %v1128
        %v1196 = vunpack.c.l.b16 %v1129
        %v1197 = vunpack.c.h.b16 %v1129
        %v1198 = vunpack.c.l.b16 %v1130
        %v1199 = vunpack.c.l.b16 %v1131
        %v1200 = vunpack.c.h.b16 %v1131
        %v1201 = vunpack.c.l.b16 %v1132
        %v1202 = vunpack.c.l.b16 %v1133
        %v1203 = vunpack.c.h.b16 %v1133
        %v1204 = vunpack.c.l.b16 %v1134
        %v1205 = vunpack.c.l.b16 %v1135
        %v1206 = vunpack.c.h.b16 %v1135
        %v1207 = vunpack.c.l.b16 %v1136
        %v1208 = vunpack.c.l.b16 %v1137
        %v1209 = vunpack.c.h.b16 %v1137
        %v1210 = vunpack.c.l.b16 %v1138
        %v1211 = vunpack.c.l.b16 %v1139
        %v1212 = vunpack.c.h.b16 %v1139
        %v1213 = vunpack.c.l.b16 %v1140
        %v1214 = vunpack.c.l.b16 %v1141
        %v1215 = vunpack.c.h.b16 %v1141
        %v1216 = vunpack.c.l.b16 %v1142
        %v1217 = vunpack.c.l.b16 %v1143
        %v1218 = vunpack.c.h.b16 %v1143
        %v1219 = vunpack.c.l.b16 %v1144
        %v1220 = vunpack.c.l.b16 %v1145
        %v1221 = vunpack.c.h.b16 %v1145
        %v1222 = vunpack.c.l.b16 %v1146
        %v1223 = vunpack.c.l.b16 %v1147
        %v1224 = vunpack.c.h.b16 %v1147
        %v1225 = vunpack.c.l.b16 %v1148
        %v1226 = vunpack.c.l.b16 %v1149
        %v1227 = vunpack.c.h.b16 %v1149
        %v1228 = vunpack.c.l.b16 %v1150
        %v1229 = vunpack.c.l.b16 %v1151
        %v1230 = vunpack.c.h.b16 %v1151
        %v1231 = vunpack.c.l.b16 %v1152
        %v1232 = vunpack.c.l.b16 %v1153
        %v1233 = vunpack.c.h.b16 %v1153
        %v1234 = vunpack.c.l.b16 %v1154
        %v1235 = vpack.c.b16 %v1190, %v1187
        %v1236 = vpack.c.b16 %v1191, %v1188
        %v1237 = vpack.c.b16 %v1192, %v1189
        %v1238 = vpack.c.b16 %v1196, %v1193
        %v1239 = vpack.c.b16 %v1197, %v1194
        %v1240 = vpack.c.b16 %v1198, %v1195
        %v1241 = vpack.c.b16 %v1202, %v1199
        %v1242 = vpack.c.b16 %v1203, %v1200
        %v1243 = vpack.c.b16 %v1204, %v1201
        %v1244 = vpack.c.b16 %v1208, %v1205
        %v1245 = vpack.c.b16 %v1209, %v1206
        %v1246 = vpack.c.b16 %v1210, %v1207
        %v1247 = vpack.c.b16 %v1214, %v1211
        %v1248 = vpack.c.b16 %v1215, %v1212
        %v1249 = vpack.c.b16 %v1216, %v1213
        %v1250 = vpack.c.b16 %v1220, %v1217
        %v1251 = vpack.c.b16 %v1221, %v1218
        %v1252 = vpack.c.b16 %v1222, %v1219
        %v1253 = vpack.c.b16 %v1226, %v1223
        %v1254 = vpack.c.b16 %v1227, %v1224
        %v1255 = vpack.c.b16 %v1228, %v1225
        %v1256 = vpack.c.b16 %v1232, %v1229
        %v1257 = vpack.c.b16 %v1233, %v1230
        %v1258 = vpack.c.b16 %v1234, %v1231
        %1283 = vmatpush.bf16.msra.mxu0 %v1256
        %1284 = vmatpush.bf16.msra.mxu0 %v1253
        %1285 = vmatpush.bf16.msra.mxu0 %v1250
        %1286 = vmatpush.bf16.msra.mxu0 %v1247
        %1287 = vmatpush.bf16.msra.mxu0 %v1244
        %1288 = vmatpush.bf16.msra.mxu0 %v1241
        %1289 = vmatpush.bf16.msra.mxu0 %v1238
        %1290 = vmatpush.bf16.msra.mxu0 %v1235
        %1291 = vmatmul.bf16.gmra.mxu0 %v1122
        %v1292 = vpop.f32.mrf.mxu0
        %v1293 = vadd.f32 0.0, %v1292
        %v1294 = vpop.f32.mrf.mxu0
        %v1295 = vadd.f32 0.0, %v1294
        %1296 = vdwg.mxu0
        %1297 = vmatpush.bf16.msra.mxu0 %v1257
        %1298 = vmatpush.bf16.msra.mxu0 %v1254
        %1299 = vmatpush.bf16.msra.mxu0 %v1251
        %1300 = vmatpush.bf16.msra.mxu0 %v1248
        %1301 = vmatpush.bf16.msra.mxu0 %v1245
        %1302 = vmatpush.bf16.msra.mxu0 %v1242
        %1303 = vmatpush.bf16.msra.mxu0 %v1239
        %1304 = vmatpush.bf16.msra.mxu0 %v1236
        %1305 = vmatmul.bf16.gmra.mxu0 %v1122
        %v1306 = vpop.f32.mrf.mxu0
        %v1307 = vadd.f32 0.0, %v1306
        %v1308 = vpop.f32.mrf.mxu0
        %v1309 = vadd.f32 0.0, %v1308
        %1310 = vdwg.mxu0
        %1311 = vmatpush.bf16.msra.mxu0 %v1258
        %1312 = vmatpush.bf16.msra.mxu0 %v1255
        %1313 = vmatpush.bf16.msra.mxu0 %v1252
        %1314 = vmatpush.bf16.msra.mxu0 %v1249
        %1315 = vmatpush.bf16.msra.mxu0 %v1246
        %1316 = vmatpush.bf16.msra.mxu0 %v1243
        %1317 = vmatpush.bf16.msra.mxu0 %v1240
        %1318 = vmatpush.bf16.msra.mxu0 %v1237
        %1319 = vmatmul.bf16.gmra.mxu0 %v1122
        %v1320 = vpop.f32.mrf.mxu0
        %v1321 = vadd.f32 0.0, %v1320
        %v1322 = vpop.f32.mrf.mxu0
        %v1323 = vadd.f32 0.0, %v1322
        %1324 = vdwg.mxu0
        %1325 = vst [vmem:[#allocation3] sm:$0xff] %v1293
        %1326 = vst [vmem:[#allocation3 + $0x8] sm:$0xff] %v1307
        %1327 = vst [vmem:[#allocation3 + $0x10] sm:$0xff] %v1321
        %1328 = vst [vmem:[#allocation3 + $0x18] sm:$0xff] %v1295
        %1329 = vst [vmem:[#allocation3 + $0x20] sm:$0xff] %v1309
        %1330 = vst [vmem:[#allocation3 + $0x28] sm:$0xff] %v1323
        %v1331 = vld [vmem:[%s821] sm:$0x1]
        %v1332 = vld [vmem:[%s830] sm:$0x1]
        %v1333 = vld [vmem:[#allocation3] sm:$0xff]
        %v1334 = vld [vmem:[#allocation3 + $0x8] sm:$0xff]
        %v1335 = vld [vmem:[#allocation3 + $0x10] sm:$0xff]
        %v1336 = vmul.f32 %v1333, %v1333
        %vm1337 = vcmask 523264
        %v1338 = vsel %vm1337, %v1336, 0.0
        %1339 = vadd.xlane.f32.xlu0 %v1338
        %v1340 = vpop.xlane.xlu0 %1339
        %v1341 = vrsqrt.pop %v1340
        %v1342 = vmul.f32 %v1341, %v1340
        %v1343 = vmul.f32 %v1342, %v1341
        %v1344 = vmul.f32 0.5, %v1343
        %v1345 = vsub.f32 1.5, %v1344
        %v1346 = vmul.f32 %v1341, %v1345
        %v1347 = vmul.f32 %v1340, %v1346
        %vm1348 = vcmp.eq.f32.partialorder %v1340, inf
        %v1349 = vsel %vm1348, %v1340, %v1347
        %vm1350 = vcmp.eq.f32.partialorder %v1340, 0.0
        %v1351 = vand.u32 %v1340, 2147483648
        %v1352 = vsel %vm1350, %v1351, %v1349
        %v1353 = vmul.f32 %v1352, 0.125
        %v1354 = vmax.f32 %v1353, 1e-08
        %v1355 = vrcp.pop %v1354
        %v1356 = vmul.f32 %v1354, %v1355
        %v1357 = vsub.f32 1.0, %v1356
        %v1358 = vmul.f32 %v1355, %v1357
        %v1359 = vadd.f32 %v1355, %v1358
        %vm1360 = vweird.f32 %v1354
        %vm1361 = vweird.f32 %v1355
        %vm1362 = vmor %vm1360, %vm1361
        %v1363 = vsel %vm1362, %v1355, %v1359
        %v1364 = vand.u32 2147483647, %v1354
        %vm1365 = vcmp.eq.f32.partialorder %v1364, 8.507059e+37
        %v1366 = vand.u32 %v1354, 2147483648
        %v1367 = vor.u32 1.1754944e-38, %v1366
        %v1368 = vsel %vm1365, %v1367, %v1363
        %v1369 = vmul.f32 %v1333, %v1368
        %v1371 = vperm.slane %v1331, 0
        %v1373 = vmul.f32 %v1369, %v1371
        %v1374 = vmul.f32 %v1373, 0.125
        %v1375 = vmul.f32 %v1334, %v1334
        %v1376 = vsel %vm1337, %v1375, 0.0
        %1377 = vadd.xlane.f32.xlu0 %v1376
        %v1378 = vpop.xlane.xlu0 %1377
        %v1379 = vrsqrt.pop %v1378
        %v1380 = vmul.f32 %v1379, %v1378
        %v1381 = vmul.f32 %v1380, %v1379
        %v1382 = vmul.f32 0.5, %v1381
        %v1383 = vsub.f32 1.5, %v1382
        %v1384 = vmul.f32 %v1379, %v1383
        %v1385 = vmul.f32 %v1378, %v1384
        %vm1386 = vcmp.eq.f32.partialorder %v1378, inf
        %v1387 = vsel %vm1386, %v1378, %v1385
        %vm1388 = vcmp.eq.f32.partialorder %v1378, 0.0
        %v1389 = vand.u32 %v1378, 2147483648
        %v1390 = vsel %vm1388, %v1389, %v1387
        %v1391 = vmul.f32 %v1390, 0.125
        %v1392 = vmax.f32 %v1391, 1e-08
        %v1393 = vrcp.pop %v1392
        %v1394 = vmul.f32 %v1392, %v1393
        %v1395 = vsub.f32 1.0, %v1394
        %v1396 = vmul.f32 %v1393, %v1395
        %v1397 = vadd.f32 %v1393, %v1396
        %vm1398 = vweird.f32 %v1392
        %vm1399 = vweird.f32 %v1393
        %vm1400 = vmor %vm1398, %vm1399
        %v1401 = vsel %vm1400, %v1393, %v1397
        %v1402 = vand.u32 2147483647, %v1392
        %vm1403 = vcmp.eq.f32.partialorder %v1402, 8.507059e+37
        %v1404 = vand.u32 %v1392, 2147483648
        %v1405 = vor.u32 1.1754944e-38, %v1404
        %v1406 = vsel %vm1403, %v1405, %v1401
        %v1407 = vmul.f32 %v1334, %v1406
        %v1409 = vperm.slane %v1332, 0
        %v1411 = vmul.f32 %v1407, %v1409
        %v1413 = vsel %vm1337, %v1374, 0
        %v1416 = vsel %vm1337, %v1411, 0
        %1418 = vmatpush.xpose.msra.mxu0 0.0
        %1419 = vmatpush.xpose.msra.mxu0 0.0
        %1420 = vmatpush.xpose.msra.mxu0 0.0
        %1421 = vmatpush.xpose.msra.mxu0 0.0
        %1422 = vmatpush.xpose.msra.mxu0 0.0
        %1423 = vmatpush.xpose.msra.mxu0 0.0
        %1424 = vmatpush.xpose.msra.mxu0 0.0
        %1425 = vmatpush.xpose.msra.mxu0 0.0
        %1426 = vmatpush.xpose.msra.mxu0 0.0
        %1427 = vmatpush.xpose.msra.mxu0 0.0
        %1428 = vmatpush.xpose.msra.mxu0 0.0
        %1429 = vmatpush.xpose.msra.mxu0 0.0
        %1430 = vmatpush.xpose.msra.mxu0 0.0
        %1431 = vmatpush.xpose.msra.mxu0 0.0
        %1432 = vmatpush.xpose.msra.mxu0 0.0
        %1433 = vmatpush.xpose.msra.mxu0 %v1416
        %1434 = vmatmul.f32.gmra.mxu0 %v1413
        %v1435 = vpop.f32.mrf.mxu0
        %v1436 = vadd.f32 0.0, %v1435
        %1437 = vdwg.mxu0
        %vm1438 = vcmask 64512
        %v1439 = vsel %vm1438, %v1436, -inf
        %1440 = vmax.xlane.f32.xlu0 %v1439
        %v1441 = vpop.xlane.xlu0 %1440
        %v1442 = vsub.f32 %v1436, %v1441
        %v1443 = vmul.f32 %v1442, 1.442695
        %v1444 = vpow.pop %v1443
        %v1445 = vsel %vm1438, %v1444, 0.0
        %1446 = vadd.xlane.f32.xlu0 %v1445
        %v1447 = vpop.xlane.xlu0 %1446
        %v1448 = vrcp.pop %v1447
        %v1449 = vmul.f32 %v1447, %v1448
        %v1450 = vsub.f32 1.0, %v1449
        %v1451 = vmul.f32 %v1448, %v1450
        %v1452 = vadd.f32 %v1448, %v1451
        %vm1453 = vweird.f32 %v1447
        %vm1454 = vweird.f32 %v1448
        %vm1455 = vmor %vm1453, %vm1454
        %v1456 = vsel %vm1455, %v1448, %v1452
        %v1457 = vand.u32 2147483647, %v1447
        %vm1458 = vcmp.eq.f32.partialorder %v1457, 8.507059e+37
        %v1459 = vand.u32 %v1447, 2147483648
        %v1460 = vor.u32 1.1754944e-38, %v1459
        %v1461 = vsel %vm1458, %v1460, %v1456
        %v1462 = vmul.f32 %v1444, %v1461
        %v1464 = vsel %vm1438, %v1462, 0
        %1466 = vmatpush.msra.mxu0 0.0
        %1467 = vmatpush.msra.mxu0 0.0
        %1468 = vmatpush.msra.mxu0 0.0
        %1469 = vmatpush.msra.mxu0 0.0
        %1470 = vmatpush.msra.mxu0 0.0
        %1471 = vmatpush.msra.mxu0 0.0
        %1472 = vmatpush.msra.mxu0 0.0
        %1473 = vmatpush.msra.mxu0 0.0
        %1474 = vmatpush.msra.mxu0 0.0
        %1475 = vmatpush.msra.mxu0 0.0
        %1476 = vmatpush.msra.mxu0 0.0
        %1477 = vmatpush.msra.mxu0 0.0
        %1478 = vmatpush.msra.mxu0 0.0
        %1479 = vmatpush.msra.mxu0 0.0
        %1480 = vmatpush.msra.mxu0 0.0
        %1481 = vmatpush.msra.mxu0 %v1335
        %1482 = vmatmul.f32.gmra.mxu0 %v1464
        %v1483 = vpop.f32.mrf.mxu0
        %v1484 = vadd.f32 0.0, %v1483
        %1485 = vdwg.mxu0
        %1486 = vst.msk [vmem:[#allocation4] sm:$0xff] %vm1337, %v1484
        %v1487 = vld [vmem:[#allocation3] sm:$0xff]
        %v1488 = vld [vmem:[#allocation3 + $0x8] sm:$0xff]
        %v1489 = vld [vmem:[#allocation3 + $0x10] sm:$0xff]
        %v1490 = vmul.f32 %v1487, %v1487
        %1492 = vrot.lane.b32.xlu0 %v1490, 64
        %v1493 = vpop.permute.xlu0 %1492
        %v1495 = vsel %vm1337, %v1493, 0.0
        %1496 = vadd.xlane.f32.xlu0 %v1495
        %v1497 = vpop.xlane.xlu0 %1496
        %v1498 = vrsqrt.pop %v1497
        %v1499 = vmul.f32 %v1498, %v1497
        %v1500 = vmul.f32 %v1499, %v1498
        %v1501 = vmul.f32 0.5, %v1500
        %v1502 = vsub.f32 1.5, %v1501
        %v1503 = vmul.f32 %v1498, %v1502
        %v1504 = vmul.f32 %v1497, %v1503
        %vm1505 = vcmp.eq.f32.partialorder %v1497, inf
        %v1506 = vsel %vm1505, %v1497, %v1504
        %vm1507 = vcmp.eq.f32.partialorder %v1497, 0.0
        %v1508 = vand.u32 %v1497, 2147483648
        %v1509 = vsel %vm1507, %v1508, %v1506
        %v1510 = vmul.f32 %v1509, 0.125
        %v1511 = vmax.f32 %v1510, 1e-08
        %v1512 = vrcp.pop %v1511
        %v1513 = vmul.f32 %v1511, %v1512
        %v1514 = vsub.f32 1.0, %v1513
        %v1515 = vmul.f32 %v1512, %v1514
        %v1516 = vadd.f32 %v1512, %v1515
        %vm1517 = vweird.f32 %v1511
        %vm1518 = vweird.f32 %v1512
        %vm1519 = vmor %vm1517, %vm1518
        %v1520 = vsel %vm1519, %v1512, %v1516
        %v1521 = vand.u32 2147483647, %v1511
        %vm1522 = vcmp.eq.f32.partialorder %v1521, 8.507059e+37
        %v1523 = vand.u32 %v1511, 2147483648
        %v1524 = vor.u32 1.1754944e-38, %v1523
        %v1525 = vsel %vm1522, %v1524, %v1520
        %v1526 = vmul.f32 %v1487, %v1525
        %1527 = vrot.lane.b32.xlu0 %v1371, 64
        %v1528 = vpop.permute.xlu0 %1527
        %v1530 = vmul.f32 %v1526, %v1528
        %v1531 = vmul.f32 %v1530, 0.125
        %v1532 = vmul.f32 %v1488, %v1488
        %1534 = vrot.lane.b32.xlu0 %v1532, 64
        %v1535 = vpop.permute.xlu0 %1534
        %v1537 = vsel %vm1337, %v1535, 0.0
        %1538 = vadd.xlane.f32.xlu0 %v1537
        %v1539 = vpop.xlane.xlu0 %1538
        %v1540 = vrsqrt.pop %v1539
        %v1541 = vmul.f32 %v1540, %v1539
        %v1542 = vmul.f32 %v1541, %v1540
        %v1543 = vmul.f32 0.5, %v1542
        %v1544 = vsub.f32 1.5, %v1543
        %v1545 = vmul.f32 %v1540, %v1544
        %v1546 = vmul.f32 %v1539, %v1545
        %vm1547 = vcmp.eq.f32.partialorder %v1539, inf
        %v1548 = vsel %vm1547, %v1539, %v1546
        %vm1549 = vcmp.eq.f32.partialorder %v1539, 0.0
        %v1550 = vand.u32 %v1539, 2147483648
        %v1551 = vsel %vm1549, %v1550, %v1548
        %v1552 = vmul.f32 %v1551, 0.125
        %v1553 = vmax.f32 %v1552, 1e-08
        %v1554 = vrcp.pop %v1553
        %v1555 = vmul.f32 %v1553, %v1554
        %v1556 = vsub.f32 1.0, %v1555
        %v1557 = vmul.f32 %v1554, %v1556
        %v1558 = vadd.f32 %v1554, %v1557
        %vm1559 = vweird.f32 %v1553
        %vm1560 = vweird.f32 %v1554
        %vm1561 = vmor %vm1559, %vm1560
        %v1562 = vsel %vm1561, %v1554, %v1558
        %v1563 = vand.u32 2147483647, %v1553
        %vm1564 = vcmp.eq.f32.partialorder %v1563, 8.507059e+37
        %v1565 = vand.u32 %v1553, 2147483648
        %v1566 = vor.u32 1.1754944e-38, %v1565
        %v1567 = vsel %vm1564, %v1566, %v1562
        %v1568 = vmul.f32 %v1488, %v1567
        %1569 = vrot.lane.b32.xlu0 %v1409, 64
        %v1570 = vpop.permute.xlu0 %1569
        %v1572 = vmul.f32 %v1568, %v1570
        %1574 = vrot.lane.b32.xlu0 %v1531, 64
        %v1575 = vpop.permute.xlu0 %1574
        %1577 = vrot.lane.b32.xlu0 %v1572, 64
        %v1578 = vpop.permute.xlu0 %1577
        %v1579 = vsel %vm1337, %v1575, 0
        %v1581 = vsel %vm1337, %v1578, 0
        %1583 = vmatpush.xpose.msra.mxu0 0.0
        %1584 = vmatpush.xpose.msra.mxu0 0.0
        %1585 = vmatpush.xpose.msra.mxu0 0.0
        %1586 = vmatpush.xpose.msra.mxu0 0.0
        %1587 = vmatpush.xpose.msra.mxu0 0.0
        %1588 = vmatpush.xpose.msra.mxu0 0.0
        %1589 = vmatpush.xpose.msra.mxu0 0.0
        %1590 = vmatpush.xpose.msra.mxu0 0.0
        %1591 = vmatpush.xpose.msra.mxu0 0.0
        %1592 = vmatpush.xpose.msra.mxu0 0.0
        %1593 = vmatpush.xpose.msra.mxu0 0.0
        %1594 = vmatpush.xpose.msra.mxu0 0.0
        %1595 = vmatpush.xpose.msra.mxu0 0.0
        %1596 = vmatpush.xpose.msra.mxu0 0.0
        %1597 = vmatpush.xpose.msra.mxu0 0.0
        %1598 = vmatpush.xpose.msra.mxu0 %v1581
        %1599 = vmatmul.f32.gmra.mxu0 %v1579
        %v1600 = vpop.f32.mrf.mxu0
        %v1601 = vadd.f32 0.0, %v1600
        %1602 = vdwg.mxu0
        %v1603 = vsel %vm1438, %v1601, -inf
        %1604 = vmax.xlane.f32.xlu0 %v1603
        %v1605 = vpop.xlane.xlu0 %1604
        %v1606 = vsub.f32 %v1601, %v1605
        %v1607 = vmul.f32 %v1606, 1.442695
        %v1608 = vpow.pop %v1607
        %v1609 = vsel %vm1438, %v1608, 0.0
        %1610 = vadd.xlane.f32.xlu0 %v1609
        %v1611 = vpop.xlane.xlu0 %1610
        %v1612 = vrcp.pop %v1611
        %v1613 = vmul.f32 %v1611, %v1612
        %v1614 = vsub.f32 1.0, %v1613
        %v1615 = vmul.f32 %v1612, %v1614
        %v1616 = vadd.f32 %v1612, %v1615
        %vm1617 = vweird.f32 %v1611
        %vm1618 = vweird.f32 %v1612
        %vm1619 = vmor %vm1617, %vm1618
        %v1620 = vsel %vm1619, %v1612, %v1616
        %v1621 = vand.u32 2147483647, %v1611
        %vm1622 = vcmp.eq.f32.partialorder %v1621, 8.507059e+37
        %v1623 = vand.u32 %v1611, 2147483648
        %v1624 = vor.u32 1.1754944e-38, %v1623
        %v1625 = vsel %vm1622, %v1624, %v1620
        %v1626 = vmul.f32 %v1608, %v1625
        %1628 = vrot.lane.b32.xlu0 %v1489, 64
        %v1629 = vpop.permute.xlu0 %1628
        %v1632 = vsel %vm1438, %v1626, 0
        %1634 = vmatpush.msra.mxu0 0.0
        %1635 = vmatpush.msra.mxu0 0.0
        %1636 = vmatpush.msra.mxu0 0.0
        %1637 = vmatpush.msra.mxu0 0.0
        %1638 = vmatpush.msra.mxu0 0.0
        %1639 = vmatpush.msra.mxu0 0.0
        %1640 = vmatpush.msra.mxu0 0.0
        %1641 = vmatpush.msra.mxu0 0.0
        %1642 = vmatpush.msra.mxu0 0.0
        %1643 = vmatpush.msra.mxu0 0.0
        %1644 = vmatpush.msra.mxu0 0.0
        %1645 = vmatpush.msra.mxu0 0.0
        %1646 = vmatpush.msra.mxu0 0.0
        %1647 = vmatpush.msra.mxu0 0.0
        %1648 = vmatpush.msra.mxu0 0.0
        %1649 = vmatpush.msra.mxu0 %v1629
        %1650 = vmatmul.f32.gmra.mxu0 %v1632
        %v1651 = vpop.f32.mrf.mxu0
        %v1652 = vadd.f32 0.0, %v1651
        %1653 = vdwg.mxu0
        %1655 = vrot.lane.b32.xlu0 %v1652, 64
        %v1656 = vpop.permute.xlu0 %1655
        %vm1658 = vcmask 1048064
        %1659 = vst.msk [vmem:[#allocation4] sm:$0xff] %vm1658, %v1656
        %v1660 = vld [vmem:[#allocation3 + $0x18] sm:$0xff]
        %v1661 = vld [vmem:[#allocation3 + $0x20] sm:$0xff]
        %v1662 = vld [vmem:[#allocation3 + $0x28] sm:$0xff]
        %v1663 = vmul.f32 %v1660, %v1660
        %v1664 = vsel %vm1337, %v1663, 0.0
        %1665 = vadd.xlane.f32.xlu0 %v1664
        %v1666 = vpop.xlane.xlu0 %1665
        %v1667 = vrsqrt.pop %v1666
        %v1668 = vmul.f32 %v1667, %v1666
        %v1669 = vmul.f32 %v1668, %v1667
        %v1670 = vmul.f32 0.5, %v1669
        %v1671 = vsub.f32 1.5, %v1670
        %v1672 = vmul.f32 %v1667, %v1671
        %v1673 = vmul.f32 %v1666, %v1672
        %vm1674 = vcmp.eq.f32.partialorder %v1666, inf
        %v1675 = vsel %vm1674, %v1666, %v1673
        %vm1676 = vcmp.eq.f32.partialorder %v1666, 0.0
        %v1677 = vand.u32 %v1666, 2147483648
        %v1678 = vsel %vm1676, %v1677, %v1675
        %v1679 = vmul.f32 %v1678, 0.125
        %v1680 = vmax.f32 %v1679, 1e-08
        %v1681 = vrcp.pop %v1680
        %v1682 = vmul.f32 %v1680, %v1681
        %v1683 = vsub.f32 1.0, %v1682
        %v1684 = vmul.f32 %v1681, %v1683
        %v1685 = vadd.f32 %v1681, %v1684
        %vm1686 = vweird.f32 %v1680
        %vm1687 = vweird.f32 %v1681
        %vm1688 = vmor %vm1686, %vm1687
        %v1689 = vsel %vm1688, %v1681, %v1685
        %v1690 = vand.u32 2147483647, %v1680
        %vm1691 = vcmp.eq.f32.partialorder %v1690, 8.507059e+37
        %v1692 = vand.u32 %v1680, 2147483648
        %v1693 = vor.u32 1.1754944e-38, %v1692
        %v1694 = vsel %vm1691, %v1693, %v1689
        %v1695 = vmul.f32 %v1660, %v1694
        %v1696 = vmul.f32 %v1695, %v1371
        %v1697 = vmul.f32 %v1696, 0.125
        %v1698 = vmul.f32 %v1661, %v1661
        %v1699 = vsel %vm1337, %v1698, 0.0
        %1700 = vadd.xlane.f32.xlu0 %v1699
        %v1701 = vpop.xlane.xlu0 %1700
        %v1702 = vrsqrt.pop %v1701
        %v1703 = vmul.f32 %v1702, %v1701
        %v1704 = vmul.f32 %v1703, %v1702
        %v1705 = vmul.f32 0.5, %v1704
        %v1706 = vsub.f32 1.5, %v1705
        %v1707 = vmul.f32 %v1702, %v1706
        %v1708 = vmul.f32 %v1701, %v1707
        %vm1709 = vcmp.eq.f32.partialorder %v1701, inf
        %v1710 = vsel %vm1709, %v1701, %v1708
        %vm1711 = vcmp.eq.f32.partialorder %v1701, 0.0
        %v1712 = vand.u32 %v1701, 2147483648
        %v1713 = vsel %vm1711, %v1712, %v1710
        %v1714 = vmul.f32 %v1713, 0.125
        %v1715 = vmax.f32 %v1714, 1e-08
        %v1716 = vrcp.pop %v1715
        %v1717 = vmul.f32 %v1715, %v1716
        %v1718 = vsub.f32 1.0, %v1717
        %v1719 = vmul.f32 %v1716, %v1718
        %v1720 = vadd.f32 %v1716, %v1719
        %vm1721 = vweird.f32 %v1715
        %vm1722 = vweird.f32 %v1716
        %vm1723 = vmor %vm1721, %vm1722
        %v1724 = vsel %vm1723, %v1716, %v1720
        %v1725 = vand.u32 2147483647, %v1715
        %vm1726 = vcmp.eq.f32.partialorder %v1725, 8.507059e+37
        %v1727 = vand.u32 %v1715, 2147483648
        %v1728 = vor.u32 1.1754944e-38, %v1727
        %v1729 = vsel %vm1726, %v1728, %v1724
        %v1730 = vmul.f32 %v1661, %v1729
        %v1731 = vmul.f32 %v1730, %v1409
        %v1733 = vsel %vm1337, %v1697, 0
        %v1736 = vsel %vm1337, %v1731, 0
        %1738 = vmatpush.xpose.msra.mxu0 0.0
        %1739 = vmatpush.xpose.msra.mxu0 0.0
        %1740 = vmatpush.xpose.msra.mxu0 0.0
        %1741 = vmatpush.xpose.msra.mxu0 0.0
        %1742 = vmatpush.xpose.msra.mxu0 0.0
        %1743 = vmatpush.xpose.msra.mxu0 0.0
        %1744 = vmatpush.xpose.msra.mxu0 0.0
        %1745 = vmatpush.xpose.msra.mxu0 0.0
        %1746 = vmatpush.xpose.msra.mxu0 0.0
        %1747 = vmatpush.xpose.msra.mxu0 0.0
        %1748 = vmatpush.xpose.msra.mxu0 0.0
        %1749 = vmatpush.xpose.msra.mxu0 0.0
        %1750 = vmatpush.xpose.msra.mxu0 0.0
        %1751 = vmatpush.xpose.msra.mxu0 0.0
        %1752 = vmatpush.xpose.msra.mxu0 0.0
        %1753 = vmatpush.xpose.msra.mxu0 %v1736
        %1754 = vmatmul.f32.gmra.mxu0 %v1733
        %v1755 = vpop.f32.mrf.mxu0
        %v1756 = vadd.f32 0.0, %v1755
        %1757 = vdwg.mxu0
        %v1758 = vsel %vm1438, %v1756, -inf
        %1759 = vmax.xlane.f32.xlu0 %v1758
        %v1760 = vpop.xlane.xlu0 %1759
        %v1761 = vsub.f32 %v1756, %v1760
        %v1762 = vmul.f32 %v1761, 1.442695
        %v1763 = vpow.pop %v1762
        %v1764 = vsel %vm1438, %v1763, 0.0
        %1765 = vadd.xlane.f32.xlu0 %v1764
        %v1766 = vpop.xlane.xlu0 %1765
        %v1767 = vrcp.pop %v1766
        %v1768 = vmul.f32 %v1766, %v1767
        %v1769 = vsub.f32 1.0, %v1768
        %v1770 = vmul.f32 %v1767, %v1769
        %v1771 = vadd.f32 %v1767, %v1770
        %vm1772 = vweird.f32 %v1766
        %vm1773 = vweird.f32 %v1767
        %vm1774 = vmor %vm1772, %vm1773
        %v1775 = vsel %vm1774, %v1767, %v1771
        %v1776 = vand.u32 2147483647, %v1766
        %vm1777 = vcmp.eq.f32.partialorder %v1776, 8.507059e+37
        %v1778 = vand.u32 %v1766, 2147483648
        %v1779 = vor.u32 1.1754944e-38, %v1778
        %v1780 = vsel %vm1777, %v1779, %v1775
        %v1781 = vmul.f32 %v1763, %v1780
        %v1783 = vsel %vm1438, %v1781, 0
        %1785 = vmatpush.msra.mxu0 0.0
        %1786 = vmatpush.msra.mxu0 0.0
        %1787 = vmatpush.msra.mxu0 0.0
        %1788 = vmatpush.msra.mxu0 0.0
        %1789 = vmatpush.msra.mxu0 0.0
        %1790 = vmatpush.msra.mxu0 0.0
        %1791 = vmatpush.msra.mxu0 0.0
        %1792 = vmatpush.msra.mxu0 0.0
        %1793 = vmatpush.msra.mxu0 0.0
        %1794 = vmatpush.msra.mxu0 0.0
        %1795 = vmatpush.msra.mxu0 0.0
        %1796 = vmatpush.msra.mxu0 0.0
        %1797 = vmatpush.msra.mxu0 0.0
        %1798 = vmatpush.msra.mxu0 0.0
        %1799 = vmatpush.msra.mxu0 0.0
        %1800 = vmatpush.msra.mxu0 %v1662
        %1801 = vmatmul.f32.gmra.mxu0 %v1783
        %v1802 = vpop.f32.mrf.mxu0
        %v1803 = vadd.f32 0.0, %v1802
        %1804 = vdwg.mxu0
        %1805 = vst.msk [vmem:[#allocation4 + $0x8] sm:$0xff] %vm1337, %v1803
        %v1806 = vld [vmem:[#allocation3 + $0x18] sm:$0xff]
        %v1807 = vld [vmem:[#allocation3 + $0x20] sm:$0xff]
        %v1808 = vld [vmem:[#allocation3 + $0x28] sm:$0xff]
        %v1809 = vmul.f32 %v1806, %v1806
        %1811 = vrot.lane.b32.xlu0 %v1809, 64
        %v1812 = vpop.permute.xlu0 %1811
        %v1814 = vsel %vm1337, %v1812, 0.0
        %1815 = vadd.xlane.f32.xlu0 %v1814
        %v1816 = vpop.xlane.xlu0 %1815
        %v1817 = vrsqrt.pop %v1816
        %v1818 = vmul.f32 %v1817, %v1816
        %v1819 = vmul.f32 %v1818, %v1817
        %v1820 = vmul.f32 0.5, %v1819
        %v1821 = vsub.f32 1.5, %v1820
        %v1822 = vmul.f32 %v1817, %v1821
        %v1823 = vmul.f32 %v1816, %v1822
        %vm1824 = vcmp.eq.f32.partialorder %v1816, inf
        %v1825 = vsel %vm1824, %v1816, %v1823
        %vm1826 = vcmp.eq.f32.partialorder %v1816, 0.0
        %v1827 = vand.u32 %v1816, 2147483648
        %v1828 = vsel %vm1826, %v1827, %v1825
        %v1829 = vmul.f32 %v1828, 0.125
        %v1830 = vmax.f32 %v1829, 1e-08
        %v1831 = vrcp.pop %v1830
        %v1832 = vmul.f32 %v1830, %v1831
        %v1833 = vsub.f32 1.0, %v1832
        %v1834 = vmul.f32 %v1831, %v1833
        %v1835 = vadd.f32 %v1831, %v1834
        %vm1836 = vweird.f32 %v1830
        %vm1837 = vweird.f32 %v1831
        %vm1838 = vmor %vm1836, %vm1837
        %v1839 = vsel %vm1838, %v1831, %v1835
        %v1840 = vand.u32 2147483647, %v1830
        %vm1841 = vcmp.eq.f32.partialorder %v1840, 8.507059e+37
        %v1842 = vand.u32 %v1830, 2147483648
        %v1843 = vor.u32 1.1754944e-38, %v1842
        %v1844 = vsel %vm1841, %v1843, %v1839
        %v1845 = vmul.f32 %v1806, %v1844
        %v1846 = vmul.f32 %v1845, %v1528
        %v1847 = vmul.f32 %v1846, 0.125
        %v1848 = vmul.f32 %v1807, %v1807
        %1850 = vrot.lane.b32.xlu0 %v1848, 64
        %v1851 = vpop.permute.xlu0 %1850
        %v1853 = vsel %vm1337, %v1851, 0.0
        %1854 = vadd.xlane.f32.xlu0 %v1853
        %v1855 = vpop.xlane.xlu0 %1854
        %v1856 = vrsqrt.pop %v1855
        %v1857 = vmul.f32 %v1856, %v1855
        %v1858 = vmul.f32 %v1857, %v1856
        %v1859 = vmul.f32 0.5, %v1858
        %v1860 = vsub.f32 1.5, %v1859
        %v1861 = vmul.f32 %v1856, %v1860
        %v1862 = vmul.f32 %v1855, %v1861
        %vm1863 = vcmp.eq.f32.partialorder %v1855, inf
        %v1864 = vsel %vm1863, %v1855, %v1862
        %vm1865 = vcmp.eq.f32.partialorder %v1855, 0.0
        %v1866 = vand.u32 %v1855, 2147483648
        %v1867 = vsel %vm1865, %v1866, %v1864
        %v1868 = vmul.f32 %v1867, 0.125
        %v1869 = vmax.f32 %v1868, 1e-08
        %v1870 = vrcp.pop %v1869
        %v1871 = vmul.f32 %v1869, %v1870
        %v1872 = vsub.f32 1.0, %v1871
        %v1873 = vmul.f32 %v1870, %v1872
        %v1874 = vadd.f32 %v1870, %v1873
        %vm1875 = vweird.f32 %v1869
        %vm1876 = vweird.f32 %v1870
        %vm1877 = vmor %vm1875, %vm1876
        %v1878 = vsel %vm1877, %v1870, %v1874
        %v1879 = vand.u32 2147483647, %v1869
        %vm1880 = vcmp.eq.f32.partialorder %v1879, 8.507059e+37
        %v1881 = vand.u32 %v1869, 2147483648
        %v1882 = vor.u32 1.1754944e-38, %v1881
        %v1883 = vsel %vm1880, %v1882, %v1878
        %v1884 = vmul.f32 %v1807, %v1883
        %v1885 = vmul.f32 %v1884, %v1570
        %1887 = vrot.lane.b32.xlu0 %v1847, 64
        %v1888 = vpop.permute.xlu0 %1887
        %1890 = vrot.lane.b32.xlu0 %v1885, 64
        %v1891 = vpop.permute.xlu0 %1890
        %v1892 = vsel %vm1337, %v1888, 0
        %v1894 = vsel %vm1337, %v1891, 0
        %1896 = vmatpush.xpose.msra.mxu0 0.0
        %1897 = vmatpush.xpose.msra.mxu0 0.0
        %1898 = vmatpush.xpose.msra.mxu0 0.0
        %1899 = vmatpush.xpose.msra.mxu0 0.0
        %1900 = vmatpush.xpose.msra.mxu0 0.0
        %1901 = vmatpush.xpose.msra.mxu0 0.0
        %1902 = vmatpush.xpose.msra.mxu0 0.0
        %1903 = vmatpush.xpose.msra.mxu0 0.0
        %1904 = vmatpush.xpose.msra.mxu0 0.0
        %1905 = vmatpush.xpose.msra.mxu0 0.0
        %1906 = vmatpush.xpose.msra.mxu0 0.0
        %1907 = vmatpush.xpose.msra.mxu0 0.0
        %1908 = vmatpush.xpose.msra.mxu0 0.0
        %1909 = vmatpush.xpose.msra.mxu0 0.0
        %1910 = vmatpush.xpose.msra.mxu0 0.0
        %1911 = vmatpush.xpose.msra.mxu0 %v1894
        %1912 = vmatmul.f32.gmra.mxu0 %v1892
        %v1913 = vpop.f32.mrf.mxu0
        %v1914 = vadd.f32 0.0, %v1913
        %1915 = vdwg.mxu0
        %v1916 = vsel %vm1438, %v1914, -inf
        %1917 = vmax.xlane.f32.xlu0 %v1916
        %v1918 = vpop.xlane.xlu0 %1917
        %v1919 = vsub.f32 %v1914, %v1918
        %v1920 = vmul.f32 %v1919, 1.442695
        %v1921 = vpow.pop %v1920
        %v1922 = vsel %vm1438, %v1921, 0.0
        %1923 = vadd.xlane.f32.xlu0 %v1922
        %v1924 = vpop.xlane.xlu0 %1923
        %v1925 = vrcp.pop %v1924
        %v1926 = vmul.f32 %v1924, %v1925
        %v1927 = vsub.f32 1.0, %v1926
        %v1928 = vmul.f32 %v1925, %v1927
        %v1929 = vadd.f32 %v1925, %v1928
        %vm1930 = vweird.f32 %v1924
        %vm1931 = vweird.f32 %v1925
        %vm1932 = vmor %vm1930, %vm1931
        %v1933 = vsel %vm1932, %v1925, %v1929
        %v1934 = vand.u32 2147483647, %v1924
        %vm1935 = vcmp.eq.f32.partialorder %v1934, 8.507059e+37
        %v1936 = vand.u32 %v1924, 2147483648
        %v1937 = vor.u32 1.1754944e-38, %v1936
        %v1938 = vsel %vm1935, %v1937, %v1933
        %v1939 = vmul.f32 %v1921, %v1938
        %1941 = vrot.lane.b32.xlu0 %v1808, 64
        %v1942 = vpop.permute.xlu0 %1941
        %v1945 = vsel %vm1438, %v1939, 0
        %1947 = vmatpush.msra.mxu0 0.0
        %1948 = vmatpush.msra.mxu0 0.0
        %1949 = vmatpush.msra.mxu0 0.0
        %1950 = vmatpush.msra.mxu0 0.0
        %1951 = vmatpush.msra.mxu0 0.0
        %1952 = vmatpush.msra.mxu0 0.0
        %1953 = vmatpush.msra.mxu0 0.0
        %1954 = vmatpush.msra.mxu0 0.0
        %1955 = vmatpush.msra.mxu0 0.0
        %1956 = vmatpush.msra.mxu0 0.0
        %1957 = vmatpush.msra.mxu0 0.0
        %1958 = vmatpush.msra.mxu0 0.0
        %1959 = vmatpush.msra.mxu0 0.0
        %1960 = vmatpush.msra.mxu0 0.0
        %1961 = vmatpush.msra.mxu0 0.0
        %1962 = vmatpush.msra.mxu0 %v1942
        %1963 = vmatmul.f32.gmra.mxu0 %v1945
        %v1964 = vpop.f32.mrf.mxu0
        %v1965 = vadd.f32 0.0, %v1964
        %1966 = vdwg.mxu0
        %1968 = vrot.lane.b32.xlu0 %v1965, 64
        %v1969 = vpop.permute.xlu0 %1968
        %1971 = vst.msk [vmem:[#allocation4 + $0x8] sm:$0xff] %vm1658, %v1969
        %v1972 = vld [vmem:[#allocation4] sm:$0xff]
        %v1973 = vld [vmem:[#allocation4 + $0x8] sm:$0xff]
        %v1974 = vpack.c.bf16 %v1973, %v1972
        %v1975 = vld [vmem:[%s850] sm:$0xf]
        %v1976 = vld [vmem:[%s850 + $0x4] sm:$0xf]
        %v1977 = vld [vmem:[%s850 + $0x8] sm:$0xf]
        %v1978 = vld [vmem:[%s850 + $0xc] sm:$0xf]
        %v1979 = vld [vmem:[%s850 + $0x10] sm:$0xf]
        %v1980 = vld [vmem:[%s850 + $0x14] sm:$0xf]
        %v1981 = vld [vmem:[%s850 + $0x18] sm:$0xf]
        %v1982 = vld [vmem:[%s850 + $0x1c] sm:$0xf]
        %v1983 = vld [vmem:[%s850 + $0x20] sm:$0xf]
        %v1984 = vld [vmem:[%s850 + $0x24] sm:$0xf]
        %v1985 = vld [vmem:[%s850 + $0x28] sm:$0xf]
        %v1986 = vld [vmem:[%s850 + $0x2c] sm:$0xf]
        %v1987 = vld [vmem:[%s850 + $0x30] sm:$0xf]
        %v1988 = vld [vmem:[%s850 + $0x34] sm:$0xf]
        %v1989 = vld [vmem:[%s850 + $0x38] sm:$0xf]
        %v1990 = vld [vmem:[%s850 + $0x3c] sm:$0xf]
        %v1991 = vld [vmem:[%s859] sm:$0x1]
        %v1993 = vperm.slane %v1991, 0
        %v2011 = vunpack.c.l.b16 %v1975
        %v2012 = vunpack.c.l.b16 %v1976
        %v2013 = vunpack.c.l.b16 %v1977
        %v2014 = vunpack.c.l.b16 %v1978
        %v2015 = vunpack.c.l.b16 %v1979
        %v2016 = vunpack.c.l.b16 %v1980
        %v2017 = vunpack.c.l.b16 %v1981
        %v2018 = vunpack.c.l.b16 %v1982
        %v2019 = vunpack.c.l.b16 %v1983
        %v2020 = vunpack.c.l.b16 %v1984
        %v2021 = vunpack.c.l.b16 %v1985
        %v2022 = vunpack.c.l.b16 %v1986
        %v2023 = vunpack.c.l.b16 %v1987
        %v2024 = vunpack.c.l.b16 %v1988
        %v2025 = vunpack.c.l.b16 %v1989
        %v2026 = vunpack.c.l.b16 %v1990
        %v2027 = vpack.c.b16 %v2012, %v2011
        %v2028 = vpack.c.b16 %v2014, %v2013
        %v2029 = vpack.c.b16 %v2016, %v2015
        %v2030 = vpack.c.b16 %v2018, %v2017
        %v2031 = vpack.c.b16 %v2020, %v2019
        %v2032 = vpack.c.b16 %v2022, %v2021
        %v2033 = vpack.c.b16 %v2024, %v2023
        %v2034 = vpack.c.b16 %v2026, %v2025
        %2043 = vmatpush.bf16.msra.mxu0 %v2034
        %2044 = vmatpush.bf16.msra.mxu0 %v2033
        %2045 = vmatpush.bf16.msra.mxu0 %v2032
        %2046 = vmatpush.bf16.msra.mxu0 %v2031
        %2047 = vmatpush.bf16.msra.mxu0 %v2030
        %2048 = vmatpush.bf16.msra.mxu0 %v2029
        %2049 = vmatpush.bf16.msra.mxu0 %v2028
        %2050 = vmatpush.bf16.msra.mxu0 %v2027
        %2051 = vmatmul.bf16.gmra.mxu0 %v1974
        %v2052 = vpop.f32.mrf.mxu0
        %v2053 = vadd.f32 %v1993, %v2052
        %v2054 = vpop.f32.mrf.mxu0
        %v2055 = vadd.f32 %v1993, %v2054
        %2056 = vdwg.mxu0
        %v2057 = vadd.f32 %v1061, %v2053
        %v2058 = vadd.f32 %v1062, %v2055
        %v2059 = vld [vmem:[%s868] sm:$0x1]
        %v2060 = vld [vmem:[%s877] sm:$0x1]
        %2061 = vadd.xlane.f32.xlu0 %v2057
        %v2062 = vpop.xlane.xlu0 %2061
        %2063 = vadd.xlane.f32.xlu0 %v2058
        %v2064 = vpop.xlane.xlu0 %2063
        %v2065 = vmul.f32 %v2062, %v1075
        %v2066 = vmul.f32 %v2064, %v1075
        %v2067 = vsub.f32 %v2057, %v2065
        %v2068 = vsub.f32 %v2058, %v2066
        %v2069 = vmul.f32 %v2067, %v2067
        %v2070 = vmul.f32 %v2068, %v2068
        %2071 = vadd.xlane.f32.xlu0 %v2069
        %v2072 = vpop.xlane.xlu0 %2071
        %2073 = vadd.xlane.f32.xlu0 %v2070
        %v2074 = vpop.xlane.xlu0 %2073
        %v2075 = vmul.f32 %v2072, %v1075
        %v2076 = vmul.f32 %v2074, %v1075
        %v2077 = vadd.f32 %v2075, 1e-05
        %v2078 = vadd.f32 %v2076, 1e-05
        %v2079 = vrsqrt.pop %v2077
        %v2080 = vmul.f32 %v2079, %v2077
        %v2081 = vmul.f32 %v2080, %v2079
        %v2082 = vmul.f32 0.5, %v2081
        %v2083 = vsub.f32 1.5, %v2082
        %v2084 = vmul.f32 %v2079, %v2083
        %vm2085 = vweird.f32 %v2077
        %vm2086 = vweird.f32 %v2079
        %vm2087 = vmor %vm2085, %vm2086
        %v2088 = vsel %vm2087, %v2079, %v2084
        %v2089 = vrsqrt.pop %v2078
        %v2090 = vmul.f32 %v2089, %v2078
        %v2091 = vmul.f32 %v2090, %v2089
        %v2092 = vmul.f32 0.5, %v2091
        %v2093 = vsub.f32 1.5, %v2092
        %v2094 = vmul.f32 %v2089, %v2093
        %vm2095 = vweird.f32 %v2078
        %vm2096 = vweird.f32 %v2089
        %vm2097 = vmor %vm2095, %vm2096
        %v2098 = vsel %vm2097, %v2089, %v2094
        %v2099 = vmul.f32 %v2067, %v2088
        %v2100 = vmul.f32 %v2068, %v2098
        %v2102 = vperm.slane %v2059, 0
        %v2104 = vmul.f32 %v2099, %v2102
        %v2105 = vmul.f32 %v2100, %v2102
        %v2107 = vperm.slane %v2060, 0
        %v2109 = vadd.f32 %v2104, %v2107
        %v2110 = vadd.f32 %v2105, %v2107
        %v2111 = vpack.c.bf16 %v2110, %v2109
        %v2112 = vld [vmem:[%s887] sm:$0xff]
        %v2113 = vld [vmem:[%s887 + $0x8] sm:$0xff]
        %v2114 = vld [vmem:[%s887 + $0x10] sm:$0xff]
        %v2115 = vld [vmem:[%s887 + $0x18] sm:$0xff]
        %v2116 = vld [vmem:[%s887 + $0x20] sm:$0xff]
        %v2117 = vld [vmem:[%s887 + $0x28] sm:$0xff]
        %v2118 = vld [vmem:[%s887 + $0x30] sm:$0xff]
        %v2119 = vld [vmem:[%s887 + $0x38] sm:$0xff]
        %v2120 = vld [vmem:[%s887 + $0x40] sm:$0xff]
        %v2121 = vld [vmem:[%s887 + $0x48] sm:$0xff]
        %v2122 = vld [vmem:[%s887 + $0x50] sm:$0xff]
        %v2123 = vld [vmem:[%s887 + $0x58] sm:$0xff]
        %v2124 = vld [vmem:[%s887 + $0x60] sm:$0xff]
        %v2125 = vld [vmem:[%s887 + $0x68] sm:$0xff]
        %v2126 = vld [vmem:[%s887 + $0x70] sm:$0xff]
        %v2127 = vld [vmem:[%s887 + $0x78] sm:$0xff]
        %v2128 = vld [vmem:[%s887 + $0x80] sm:$0xff]
        %v2129 = vld [vmem:[%s887 + $0x88] sm:$0xff]
        %v2130 = vld [vmem:[%s887 + $0x90] sm:$0xff]
        %v2131 = vld [vmem:[%s887 + $0x98] sm:$0xff]
        %v2132 = vld [vmem:[%s887 + $0xa0] sm:$0xff]
        %v2133 = vld [vmem:[%s887 + $0xa8] sm:$0xff]
        %v2134 = vld [vmem:[%s887 + $0xb0] sm:$0xff]
        %v2135 = vld [vmem:[%s887 + $0xb8] sm:$0xff]
        %v2136 = vld [vmem:[%s887 + $0xc0] sm:$0xff]
        %v2137 = vld [vmem:[%s887 + $0xc8] sm:$0xff]
        %v2138 = vld [vmem:[%s887 + $0xd0] sm:$0xff]
        %v2139 = vld [vmem:[%s887 + $0xd8] sm:$0xff]
        %v2140 = vld [vmem:[%s887 + $0xe0] sm:$0xff]
        %v2141 = vld [vmem:[%s887 + $0xe8] sm:$0xff]
        %v2142 = vld [vmem:[%s887 + $0xf0] sm:$0xff]
        %v2143 = vld [vmem:[%s887 + $0xf8] sm:$0xff]
        %v2144 = vld [vmem:[%s1005] sm:$0xf]
        %v2146 = vperm.slane %v2144, 0
        %v2147 = vperm.slane %v2144, 1
        %v2148 = vperm.slane %v2144, 2
        %v2149 = vperm.slane %v2144, 3
        %v2186 = vunpack.c.l.b16 %v2112
        %v2187 = vunpack.c.h.b16 %v2112
        %v2188 = vunpack.c.l.b16 %v2113
        %v2189 = vunpack.c.h.b16 %v2113
        %v2190 = vunpack.c.l.b16 %v2114
        %v2191 = vunpack.c.h.b16 %v2114
        %v2192 = vunpack.c.l.b16 %v2115
        %v2193 = vunpack.c.h.b16 %v2115
        %v2194 = vunpack.c.l.b16 %v2116
        %v2195 = vunpack.c.h.b16 %v2116
        %v2196 = vunpack.c.l.b16 %v2117
        %v2197 = vunpack.c.h.b16 %v2117
        %v2198 = vunpack.c.l.b16 %v2118
        %v2199 = vunpack.c.h.b16 %v2118
        %v2200 = vunpack.c.l.b16 %v2119
        %v2201 = vunpack.c.h.b16 %v2119
        %v2202 = vunpack.c.l.b16 %v2120
        %v2203 = vunpack.c.h.b16 %v2120
        %v2204 = vunpack.c.l.b16 %v2121
        %v2205 = vunpack.c.h.b16 %v2121
        %v2206 = vunpack.c.l.b16 %v2122
        %v2207 = vunpack.c.h.b16 %v2122
        %v2208 = vunpack.c.l.b16 %v2123
        %v2209 = vunpack.c.h.b16 %v2123
        %v2210 = vunpack.c.l.b16 %v2124
        %v2211 = vunpack.c.h.b16 %v2124
        %v2212 = vunpack.c.l.b16 %v2125
        %v2213 = vunpack.c.h.b16 %v2125
        %v2214 = vunpack.c.l.b16 %v2126
        %v2215 = vunpack.c.h.b16 %v2126
        %v2216 = vunpack.c.l.b16 %v2127
        %v2217 = vunpack.c.h.b16 %v2127
        %v2218 = vunpack.c.l.b16 %v2128
        %v2219 = vunpack.c.h.b16 %v2128
        %v2220 = vunpack.c.l.b16 %v2129
        %v2221 = vunpack.c.h.b16 %v2129
        %v2222 = vunpack.c.l.b16 %v2130
        %v2223 = vunpack.c.h.b16 %v2130
        %v2224 = vunpack.c.l.b16 %v2131
        %v2225 = vunpack.c.h.b16 %v2131
        %v2226 = vunpack.c.l.b16 %v2132
        %v2227 = vunpack.c.h.b16 %v2132
        %v2228 = vunpack.c.l.b16 %v2133
        %v2229 = vunpack.c.h.b16 %v2133
        %v2230 = vunpack.c.l.b16 %v2134
        %v2231 = vunpack.c.h.b16 %v2134
        %v2232 = vunpack.c.l.b16 %v2135
        %v2233 = vunpack.c.h.b16 %v2135
        %v2234 = vunpack.c.l.b16 %v2136
        %v2235 = vunpack.c.h.b16 %v2136
        %v2236 = vunpack.c.l.b16 %v2137
        %v2237 = vunpack.c.h.b16 %v2137
        %v2238 = vunpack.c.l.b16 %v2138
        %v2239 = vunpack.c.h.b16 %v2138
        %v2240 = vunpack.c.l.b16 %v2139
        %v2241 = vunpack.c.h.b16 %v2139
        %v2242 = vunpack.c.l.b16 %v2140
        %v2243 = vunpack.c.h.b16 %v2140
        %v2244 = vunpack.c.l.b16 %v2141
        %v2245 = vunpack.c.h.b16 %v2141
        %v2246 = vunpack.c.l.b16 %v2142
        %v2247 = vunpack.c.h.b16 %v2142
        %v2248 = vunpack.c.l.b16 %v2143
        %v2249 = vunpack.c.h.b16 %v2143
        %v2250 = vpack.c.b16 %v2190, %v2186
        %v2251 = vpack.c.b16 %v2191, %v2187
        %v2252 = vpack.c.b16 %v2192, %v2188
        %v2253 = vpack.c.b16 %v2193, %v2189
        %v2254 = vpack.c.b16 %v2198, %v2194
        %v2255 = vpack.c.b16 %v2199, %v2195
        %v2256 = vpack.c.b16 %v2200, %v2196
        %v2257 = vpack.c.b16 %v2201, %v2197
        %v2258 = vpack.c.b16 %v2206, %v2202
        %v2259 = vpack.c.b16 %v2207, %v2203
        %v2260 = vpack.c.b16 %v2208, %v2204
        %v2261 = vpack.c.b16 %v2209, %v2205
        %v2262 = vpack.c.b16 %v2214, %v2210
        %v2263 = vpack.c.b16 %v2215, %v2211
        %v2264 = vpack.c.b16 %v2216, %v2212
        %v2265 = vpack.c.b16 %v2217, %v2213
        %v2266 = vpack.c.b16 %v2222, %v2218
        %v2267 = vpack.c.b16 %v2223, %v2219
        %v2268 = vpack.c.b16 %v2224, %v2220
        %v2269 = vpack.c.b16 %v2225, %v2221
        %v2270 = vpack.c.b16 %v2230, %v2226
        %v2271 = vpack.c.b16 %v2231, %v2227
        %v2272 = vpack.c.b16 %v2232, %v2228
        %v2273 = vpack.c.b16 %v2233, %v2229
        %v2274 = vpack.c.b16 %v2238, %v2234
        %v2275 = vpack.c.b16 %v2239, %v2235
        %v2276 = vpack.c.b16 %v2240, %v2236
        %v2277 = vpack.c.b16 %v2241, %v2237
        %v2278 = vpack.c.b16 %v2246, %v2242
        %v2279 = vpack.c.b16 %v2247, %v2243
        %v2280 = vpack.c.b16 %v2248, %v2244
        %v2281 = vpack.c.b16 %v2249, %v2245
        %2314 = vmatpush.bf16.msra.mxu0 %v2278
        %2315 = vmatpush.bf16.msra.mxu0 %v2274
        %2316 = vmatpush.bf16.msra.mxu0 %v2270
        %2317 = vmatpush.bf16.msra.mxu0 %v2266
        %2318 = vmatpush.bf16.msra.mxu0 %v2262
        %2319 = vmatpush.bf16.msra.mxu0 %v2258
        %2320 = vmatpush.bf16.msra.mxu0 %v2254
        %2321 = vmatpush.bf16.msra.mxu0 %v2250
        %2322 = vmatmul.bf16.gmra.mxu0 %v2111
        %v2323 = vpop.f32.mrf.mxu0
        %v2324 = vadd.f32 %v2146, %v2323
        %v2325 = vpop.f32.mrf.mxu0
        %v2326 = vadd.f32 %v2146, %v2325
        %2327 = vdwg.mxu0
        %2328 = vmatpush.bf16.msra.mxu0 %v2279
        %2329 = vmatpush.bf16.msra.mxu0 %v2275
        %2330 = vmatpush.bf16.msra.mxu0 %v2271
        %2331 = vmatpush.bf16.msra.mxu0 %v2267
        %2332 = vmatpush.bf16.msra.mxu0 %v2263
        %2333 = vmatpush.bf16.msra.mxu0 %v2259
        %2334 = vmatpush.bf16.msra.mxu0 %v2255
        %2335 = vmatpush.bf16.msra.mxu0 %v2251
        %2336 = vmatmul.bf16.gmra.mxu0 %v2111
        %v2337 = vpop.f32.mrf.mxu0
        %v2338 = vadd.f32 %v2147, %v2337
        %v2339 = vpop.f32.mrf.mxu0
        %v2340 = vadd.f32 %v2147, %v2339
        %2341 = vdwg.mxu0
        %2342 = vmatpush.bf16.msra.mxu0 %v2280
        %2343 = vmatpush.bf16.msra.mxu0 %v2276
        %2344 = vmatpush.bf16.msra.mxu0 %v2272
        %2345 = vmatpush.bf16.msra.mxu0 %v2268
        %2346 = vmatpush.bf16.msra.mxu0 %v2264
        %2347 = vmatpush.bf16.msra.mxu0 %v2260
        %2348 = vmatpush.bf16.msra.mxu0 %v2256
        %2349 = vmatpush.bf16.msra.mxu0 %v2252
        %2350 = vmatmul.bf16.gmra.mxu0 %v2111
        %v2351 = vpop.f32.mrf.mxu0
        %v2352 = vadd.f32 %v2148, %v2351
        %v2353 = vpop.f32.mrf.mxu0
        %v2354 = vadd.f32 %v2148, %v2353
        %2355 = vdwg.mxu0
        %2356 = vmatpush.bf16.msra.mxu0 %v2281
        %2357 = vmatpush.bf16.msra.mxu0 %v2277
        %2358 = vmatpush.bf16.msra.mxu0 %v2273
        %2359 = vmatpush.bf16.msra.mxu0 %v2269
        %2360 = vmatpush.bf16.msra.mxu0 %v2265
        %2361 = vmatpush.bf16.msra.mxu0 %v2261
        %2362 = vmatpush.bf16.msra.mxu0 %v2257
        %2363 = vmatpush.bf16.msra.mxu0 %v2253
        %2364 = vmatmul.bf16.gmra.mxu0 %v2111
        %v2365 = vpop.f32.mrf.mxu0
        %v2366 = vadd.f32 %v2149, %v2365
        %v2367 = vpop.f32.mrf.mxu0
        %v2368 = vadd.f32 %v2149, %v2367
        %2369 = vdwg.mxu0
        %v2370 = vmul.f32 %v2324, 0.5
        %v2371 = vmul.f32 %v2338, 0.5
        %v2372 = vmul.f32 %v2352, 0.5
        %v2373 = vmul.f32 %v2366, 0.5
        %v2374 = vmul.f32 %v2326, 0.5
        %v2375 = vmul.f32 %v2340, 0.5
        %v2376 = vmul.f32 %v2354, 0.5
        %v2377 = vmul.f32 %v2368, 0.5
        %v2378 = vmul.f32 %v2324, 0.70710677
        %v2379 = vmul.f32 %v2338, 0.70710677
        %v2380 = vmul.f32 %v2352, 0.70710677
        %v2381 = vmul.f32 %v2366, 0.70710677
        %v2382 = vmul.f32 %v2326, 0.70710677
        %v2383 = vmul.f32 %v2340, 0.70710677
        %v2384 = vmul.f32 %v2354, 0.70710677
        %v2385 = vmul.f32 %v2368, 0.70710677
        %vm2386 = vcmp.ge.f32.partialorder %v2378, 0.0
        %vm2387 = vcmp.ge.f32.partialorder %v2379, 0.0
        %vm2388 = vcmp.ge.f32.partialorder %v2380, 0.0
        %vm2389 = vcmp.ge.f32.partialorder %v2381, 0.0
        %vm2390 = vcmp.ge.f32.partialorder %v2382, 0.0
        %vm2391 = vcmp.ge.f32.partialorder %v2383, 0.0
        %vm2392 = vcmp.ge.f32.partialorder %v2384, 0.0
        %vm2393 = vcmp.ge.f32.partialorder %v2385, 0.0
        %v2394 = vsel %vm2386, 1.0, -1.0
        %v2395 = vsel %vm2387, 1.0, -1.0
        %v2396 = vsel %vm2388, 1.0, -1.0
        %v2397 = vsel %vm2389, 1.0, -1.0
        %v2398 = vsel %vm2390, 1.0, -1.0
        %v2399 = vsel %vm2391, 1.0, -1.0
        %v2400 = vsel %vm2392, 1.0, -1.0
        %v2401 = vsel %vm2393, 1.0, -1.0
        %v2402 = vand.u32 2147483647, %v2378
        %v2403 = vand.u32 2147483647, %v2379
        %v2404 = vand.u32 2147483647, %v2380
        %v2405 = vand.u32 2147483647, %v2381
        %v2406 = vand.u32 2147483647, %v2382
        %v2407 = vand.u32 2147483647, %v2383
        %v2408 = vand.u32 2147483647, %v2384
        %v2409 = vand.u32 2147483647, %v2385
        %v2410 = vmul.f32 %v2402, 0.3275911
        %v2411 = vmul.f32 %v2403, 0.3275911
        %v2412 = vmul.f32 %v2404, 0.3275911
        %v2413 = vmul.f32 %v2405, 0.3275911
        %v2414 = vmul.f32 %v2406, 0.3275911
        %v2415 = vmul.f32 %v2407, 0.3275911
        %v2416 = vmul.f32 %v2408, 0.3275911
        %v2417 = vmul.f32 %v2409, 0.3275911
        %v2418 = vadd.f32 %v2410, 1.0
        %v2419 = vadd.f32 %v2411, 1.0
        %v2420 = vadd.f32 %v2412, 1.0
        %v2421 = vadd.f32 %v2413, 1.0
        %v2422 = vadd.f32 %v2414, 1.0
        %v2423 = vadd.f32 %v2415, 1.0
        %v2424 = vadd.f32 %v2416, 1.0
        %v2425 = vadd.f32 %v2417, 1.0
        %v2426 = vrcp.pop %v2418
        %v2427 = vmul.f32 %v2418, %v2426
        %v2428 = vsub.f32 1.0, %v2427
        %v2429 = vmul.f32 %v2426, %v2428
        %v2430 = vadd.f32 %v2426, %v2429
        %vm2431 = vweird.f32 %v2418
        %vm2432 = vweird.f32 %v2426
        %vm2433 = vmor %vm2431, %vm2432
        %v2434 = vsel %vm2433, %v2426, %v2430
        %v2435 = vand.u32 2147483647, %v2418
        %vm2436 = vcmp.eq.f32.partialorder %v2435, 8.507059e+37
        %v2437 = vand.u32 %v2418, 2147483648
        %v2438 = vor.u32 1.1754944e-38, %v2437
        %v2439 = vsel %vm2436, %v2438, %v2434
        %v2440 = vmul.f32 1.0, %v2439
        %v2441 = vrcp.pop %v2419
        %v2442 = vmul.f32 %v2419, %v2441
        %v2443 = vsub.f32 1.0, %v2442
        %v2444 = vmul.f32 %v2441, %v2443
        %v2445 = vadd.f32 %v2441, %v2444
        %vm2446 = vweird.f32 %v2419
        %vm2447 = vweird.f32 %v2441
        %vm2448 = vmor %vm2446, %vm2447
        %v2449 = vsel %vm2448, %v2441, %v2445
        %v2450 = vand.u32 2147483647, %v2419
        %vm2451 = vcmp.eq.f32.partialorder %v2450, 8.507059e+37
        %v2452 = vand.u32 %v2419, 2147483648
        %v2453 = vor.u32 1.1754944e-38, %v2452
        %v2454 = vsel %vm2451, %v2453, %v2449
        %v2455 = vmul.f32 1.0, %v2454
        %v2456 = vrcp.pop %v2420
        %v2457 = vmul.f32 %v2420, %v2456
        %v2458 = vsub.f32 1.0, %v2457
        %v2459 = vmul.f32 %v2456, %v2458
        %v2460 = vadd.f32 %v2456, %v2459
        %vm2461 = vweird.f32 %v2420
        %vm2462 = vweird.f32 %v2456
        %vm2463 = vmor %vm2461, %vm2462
        %v2464 = vsel %vm2463, %v2456, %v2460
        %v2465 = vand.u32 2147483647, %v2420
        %vm2466 = vcmp.eq.f32.partialorder %v2465, 8.507059e+37
        %v2467 = vand.u32 %v2420, 2147483648
        %v2468 = vor.u32 1.1754944e-38, %v2467
        %v2469 = vsel %vm2466, %v2468, %v2464
        %v2470 = vmul.f32 1.0, %v2469
        %v2471 = vrcp.pop %v2421
        %v2472 = vmul.f32 %v2421, %v2471
        %v2473 = vsub.f32 1.0, %v2472
        %v2474 = vmul.f32 %v2471, %v2473
        %v2475 = vadd.f32 %v2471, %v2474
        %vm2476 = vweird.f32 %v2421
        %vm2477 = vweird.f32 %v2471
        %vm2478 = vmor %vm2476, %vm2477
        %v2479 = vsel %vm2478, %v2471, %v2475
        %v2480 = vand.u32 2147483647, %v2421
        %vm2481 = vcmp.eq.f32.partialorder %v2480, 8.507059e+37
        %v2482 = vand.u32 %v2421, 2147483648
        %v2483 = vor.u32 1.1754944e-38, %v2482
        %v2484 = vsel %vm2481, %v2483, %v2479
        %v2485 = vmul.f32 1.0, %v2484
        %v2486 = vrcp.pop %v2422
        %v2487 = vmul.f32 %v2422, %v2486
        %v2488 = vsub.f32 1.0, %v2487
        %v2489 = vmul.f32 %v2486, %v2488
        %v2490 = vadd.f32 %v2486, %v2489
        %vm2491 = vweird.f32 %v2422
        %vm2492 = vweird.f32 %v2486
        %vm2493 = vmor %vm2491, %vm2492
        %v2494 = vsel %vm2493, %v2486, %v2490
        %v2495 = vand.u32 2147483647, %v2422
        %vm2496 = vcmp.eq.f32.partialorder %v2495, 8.507059e+37
        %v2497 = vand.u32 %v2422, 2147483648
        %v2498 = vor.u32 1.1754944e-38, %v2497
        %v2499 = vsel %vm2496, %v2498, %v2494
        %v2500 = vmul.f32 1.0, %v2499
        %v2501 = vrcp.pop %v2423
        %v2502 = vmul.f32 %v2423, %v2501
        %v2503 = vsub.f32 1.0, %v2502
        %v2504 = vmul.f32 %v2501, %v2503
        %v2505 = vadd.f32 %v2501, %v2504
        %vm2506 = vweird.f32 %v2423
        %vm2507 = vweird.f32 %v2501
        %vm2508 = vmor %vm2506, %vm2507
        %v2509 = vsel %vm2508, %v2501, %v2505
        %v2510 = vand.u32 2147483647, %v2423
        %vm2511 = vcmp.eq.f32.partialorder %v2510, 8.507059e+37
        %v2512 = vand.u32 %v2423, 2147483648
        %v2513 = vor.u32 1.1754944e-38, %v2512
        %v2514 = vsel %vm2511, %v2513, %v2509
        %v2515 = vmul.f32 1.0, %v2514
        %v2516 = vrcp.pop %v2424
        %v2517 = vmul.f32 %v2424, %v2516
        %v2518 = vsub.f32 1.0, %v2517
        %v2519 = vmul.f32 %v2516, %v2518
        %v2520 = vadd.f32 %v2516, %v2519
        %vm2521 = vweird.f32 %v2424
        %vm2522 = vweird.f32 %v2516
        %vm2523 = vmor %vm2521, %vm2522
        %v2524 = vsel %vm2523, %v2516, %v2520
        %v2525 = vand.u32 2147483647, %v2424
        %vm2526 = vcmp.eq.f32.partialorder %v2525, 8.507059e+37
        %v2527 = vand.u32 %v2424, 2147483648
        %v2528 = vor.u32 1.1754944e-38, %v2527
        %v2529 = vsel %vm2526, %v2528, %v2524
        %v2530 = vmul.f32 1.0, %v2529
        %v2531 = vrcp.pop %v2425
        %v2532 = vmul.f32 %v2425, %v2531
        %v2533 = vsub.f32 1.0, %v2532
        %v2534 = vmul.f32 %v2531, %v2533
        %v2535 = vadd.f32 %v2531, %v2534
        %vm2536 = vweird.f32 %v2425
        %vm2537 = vweird.f32 %v2531
        %vm2538 = vmor %vm2536, %vm2537
        %v2539 = vsel %vm2538, %v2531, %v2535
        %v2540 = vand.u32 2147483647, %v2425
        %vm2541 = vcmp.eq.f32.partialorder %v2540, 8.507059e+37
        %v2542 = vand.u32 %v2425, 2147483648
        %v2543 = vor.u32 1.1754944e-38, %v2542
        %v2544 = vsel %vm2541, %v2543, %v2539
        %v2545 = vmul.f32 1.0, %v2544
        %v2546 = vmul.f32 %v2440, 1.0614054
        %v2547 = vmul.f32 %v2455, 1.0614054
        %v2548 = vmul.f32 %v2470, 1.0614054
        %v2549 = vmul.f32 %v2485, 1.0614054
        %v2550 = vmul.f32 %v2500, 1.0614054
        %v2551 = vmul.f32 %v2515, 1.0614054
        %v2552 = vmul.f32 %v2530, 1.0614054
        %v2553 = vmul.f32 %v2545, 1.0614054
        %v2554 = vadd.f32 %v2546, -1.4531521
        %v2555 = vadd.f32 %v2547, -1.4531521
        %v2556 = vadd.f32 %v2548, -1.4531521
        %v2557 = vadd.f32 %v2549, -1.4531521
        %v2558 = vadd.f32 %v2550, -1.4531521
        %v2559 = vadd.f32 %v2551, -1.4531521
        %v2560 = vadd.f32 %v2552, -1.4531521
        %v2561 = vadd.f32 %v2553, -1.4531521
        %v2562 = vmul.f32 %v2554, %v2440
        %v2563 = vmul.f32 %v2555, %v2455
        %v2564 = vmul.f32 %v2556, %v2470
        %v2565 = vmul.f32 %v2557, %v2485
        %v2566 = vmul.f32 %v2558, %v2500
        %v2567 = vmul.f32 %v2559, %v2515
        %v2568 = vmul.f32 %v2560, %v2530
        %v2569 = vmul.f32 %v2561, %v2545
        %v2570 = vadd.f32 %v2562, 1.4214138
        %v2571 = vadd.f32 %v2563, 1.4214138
        %v2572 = vadd.f32 %v2564, 1.4214138
        %v2573 = vadd.f32 %v2565, 1.4214138
        %v2574 = vadd.f32 %v2566, 1.4214138
        %v2575 = vadd.f32 %v2567, 1.4214138
        %v2576 = vadd.f32 %v2568, 1.4214138
        %v2577 = vadd.f32 %v2569, 1.4214138
        %v2578 = vmul.f32 %v2570, %v2440
        %v2579 = vmul.f32 %v2571, %v2455
        %v2580 = vmul.f32 %v2572, %v2470
        %v2581 = vmul.f32 %v2573, %v2485
        %v2582 = vmul.f32 %v2574, %v2500
        %v2583 = vmul.f32 %v2575, %v2515
        %v2584 = vmul.f32 %v2576, %v2530
        %v2585 = vmul.f32 %v2577, %v2545
        %v2586 = vadd.f32 %v2578, -0.28449672
        %v2587 = vadd.f32 %v2579, -0.28449672
        %v2588 = vadd.f32 %v2580, -0.28449672
        %v2589 = vadd.f32 %v2581, -0.28449672
        %v2590 = vadd.f32 %v2582, -0.28449672
        %v2591 = vadd.f32 %v2583, -0.28449672
        %v2592 = vadd.f32 %v2584, -0.28449672
        %v2593 = vadd.f32 %v2585, -0.28449672
        %v2594 = vmul.f32 %v2586, %v2440
        %v2595 = vmul.f32 %v2587, %v2455
        %v2596 = vmul.f32 %v2588, %v2470
        %v2597 = vmul.f32 %v2589, %v2485
        %v2598 = vmul.f32 %v2590, %v2500
        %v2599 = vmul.f32 %v2591, %v2515
        %v2600 = vmul.f32 %v2592, %v2530
        %v2601 = vmul.f32 %v2593, %v2545
        %v2602 = vadd.f32 %v2594, 0.2548296
        %v2603 = vadd.f32 %v2595, 0.2548296
        %v2604 = vadd.f32 %v2596, 0.2548296
        %v2605 = vadd.f32 %v2597, 0.2548296
        %v2606 = vadd.f32 %v2598, 0.2548296
        %v2607 = vadd.f32 %v2599, 0.2548296
        %v2608 = vadd.f32 %v2600, 0.2548296
        %v2609 = vadd.f32 %v2601, 0.2548296
        %v2610 = vmul.f32 %v2602, %v2440
        %v2611 = vmul.f32 %v2603, %v2455
        %v2612 = vmul.f32 %v2604, %v2470
        %v2613 = vmul.f32 %v2605, %v2485
        %v2614 = vmul.f32 %v2606, %v2500
        %v2615 = vmul.f32 %v2607, %v2515
        %v2616 = vmul.f32 %v2608, %v2530
        %v2617 = vmul.f32 %v2609, %v2545
        %v2618 = vsub.f32 0.0, %v2402
        %v2619 = vsub.f32 0.0, %v2403
        %v2620 = vsub.f32 0.0, %v2404
        %v2621 = vsub.f32 0.0, %v2405
        %v2622 = vsub.f32 0.0, %v2406
        %v2623 = vsub.f32 0.0, %v2407
        %v2624 = vsub.f32 0.0, %v2408
        %v2625 = vsub.f32 0.0, %v2409
        %v2626 = vmul.f32 %v2618, %v2402
        %v2627 = vmul.f32 %v2619, %v2403
        %v2628 = vmul.f32 %v2620, %v2404
        %v2629 = vmul.f32 %v2621, %v2405
        %v2630 = vmul.f32 %v2622, %v2406
        %v2631 = vmul.f32 %v2623, %v2407
        %v2632 = vmul.f32 %v2624, %v2408
        %v2633 = vmul.f32 %v2625, %v2409
        %v2634 = vmul.f32 %v2626, 1.442695
        %v2635 = vpow.pop %v2634
        %v2636 = vmul.f32 %v2627, 1.442695
        %v2637 = vpow.pop %v2636
        %v2638 = vmul.f32 %v2628, 1.442695
        %v2639 = vpow.pop %v2638
        %v2640 = vmul.f32 %v2629, 1.442695
        %v2641 = vpow.pop %v2640
        %v2642 = vmul.f32 %v2630, 1.442695
        %v2643 = vpow.pop %v2642
        %v2644 = vmul.f32 %v2631, 1.442695
        %v2645 = vpow.pop %v2644
        %v2646 = vmul.f32 %v2632, 1.442695
        %v2647 = vpow.pop %v2646
        %v2648 = vmul.f32 %v2633, 1.442695
        %v2649 = vpow.pop %v2648
        %v2650 = vmul.f32 %v2610, %v2635
        %v2651 = vmul.f32 %v2611, %v2637
        %v2652 = vmul.f32 %v2612, %v2639
        %v2653 = vmul.f32 %v2613, %v2641
        %v2654 = vmul.f32 %v2614, %v2643
        %v2655 = vmul.f32 %v2615, %v2645
        %v2656 = vmul.f32 %v2616, %v2647
        %v2657 = vmul.f32 %v2617, %v2649
        %v2658 = vsub.f32 1.0, %v2650
        %v2659 = vsub.f32 1.0, %v2651
        %v2660 = vsub.f32 1.0, %v2652
        %v2661 = vsub.f32 1.0, %v2653
        %v2662 = vsub.f32 1.0, %v2654
        %v2663 = vsub.f32 1.0, %v2655
        %v2664 = vsub.f32 1.0, %v2656
        %v2665 = vsub.f32 1.0, %v2657
        %v2666 = vmul.f32 %v2394, %v2658
        %v2667 = vmul.f32 %v2395, %v2659
        %v2668 = vmul.f32 %v2396, %v2660
        %v2669 = vmul.f32 %v2397, %v2661
        %v2670 = vmul.f32 %v2398, %v2662
        %v2671 = vmul.f32 %v2399, %v2663
        %v2672 = vmul.f32 %v2400, %v2664
        %v2673 = vmul.f32 %v2401, %v2665
        %v2674 = vadd.f32 %v2666, 1.0
        %v2675 = vadd.f32 %v2667, 1.0
        %v2676 = vadd.f32 %v2668, 1.0
        %v2677 = vadd.f32 %v2669, 1.0
        %v2678 = vadd.f32 %v2670, 1.0
        %v2679 = vadd.f32 %v2671, 1.0
        %v2680 = vadd.f32 %v2672, 1.0
        %v2681 = vadd.f32 %v2673, 1.0
        %v2682 = vmul.f32 %v2370, %v2674
        %v2683 = vmul.f32 %v2371, %v2675
        %v2684 = vmul.f32 %v2372, %v2676
        %v2685 = vmul.f32 %v2373, %v2677
        %v2686 = vmul.f32 %v2374, %v2678
        %v2687 = vmul.f32 %v2375, %v2679
        %v2688 = vmul.f32 %v2376, %v2680
        %v2689 = vmul.f32 %v2377, %v2681
        %v2690 = vpack.c.bf16 %v2686, %v2682
        %v2691 = vpack.c.bf16 %v2687, %v2683
        %v2692 = vpack.c.bf16 %v2688, %v2684
        %v2693 = vpack.c.bf16 %v2689, %v2685
        %v2694 = vld [vmem:[%s897] sm:$0xf]
        %v2695 = vld [vmem:[%s897 + $0x4] sm:$0xf]
        %v2696 = vld [vmem:[%s897 + $0x8] sm:$0xf]
        %v2697 = vld [vmem:[%s897 + $0xc] sm:$0xf]
        %v2698 = vld [vmem:[%s897 + $0x10] sm:$0xf]
        %v2699 = vld [vmem:[%s897 + $0x14] sm:$0xf]
        %v2700 = vld [vmem:[%s897 + $0x18] sm:$0xf]
        %v2701 = vld [vmem:[%s897 + $0x1c] sm:$0xf]
        %v2702 = vld [vmem:[%s897 + $0x20] sm:$0xf]
        %v2703 = vld [vmem:[%s897 + $0x24] sm:$0xf]
        %v2704 = vld [vmem:[%s897 + $0x28] sm:$0xf]
        %v2705 = vld [vmem:[%s897 + $0x2c] sm:$0xf]
        %v2706 = vld [vmem:[%s897 + $0x30] sm:$0xf]
        %v2707 = vld [vmem:[%s897 + $0x34] sm:$0xf]
        %v2708 = vld [vmem:[%s897 + $0x38] sm:$0xf]
        %v2709 = vld [vmem:[%s897 + $0x3c] sm:$0xf]
        %v2710 = vld [vmem:[%s897 + $0x40] sm:$0xf]
        %v2711 = vld [vmem:[%s897 + $0x44] sm:$0xf]
        %v2712 = vld [vmem:[%s897 + $0x48] sm:$0xf]
        %v2713 = vld [vmem:[%s897 + $0x4c] sm:$0xf]
        %v2714 = vld [vmem:[%s897 + $0x50] sm:$0xf]
        %v2715 = vld [vmem:[%s897 + $0x54] sm:$0xf]
        %v2716 = vld [vmem:[%s897 + $0x58] sm:$0xf]
        %v2717 = vld [vmem:[%s897 + $0x5c] sm:$0xf]
        %v2718 = vld [vmem:[%s897 + $0x60] sm:$0xf]
        %v2719 = vld [vmem:[%s897 + $0x64] sm:$0xf]
        %v2720 = vld [vmem:[%s897 + $0x68] sm:$0xf]
        %v2721 = vld [vmem:[%s897 + $0x6c] sm:$0xf]
        %v2722 = vld [vmem:[%s897 + $0x70] sm:$0xf]
        %v2723 = vld [vmem:[%s897 + $0x74] sm:$0xf]
        %v2724 = vld [vmem:[%s897 + $0x78] sm:$0xf]
        %v2725 = vld [vmem:[%s897 + $0x7c] sm:$0xf]
        %v2726 = vld [vmem:[%s897 + $0x80] sm:$0xf]
        %v2727 = vld [vmem:[%s897 + $0x84] sm:$0xf]
        %v2728 = vld [vmem:[%s897 + $0x88] sm:$0xf]
        %v2729 = vld [vmem:[%s897 + $0x8c] sm:$0xf]
        %v2730 = vld [vmem:[%s897 + $0x90] sm:$0xf]
        %v2731 = vld [vmem:[%s897 + $0x94] sm:$0xf]
        %v2732 = vld [vmem:[%s897 + $0x98] sm:$0xf]
        %v2733 = vld [vmem:[%s897 + $0x9c] sm:$0xf]
        %v2734 = vld [vmem:[%s897 + $0xa0] sm:$0xf]
        %v2735 = vld [vmem:[%s897 + $0xa4] sm:$0xf]
        %v2736 = vld [vmem:[%s897 + $0xa8] sm:$0xf]
        %v2737 = vld [vmem:[%s897 + $0xac] sm:$0xf]
        %v2738 = vld [vmem:[%s897 + $0xb0] sm:$0xf]
        %v2739 = vld [vmem:[%s897 + $0xb4] sm:$0xf]
        %v2740 = vld [vmem:[%s897 + $0xb8] sm:$0xf]
        %v2741 = vld [vmem:[%s897 + $0xbc] sm:$0xf]
        %v2742 = vld [vmem:[%s897 + $0xc0] sm:$0xf]
        %v2743 = vld [vmem:[%s897 + $0xc4] sm:$0xf]
        %v2744 = vld [vmem:[%s897 + $0xc8] sm:$0xf]
        %v2745 = vld [vmem:[%s897 + $0xcc] sm:$0xf]
        %v2746 = vld [vmem:[%s897 + $0xd0] sm:$0xf]
        %v2747 = vld [vmem:[%s897 + $0xd4] sm:$0xf]
        %v2748 = vld [vmem:[%s897 + $0xd8] sm:$0xf]
        %v2749 = vld [vmem:[%s897 + $0xdc] sm:$0xf]
        %v2750 = vld [vmem:[%s897 + $0xe0] sm:$0xf]
        %v2751 = vld [vmem:[%s897 + $0xe4] sm:$0xf]
        %v2752 = vld [vmem:[%s897 + $0xe8] sm:$0xf]
        %v2753 = vld [vmem:[%s897 + $0xec] sm:$0xf]
        %v2754 = vld [vmem:[%s897 + $0xf0] sm:$0xf]
        %v2755 = vld [vmem:[%s897 + $0xf4] sm:$0xf]
        %v2756 = vld [vmem:[%s897 + $0xf8] sm:$0xf]
        %v2757 = vld [vmem:[%s897 + $0xfc] sm:$0xf]
        %v2758 = vld [vmem:[%s1008] sm:$0x1]
        %v2760 = vperm.slane %v2758, 0
        %v2826 = vunpack.c.l.b16 %v2694
        %v2827 = vunpack.c.l.b16 %v2695
        %v2828 = vunpack.c.l.b16 %v2696
        %v2829 = vunpack.c.l.b16 %v2697
        %v2830 = vunpack.c.l.b16 %v2698
        %v2831 = vunpack.c.l.b16 %v2699
        %v2832 = vunpack.c.l.b16 %v2700
        %v2833 = vunpack.c.l.b16 %v2701
        %v2834 = vunpack.c.l.b16 %v2702
        %v2835 = vunpack.c.l.b16 %v2703
        %v2836 = vunpack.c.l.b16 %v2704
        %v2837 = vunpack.c.l.b16 %v2705
        %v2838 = vunpack.c.l.b16 %v2706
        %v2839 = vunpack.c.l.b16 %v2707
        %v2840 = vunpack.c.l.b16 %v2708
        %v2841 = vunpack.c.l.b16 %v2709
        %v2842 = vunpack.c.l.b16 %v2710
        %v2843 = vunpack.c.l.b16 %v2711
        %v2844 = vunpack.c.l.b16 %v2712
        %v2845 = vunpack.c.l.b16 %v2713
        %v2846 = vunpack.c.l.b16 %v2714
        %v2847 = vunpack.c.l.b16 %v2715
        %v2848 = vunpack.c.l.b16 %v2716
        %v2849 = vunpack.c.l.b16 %v2717
        %v2850 = vunpack.c.l.b16 %v2718
        %v2851 = vunpack.c.l.b16 %v2719
        %v2852 = vunpack.c.l.b16 %v2720
        %v2853 = vunpack.c.l.b16 %v2721
        %v2854 = vunpack.c.l.b16 %v2722
        %v2855 = vunpack.c.l.b16 %v2723
        %v2856 = vunpack.c.l.b16 %v2724
        %v2857 = vunpack.c.l.b16 %v2725
        %v2858 = vunpack.c.l.b16 %v2726
        %v2859 = vunpack.c.l.b16 %v2727
        %v2860 = vunpack.c.l.b16 %v2728
        %v2861 = vunpack.c.l.b16 %v2729
        %v2862 = vunpack.c.l.b16 %v2730
        %v2863 = vunpack.c.l.b16 %v2731
        %v2864 = vunpack.c.l.b16 %v2732
        %v2865 = vunpack.c.l.b16 %v2733
        %v2866 = vunpack.c.l.b16 %v2734
        %v2867 = vunpack.c.l.b16 %v2735
        %v2868 = vunpack.c.l.b16 %v2736
        %v2869 = vunpack.c.l.b16 %v2737
        %v2870 = vunpack.c.l.b16 %v2738
        %v2871 = vunpack.c.l.b16 %v2739
        %v2872 = vunpack.c.l.b16 %v2740
        %v2873 = vunpack.c.l.b16 %v2741
        %v2874 = vunpack.c.l.b16 %v2742
        %v2875 = vunpack.c.l.b16 %v2743
        %v2876 = vunpack.c.l.b16 %v2744
        %v2877 = vunpack.c.l.b16 %v2745
        %v2878 = vunpack.c.l.b16 %v2746
        %v2879 = vunpack.c.l.b16 %v2747
        %v2880 = vunpack.c.l.b16 %v2748
        %v2881 = vunpack.c.l.b16 %v2749
        %v2882 = vunpack.c.l.b16 %v2750
        %v2883 = vunpack.c.l.b16 %v2751
        %v2884 = vunpack.c.l.b16 %v2752
        %v2885 = vunpack.c.l.b16 %v2753
        %v2886 = vunpack.c.l.b16 %v2754
        %v2887 = vunpack.c.l.b16 %v2755
        %v2888 = vunpack.c.l.b16 %v2756
        %v2889 = vunpack.c.l.b16 %v2757
        %v2890 = vpack.c.b16 %v2827, %v2826
        %v2891 = vpack.c.b16 %v2829, %v2828
        %v2892 = vpack.c.b16 %v2831, %v2830
        %v2893 = vpack.c.b16 %v2833, %v2832
        %v2894 = vpack.c.b16 %v2835, %v2834
        %v2895 = vpack.c.b16 %v2837, %v2836
        %v2896 = vpack.c.b16 %v2839, %v2838
        %v2897 = vpack.c.b16 %v2841, %v2840
        %v2898 = vpack.c.b16 %v2843, %v2842
        %v2899 = vpack.c.b16 %v2845, %v2844
        %v2900 = vpack.c.b16 %v2847, %v2846
        %v2901 = vpack.c.b16 %v2849, %v2848
        %v2902 = vpack.c.b16 %v2851, %v2850
        %v2903 = vpack.c.b16 %v2853, %v2852
        %v2904 = vpack.c.b16 %v2855, %v2854
        %v2905 = vpack.c.b16 %v2857, %v2856
        %v2906 = vpack.c.b16 %v2859, %v2858
        %v2907 = vpack.c.b16 %v2861, %v2860
        %v2908 = vpack.c.b16 %v2863, %v2862
        %v2909 = vpack.c.b16 %v2865, %v2864
        %v2910 = vpack.c.b16 %v2867, %v2866
        %v2911 = vpack.c.b16 %v2869, %v2868
        %v2912 = vpack.c.b16 %v2871, %v2870
        %v2913 = vpack.c.b16 %v2873, %v2872
        %v2914 = vpack.c.b16 %v2875, %v2874
        %v2915 = vpack.c.b16 %v2877, %v2876
        %v2916 = vpack.c.b16 %v2879, %v2878
        %v2917 = vpack.c.b16 %v2881, %v2880
        %v2918 = vpack.c.b16 %v2883, %v2882
        %v2919 = vpack.c.b16 %v2885, %v2884
        %v2920 = vpack.c.b16 %v2887, %v2886
        %v2921 = vpack.c.b16 %v2889, %v2888
        %2954 = vmatpush.bf16.msra.mxu0 %v2897
        %2955 = vmatpush.bf16.msra.mxu0 %v2896
        %2956 = vmatpush.bf16.msra.mxu0 %v2895
        %2957 = vmatpush.bf16.msra.mxu0 %v2894
        %2958 = vmatpush.bf16.msra.mxu0 %v2893
        %2959 = vmatpush.bf16.msra.mxu0 %v2892
        %2960 = vmatpush.bf16.msra.mxu0 %v2891
        %2961 = vmatpush.bf16.msra.mxu0 %v2890
        %2962 = vmatmul.bf16.gmra.mxu0 %v2690
        %v2963 = vpop.f32.mrf.mxu0
        %v2964 = vadd.f32 %v2760, %v2963
        %v2965 = vpop.f32.mrf.mxu0
        %v2966 = vadd.f32 %v2760, %v2965
        %2967 = vdwg.mxu0
        %2968 = vmatpush.bf16.msra.mxu0 %v2905
        %2969 = vmatpush.bf16.msra.mxu0 %v2904
        %2970 = vmatpush.bf16.msra.mxu0 %v2903
        %2971 = vmatpush.bf16.msra.mxu0 %v2902
        %2972 = vmatpush.bf16.msra.mxu0 %v2901
        %2973 = vmatpush.bf16.msra.mxu0 %v2900
        %2974 = vmatpush.bf16.msra.mxu0 %v2899
        %2975 = vmatpush.bf16.msra.mxu0 %v2898
        %2976 = vmatmul.bf16.gmra.mxu0 %v2691
        %v2977 = vpop.f32.mrf.mxu0
        %v2978 = vadd.f32 %v2964, %v2977
        %v2979 = vpop.f32.mrf.mxu0
        %v2980 = vadd.f32 %v2966, %v2979
        %2981 = vdwg.mxu0
        %2982 = vmatpush.bf16.msra.mxu0 %v2913
        %2983 = vmatpush.bf16.msra.mxu0 %v2912
        %2984 = vmatpush.bf16.msra.mxu0 %v2911
        %2985 = vmatpush.bf16.msra.mxu0 %v2910
        %2986 = vmatpush.bf16.msra.mxu0 %v2909
        %2987 = vmatpush.bf16.msra.mxu0 %v2908
        %2988 = vmatpush.bf16.msra.mxu0 %v2907
        %2989 = vmatpush.bf16.msra.mxu0 %v2906
        %2990 = vmatmul.bf16.gmra.mxu0 %v2692
        %v2991 = vpop.f32.mrf.mxu0
        %v2992 = vadd.f32 %v2978, %v2991
        %v2993 = vpop.f32.mrf.mxu0
        %v2994 = vadd.f32 %v2980, %v2993
        %2995 = vdwg.mxu0
        %2996 = vmatpush.bf16.msra.mxu0 %v2921
        %2997 = vmatpush.bf16.msra.mxu0 %v2920
        %2998 = vmatpush.bf16.msra.mxu0 %v2919
        %2999 = vmatpush.bf16.msra.mxu0 %v2918
        %3000 = vmatpush.bf16.msra.mxu0 %v2917
        %3001 = vmatpush.bf16.msra.mxu0 %v2916
        %3002 = vmatpush.bf16.msra.mxu0 %v2915
        %3003 = vmatpush.bf16.msra.mxu0 %v2914
        %3004 = vmatmul.bf16.gmra.mxu0 %v2693
        %v3005 = vpop.f32.mrf.mxu0
        %v3006 = vadd.f32 %v2992, %v3005
        %v3007 = vpop.f32.mrf.mxu0
        %v3008 = vadd.f32 %v2994, %v3007
        %3009 = vdwg.mxu0
        %v3010 = vadd.f32 %v2057, %v3006
        %v3011 = vadd.f32 %v2058, %v3008
        %3012 = vst [vmem:[#allocation2] sm:$0xff] %v3010
        %3013 = vst [vmem:[#allocation2 + $0x8] sm:$0xff] %v3011
        %p3014 = scmp.eq.s32.totalorder %s34, 1
        // Predicated region
        $region153: #{tpu_custom_call.1} parent=95 // pred_check
          %p3015 = pneg %p3014
        $region154: #{tpu_custom_call.1} parent=95 // pred_check_branch
          %3017 = sbr.rel (%p3015) target = $region156
        $region155: #{tpu_custom_call.1} parent=95 // pred_region
          %v3018 = vld [vmem:[%s17] sm:$0x1]
          %v3019 = vld [vmem:[%s18] sm:$0x1]
          %3020 = vadd.xlane.f32.xlu0 %v3010
          %v3021 = vpop.xlane.xlu0 %3020
          %3022 = vadd.xlane.f32.xlu0 %v3011
          %v3023 = vpop.xlane.xlu0 %3022
          %v3024 = vmul.f32 %v3021, %v1075
          %v3025 = vmul.f32 %v3023, %v1075
          %v3026 = vsub.f32 %v3010, %v3024
          %v3027 = vsub.f32 %v3011, %v3025
          %v3028 = vmul.f32 %v3026, %v3026
          %v3029 = vmul.f32 %v3027, %v3027
          %3030 = vadd.xlane.f32.xlu0 %v3028
          %v3031 = vpop.xlane.xlu0 %3030
          %3032 = vadd.xlane.f32.xlu0 %v3029
          %v3033 = vpop.xlane.xlu0 %3032
          %v3034 = vmul.f32 %v3031, %v1075
          %v3035 = vmul.f32 %v3033, %v1075
          %v3036 = vadd.f32 %v3034, 1e-05
          %v3037 = vadd.f32 %v3035, 1e-05
          %v3038 = vrsqrt.pop %v3036
          %v3039 = vmul.f32 %v3038, %v3036
          %v3040 = vmul.f32 %v3039, %v3038
          %v3041 = vmul.f32 0.5, %v3040
          %v3042 = vsub.f32 1.5, %v3041
          %v3043 = vmul.f32 %v3038, %v3042
          %vm3044 = vweird.f32 %v3036
          %vm3045 = vweird.f32 %v3038
          %vm3046 = vmor %vm3044, %vm3045
          %v3047 = vsel %vm3046, %v3038, %v3043
          %v3048 = vrsqrt.pop %v3037
          %v3049 = vmul.f32 %v3048, %v3037
          %v3050 = vmul.f32 %v3049, %v3048
          %v3051 = vmul.f32 0.5, %v3050
          %v3052 = vsub.f32 1.5, %v3051
          %v3053 = vmul.f32 %v3048, %v3052
          %vm3054 = vweird.f32 %v3037
          %vm3055 = vweird.f32 %v3048
          %vm3056 = vmor %vm3054, %vm3055
          %v3057 = vsel %vm3056, %v3048, %v3053
          %v3058 = vmul.f32 %v3026, %v3047
          %v3059 = vmul.f32 %v3027, %v3057
          %v3061 = vperm.slane %v3018, 0
          %v3063 = vmul.f32 %v3058, %v3061
          %v3064 = vmul.f32 %v3059, %v3061
          %v3066 = vperm.slane %v3019, 0
          %v3068 = vadd.f32 %v3063, %v3066
          %v3069 = vadd.f32 %v3064, %v3066
          %3070 = vst [vmem:[#allocation22] sm:$0xff] %v3068
          %3071 = vst [vmem:[#allocation22 + $0x8] sm:$0xff] %v3069
        $region156: #{tpu_custom_call.1} parent=95 // pred_fallthru
          _
        // Predicated region
        $region157: #{tpu_custom_call.1} parent=95 // pred_check
          %p3072 = pneg %p511
        $region158: #{tpu_custom_call.1} parent=95 // pred_check_branch
          %3074 = sbr.rel (%p3072) target = $region160
        $region159: #{tpu_custom_call.1} parent=95 // pred_region
          %3076 = vsyncadd [#allocation7], 0
          %s3077 = sshll.u32 [#allocation22], 4
          %s3078 = int_to_ptr.vmem [resolvable:$true] %s3077
          %s3079 = sshll.u32 %s19, 4
          %s3080 = int_to_ptr.hbm [resolvable:$true] %s3079
          %3085 = dma.vmem_to_hbm [thread:$0]  %s3078, 256, %s3080, [#allocation7], 128, 128, 8
        $region160: #{tpu_custom_call.1} parent=95 // pred_fallthru
          _
        // Predicated region
        $region161: #{tpu_custom_call.1} parent=95 // pred_check
          %p3086 = pneg %p511
        $region162: #{tpu_custom_call.1} parent=95 // pred_check_branch
          %3088 = sbr.rel (%p3086) target = $region164
        $region163: #{tpu_custom_call.1} parent=95 // pred_region
          %3090 = dma.done [#allocation7], 256
        $region164: #{tpu_custom_call.1} parent=95 // pred_fallthru
          _
      $region96: #{tpu_custom_call.1} parent=5 // pred_fallthru
        _
      %p3091 = scmp.le.s32.totalorder 2, %s29
      // Predicated region
      $region165: #{tpu_custom_call.1} parent=5 // pred_check
        %p3092 = pneg %p3091
      $region166: #{tpu_custom_call.1} parent=5 // pred_check_branch
        %3094 = sbr.rel (%p3092) target = $region168
      $region167: #{tpu_custom_call.1} parent=5 // pred_region
        %s3095 = ssub.s32 %s29, 2
      $region168: #{tpu_custom_call.1} parent=5 // pred_fallthru
        _
    $region6: #{tpu_custom_call.1} parent=1 // loop_footer
      %s33 = sadd.s32 1, %s29
    $region7: #{tpu_custom_call.1} parent=1 // loop_footer_branch
      %28 = sbr.rel target = $region3
    $region8: #{tpu_custom_call.1} parent=1 // loop_exit
      _
    %3096 = vsyncpa [#allocation6], 1
    %s3097 = scalar_lea.sflag [#allocation6], 1
    %3098 = vsyncpa %s3097, 1
    %3099 = vsyncpa [#allocation9], 1
    %3100 = vsyncpa [#allocation12], 1
    %3101 = vsyncpa [#allocation7], 1
    %s3102 = scalar_lea.sflag [#allocation7], 1
    %3103 = vsyncpa %s3102, 1

</llo_original>
